<compile_context>
chip_gen: v7x
topology: tpu7x:2x2x1
jax: 0.10.0
libtpu: 0.0.40
codegen_flags: <defaults>
</compile_context>

<pallas_src>
import jax
import jax.numpy as jnp
from jax.experimental import pallas as pl
from jax.experimental.pallas import tpu as pltpu

C = 16         # conv channels (conv1: 1 -> 16, conv2: 16 -> 16)
K = 5          # conv kernel size
PAD = 2        # "same" padding = (K-1)//2
L = 100        # sequence length implied by view(-1, 16*50) after max_pool1d(2)
LP = 128       # lane-padded sequence length (one example per 128-lane block)
LPOOL = 50     # pooled length

F32 = jnp.float32
PREC = jax.lax.Precision.HIGHEST


def vcnn_kernel(x_ref, w1f_ref, w2f_ref, w1b_ref, b1_ref, out_ref, h1s_ref, ps_ref):
    n = x_ref.shape[1]          # lanes in this block = bblk * 128, lane = b*128 + l
    nb = out_ref.shape[0]       # batch elements in this block

    x = x_ref[...]              # (1, n); pad lanes (l >= 100) and padded examples are zero
    w1f = w1f_ref[...]          # (C, K)

    # ---- conv1 (1 -> 16): K lane-rolled taps, per-tap channel column FMA on the VPU ----
    # (roll wrap-around only ever lands on zeroed pad lanes, so zero padding is exact)
    h1 = None
    for k in range(K):
        s = (PAD - k) % n
        tap = x if s == 0 else pltpu.roll(x, shift=s, axis=1)        # x[:, l + k - PAD]
        term = w1f[:, k:k + 1] * tap                                 # (C, n)
        h1 = term if h1 is None else h1 + term

    # relu + zero the lane-pad region (l & 127 >= 100) so it acts as conv2's zero pad
    lane = jax.lax.broadcasted_iota(jnp.int32, (1, n), 1)
    valid = (lane & (LP - 1)) < L                                    # (1, n)
    h1 = jnp.where(valid, jnp.maximum(h1, 0.0), 0.0)                 # (C, n)

    # ---- conv2 (16 -> 16): K rolled copies stacked on sublanes in VMEM scratch -> 1 dot ----
    for k in range(K):
        s = (PAD - k) % n
        h1s_ref[k * C:(k + 1) * C, :] = (
            h1 if s == 0 else pltpu.roll(h1, shift=s, axis=1))
    h2 = jnp.maximum(
        jnp.dot(w2f_ref[...], h1s_ref[...],
                preferred_element_type=F32, precision=PREC),
        0.0)                                                         # (C, n)

    # ---- max_pool1d(2): pooled value j lives at even lane 2j (< 100) of each block ----
    m = jnp.maximum(h2, pltpu.roll(h2, shift=n - 1, axis=1))         # (C, n)

    # ---- linear (800 -> 1) + sigmoid ----
    # weight base (C, 128) tiled along lanes (one copy per example); odd / pad lanes are
    # zero there, so beyond-boundary pool values and conv2 pad-lane garbage are discarded.
    w1t = jnp.concatenate([w1b_ref[...]] * nb, axis=1)               # (C, n)
    psum = jnp.sum(m * w1t, axis=0, keepdims=True)                   # (1, n)  channel reduce
    # per-example fold: scatter each 128-lane chunk into one row, then reduce lanes
    for b in range(nb):
        ps_ref[b:b + 1, :] = psum[:, b * LP:(b + 1) * LP]
    y = jnp.sum(ps_ref[...], axis=-1, keepdims=True) + b1_ref[0, 0]  # (nb, 1)
    out_ref[...] = jax.nn.sigmoid(y)


def _round_up(a, m):
    return ((a + m - 1) // m) * m


def vcnn_forward(x, params):
    """x: (B, 1, 100) float32 (PyTorch NCL). Returns sigmoid logits of shape (B, 1)."""
    w1, w2, W1, b1 = params
    B = x.shape[0]

    # ---- batch blocking: one grid step handles `bblk` examples (lane = b*128 + l) ----
    if B <= 8:
        bblk = 8
    else:
        # >= 2 grid steps whenever possible (v7x has 2 TensorCores), block capped at 128
        bblk = min(128, _round_up((B + 1) // 2, 8))
    bpad = _round_up(B, bblk)
    n_lanes = bblk * LP
    grid = (bpad // bblk,)

    # ---- layout glue (plain JAX) ----
    x1 = x[:, 0, :].astype(F32)                                      # (B, 100)
    x1 = jnp.pad(x1, ((0, bpad - B), (0, LP - L)))                   # (bpad, 128), zeros
    x1 = x1.reshape(1, bpad * LP)                                    # lane = b*128 + l

    w1f = w1[:, 0, :].astype(F32)                                    # (C, K)
    w2f = jnp.transpose(w2, (0, 2, 1)).reshape(C, K * C).astype(F32)  # (C, K*C), col = k*C+c_in

    # linear weight base: pooled value j of channel c sits at even lane 2j
    w1b = jnp.zeros((C, LP), F32).at[:, 0:2 * LPOOL:2].set(
        W1.astype(F32).reshape(C, LPOOL))                            # (C, 128)

    b1s = jnp.reshape(b1.astype(F32), (1, 1))                        # SMEM scalar

    out = pl.pallas_call(
        vcnn_kernel,
        out_shape=jax.ShapeDtypeStruct((bpad, 1), F32),
        grid=grid,
        in_specs=[
            pl.BlockSpec((1, n_lanes), lambda i: (0, i)),            # input (per batch block)
            pl.BlockSpec((C, K), lambda i: (0, 0)),                  # conv1 weight
            pl.BlockSpec((C, K * C), lambda i: (0, 0)),              # conv2 weight (taps fused)
            pl.BlockSpec((C, LP), lambda i: (0, 0)),                 # linear weight base
            pl.BlockSpec(memory_space=pltpu.MemorySpace.SMEM),       # bias scalar
        ],
        out_specs=pl.BlockSpec((bblk, 1), lambda i: (i, 0)),
        scratch_shapes=[
            pltpu.VMEM((K * C, n_lanes), F32),                       # conv2 tap stack
            pltpu.VMEM((bblk, LP), F32),                             # per-example fold buffer
        ],
        compiler_params=pltpu.CompilerParams(
            dimension_semantics=("parallel",)),
    )(x1, w1f, w2f, w1b, b1s)

    return out[:B]                                                   # (B, 1)


def vcnn_reference(x, params):
    """Pure-JAX replica of the PyTorch forward (for verification)."""
    w1, w2, W1, b1 = params
    B = x.shape[0]

    def conv(h, w):
        return jax.lax.conv_general_dilated(
            h, w, window_strides=(1,), padding=[(PAD, PAD)],
            dimension_numbers=('NCH', 'OIH', 'NCH'), precision=PREC)

    h = jax.nn.relu(conv(x, w1))                                     # (B, 16, 100)
    h = jax.nn.relu(conv(h, w2))                                     # (B, 16, 100)
    h = h.reshape(B, C, LPOOL, 2).max(axis=-1)                       # max_pool1d(2)
    h = h.reshape(B, C * LPOOL)                                      # view(-1, 800)
    o = jnp.dot(h, W1.T, precision=PREC) + b1                        # (B, 1)
    return jax.nn.sigmoid(o)


if __name__ == "__main__":
    key = jax.random.PRNGKey(0)
    ks = jax.random.split(key, 5)

    # deterministic synthetic parameters (shapes from __init__; bias=False convs)
    w1 = jax.random.normal(ks[1], (C, 1, K), F32) * (1.0 / K ** 0.5)           # conv1
    w2 = jax.random.normal(ks[2], (C, C, K), F32) * (1.0 / (C * K) ** 0.5)     # conv2
    W1 = jax.random.normal(ks[3], (1, C * LPOOL), F32) * (1.0 / (C * LPOOL) ** 0.5)
    b1 = jax.random.normal(ks[4], (1,), F32) * 0.01
    params = (w1, w2, W1, b1)

    # B=2: the small primary case; B=20: exercises grid > 1 and a zero-padded tail block.
    for B in (2, 20):
        x = jax.random.normal(jax.random.fold_in(ks[0], B), (B, 1, L), F32)
        out = jax.block_until_ready(vcnn_forward(x, params))
        ref = jax.block_until_ready(vcnn_reference(x, params))
        assert out.shape == (B, 1)
        if not jnp.allclose(out, ref, atol=1e-4, rtol=1e-4):
            raise AssertionError(
                f"B={B}: kernel/reference mismatch, "
                f"max abs diff = {jnp.max(jnp.abs(out - ref))}")
    print("KERNEL_OK")
</pallas_src>

<mosaic_0001>
module attributes {stable_mosaic.version = 11 : i64} {
  func.func @vcnn_kernel(%arg0: i32, %arg1: memref<1x1024xf32, #tpu.memory_space<vmem>>, %arg2: memref<16x5xf32, #tpu.memory_space<vmem>>, %arg3: memref<16x80xf32, #tpu.memory_space<vmem>>, %arg4: memref<16x128xf32, #tpu.memory_space<vmem>>, %arg5: memref<1x1xf32, #tpu.memory_space<smem>>, %arg6: memref<8x1xf32, #tpu.memory_space<vmem>>, %arg7: memref<80x1024xf32, #tpu.memory_space<vmem>>, %arg8: memref<8x128xf32, #tpu.memory_space<vmem>>) attributes {dimension_semantics = [#tpu.dimension_semantics<parallel>], iteration_bounds = array<i64: 1>, scalar_prefetch = 0 : i64, scratch_operands = 2 : i64, tpu.core_type = #tpu.core_type<tc>, window_params = [{transform_indices = @transform_0, window_bounds = array<i64: 1, 1024>}, {pipeline_mode = #tpu.pipeline_mode<synchronous>, transform_indices = @transform_1, window_bounds = array<i64: 16, 5>}, {pipeline_mode = #tpu.pipeline_mode<synchronous>, transform_indices = @transform_2, window_bounds = array<i64: 16, 80>}, {pipeline_mode = #tpu.pipeline_mode<synchronous>, transform_indices = @transform_3, window_bounds = array<i64: 16, 128>}, {transform_indices = @transform_4, window_bounds = array<i64: 1, 1>}, {transform_indices = @transform_5, window_bounds = array<i64: 8, 1>}]} {
    %c0 = arith.constant 0 : index
    %c0_0 = arith.constant 0 : index
    %0 = vector.load %arg1[%c0, %c0_0] : memref<1x1024xf32, #tpu.memory_space<vmem>>, vector<1x1024xf32>
    %c0_1 = arith.constant 0 : index
    %c0_2 = arith.constant 0 : index
    %1 = vector.load %arg2[%c0_1, %c0_2] : memref<16x5xf32, #tpu.memory_space<vmem>>, vector<16x5xf32>
    %c2_i32 = arith.constant 2 : i32
    %2 = tpu.dynamic_rotate %0 by %c2_i32 dim 1 : vector<1x1024xf32>, i32 -> vector<1x1024xf32>
    %3 = vector.extract_strided_slice %1 {offsets = [0, 0], sizes = [16, 1], strides = [1, 1]} : vector<16x5xf32> to vector<16x1xf32>
    %4 = vector.broadcast %3 : vector<16x1xf32> to vector<16x1024xf32>
    %5 = vector.broadcast %2 : vector<1x1024xf32> to vector<16x1024xf32>
    %6 = arith.mulf %4, %5 : vector<16x1024xf32>
    %c1_i32 = arith.constant 1 : i32
    %7 = tpu.dynamic_rotate %0 by %c1_i32 dim 1 : vector<1x1024xf32>, i32 -> vector<1x1024xf32>
    %8 = vector.extract_strided_slice %1 {offsets = [0, 1], sizes = [16, 1], strides = [1, 1]} : vector<16x5xf32> to vector<16x1xf32>
    %9 = vector.broadcast %8 : vector<16x1xf32> to vector<16x1024xf32>
    %10 = vector.broadcast %7 : vector<1x1024xf32> to vector<16x1024xf32>
    %11 = arith.mulf %9, %10 : vector<16x1024xf32>
    %12 = arith.addf %6, %11 : vector<16x1024xf32>
    %13 = vector.extract_strided_slice %1 {offsets = [0, 2], sizes = [16, 1], strides = [1, 1]} : vector<16x5xf32> to vector<16x1xf32>
    %14 = vector.broadcast %13 : vector<16x1xf32> to vector<16x1024xf32>
    %15 = vector.broadcast %0 : vector<1x1024xf32> to vector<16x1024xf32>
    %16 = arith.mulf %14, %15 : vector<16x1024xf32>
    %17 = arith.addf %12, %16 : vector<16x1024xf32>
    %c1023_i32 = arith.constant 1023 : i32
    %18 = tpu.dynamic_rotate %0 by %c1023_i32 dim 1 : vector<1x1024xf32>, i32 -> vector<1x1024xf32>
    %19 = vector.extract_strided_slice %1 {offsets = [0, 3], sizes = [16, 1], strides = [1, 1]} : vector<16x5xf32> to vector<16x1xf32>
    %20 = vector.broadcast %19 : vector<16x1xf32> to vector<16x1024xf32>
    %21 = vector.broadcast %18 : vector<1x1024xf32> to vector<16x1024xf32>
    %22 = arith.mulf %20, %21 : vector<16x1024xf32>
    %23 = arith.addf %17, %22 : vector<16x1024xf32>
    %c1022_i32 = arith.constant 1022 : i32
    %24 = tpu.dynamic_rotate %0 by %c1022_i32 dim 1 : vector<1x1024xf32>, i32 -> vector<1x1024xf32>
    %25 = vector.extract_strided_slice %1 {offsets = [0, 4], sizes = [16, 1], strides = [1, 1]} : vector<16x5xf32> to vector<16x1xf32>
    %26 = vector.broadcast %25 : vector<16x1xf32> to vector<16x1024xf32>
    %27 = vector.broadcast %24 : vector<1x1024xf32> to vector<16x1024xf32>
    %28 = arith.mulf %26, %27 : vector<16x1024xf32>
    %29 = arith.addf %23, %28 : vector<16x1024xf32>
    %30 = tpu.iota {dimensions = array<i32: 1>} : vector<1x1024xi32>
    %c127_i32 = arith.constant 127 : i32
    %31 = vector.broadcast %c127_i32 : i32 to vector<1x1024xi32>
    %32 = arith.andi %30, %31 : vector<1x1024xi32>
    %c100_i32 = arith.constant 100 : i32
    %33 = vector.broadcast %c100_i32 : i32 to vector<1x1024xi32>
    %34 = arith.cmpi slt, %32, %33 : vector<1x1024xi32>
    %cst = arith.constant 0.000000e+00 : f32
    %35 = vector.broadcast %cst : f32 to vector<16x1024xf32>
    %36 = arith.maximumf %29, %35 : vector<16x1024xf32>
    %cst_3 = arith.constant 0.000000e+00 : f32
    %37 = vector.shape_cast %34 : vector<1x1024xi1> to vector<1x1024xi1>
    %38 = vector.broadcast %37 : vector<1x1024xi1> to vector<16x1024xi1>
    %39 = vector.broadcast %cst_3 : f32 to vector<16x1024xf32>
    %40 = arith.select %38, %36, %39 : vector<16x1024xi1>, vector<16x1024xf32>
    %c2_i32_4 = arith.constant 2 : i32
    %41 = tpu.dynamic_rotate %40 by %c2_i32_4 dim 1 : vector<16x1024xf32>, i32 -> vector<16x1024xf32>
    %c0_5 = arith.constant 0 : index
    %c0_6 = arith.constant 0 : index
    %42 = vector.load %arg7[%c0_5, %c0_6] : memref<80x1024xf32, #tpu.memory_space<vmem>>, vector<16x1024xf32>
    tpu.vector_store %arg7[%c0_5, %c0_6], %41 {strides = array<i32>} : memref<80x1024xf32, #tpu.memory_space<vmem>>, vector<16x1024xf32>,
    %c1_i32_7 = arith.constant 1 : i32
    %43 = tpu.dynamic_rotate %40 by %c1_i32_7 dim 1 : vector<16x1024xf32>, i32 -> vector<16x1024xf32>
    %c16 = arith.constant 16 : index
    %c0_8 = arith.constant 0 : index
    %44 = vector.load %arg7[%c16, %c0_8] : memref<80x1024xf32, #tpu.memory_space<vmem>>, vector<16x1024xf32>
    tpu.vector_store %arg7[%c16, %c0_8], %43 {strides = array<i32>} : memref<80x1024xf32, #tpu.memory_space<vmem>>, vector<16x1024xf32>,
    %c32 = arith.constant 32 : index
    %c0_9 = arith.constant 0 : index
    %45 = vector.load %arg7[%c32, %c0_9] : memref<80x1024xf32, #tpu.memory_space<vmem>>, vector<16x1024xf32>
    tpu.vector_store %arg7[%c32, %c0_9], %40 {strides = array<i32>} : memref<80x1024xf32, #tpu.memory_space<vmem>>, vector<16x1024xf32>,
    %c1023_i32_10 = arith.constant 1023 : i32
    %46 = tpu.dynamic_rotate %40 by %c1023_i32_10 dim 1 : vector<16x1024xf32>, i32 -> vector<16x1024xf32>
    %c48 = arith.constant 48 : index
    %c0_11 = arith.constant 0 : index
    %47 = vector.load %arg7[%c48, %c0_11] : memref<80x1024xf32, #tpu.memory_space<vmem>>, vector<16x1024xf32>
    tpu.vector_store %arg7[%c48, %c0_11], %46 {strides = array<i32>} : memref<80x1024xf32, #tpu.memory_space<vmem>>, vector<16x1024xf32>,
    %c1022_i32_12 = arith.constant 1022 : i32
    %48 = tpu.dynamic_rotate %40 by %c1022_i32_12 dim 1 : vector<16x1024xf32>, i32 -> vector<16x1024xf32>
    %c64 = arith.constant 64 : index
    %c0_13 = arith.constant 0 : index
    %49 = vector.load %arg7[%c64, %c0_13] : memref<80x1024xf32, #tpu.memory_space<vmem>>, vector<16x1024xf32>
    tpu.vector_store %arg7[%c64, %c0_13], %48 {strides = array<i32>} : memref<80x1024xf32, #tpu.memory_space<vmem>>, vector<16x1024xf32>,
    %c0_14 = arith.constant 0 : index
    %c0_15 = arith.constant 0 : index
    %50 = vector.load %arg3[%c0_14, %c0_15] : memref<16x80xf32, #tpu.memory_space<vmem>>, vector<16x80xf32>
    %c0_16 = arith.constant 0 : index
    %c0_17 = arith.constant 0 : index
    %51 = vector.load %arg7[%c0_16, %c0_17] : memref<80x1024xf32, #tpu.memory_space<vmem>>, vector<80x1024xf32>
    %cst_18 = arith.constant dense<0.000000e+00> : vector<16x1024xf32>
    %52 = tpu.matmul %50, %51, %cst_18 {dimension_numbers = #tpu.dot_dimension_numbers<[1], [0], [0], [1], [0, 0, 1, 1], [], []>, precision = #tpu.contract_precision<fp32>} : vector<16x80xf32>, vector<80x1024xf32>, vector<16x1024xf32> -> vector<16x1024xf32>
    %cst_19 = arith.constant 0.000000e+00 : f32
    %53 = vector.broadcast %cst_19 : f32 to vector<16x1024xf32>
    %54 = arith.maximumf %52, %53 : vector<16x1024xf32>
    %c1023_i32_20 = arith.constant 1023 : i32
    %55 = tpu.dynamic_rotate %54 by %c1023_i32_20 dim 1 : vector<16x1024xf32>, i32 -> vector<16x1024xf32>
    %56 = arith.maximumf %54, %55 : vector<16x1024xf32>
    %c0_21 = arith.constant 0 : index
    %c0_22 = arith.constant 0 : index
    %57 = vector.load %arg4[%c0_21, %c0_22] : memref<16x128xf32, #tpu.memory_space<vmem>>, vector<16x128xf32>
    %58 = tpu.concatenate %57, %57, %57, %57, %57, %57, %57, %57 in 1 : vector<16x128xf32>, vector<16x128xf32>, vector<16x128xf32>, vector<16x128xf32>, vector<16x128xf32>, vector<16x128xf32>, vector<16x128xf32>, vector<16x128xf32> -> vector<16x1024xf32>
    %59 = arith.mulf %56, %58 : vector<16x1024xf32>
    %cst_23 = arith.constant dense<0.000000e+00> : vector<1024xf32>
    %60 = vector.multi_reduction <add>, %59, %cst_23 [0] : vector<16x1024xf32> to vector<1024xf32>
    %61 = vector.shape_cast %60 : vector<1024xf32> to vector<1x1024xf32>
    %62 = vector.extract_strided_slice %61 {offsets = [0, 0], sizes = [1, 128], strides = [1, 1]} : vector<1x1024xf32> to vector<1x128xf32>
    %c0_24 = arith.constant 0 : index
    %c0_25 = arith.constant 0 : index
    %63 = vector.load %arg8[%c0_24, %c0_25] : memref<8x128xf32, #tpu.memory_space<vmem>>, vector<1x128xf32>
    tpu.vector_store %arg8[%c0_24, %c0_25], %62 {strides = array<i32>} : memref<8x128xf32, #tpu.memory_space<vmem>>, vector<1x128xf32>,
    %64 = vector.extract_strided_slice %61 {offsets = [0, 128], sizes = [1, 128], strides = [1, 1]} : vector<1x1024xf32> to vector<1x128xf32>
    %c1 = arith.constant 1 : index
    %c0_26 = arith.constant 0 : index
    %65 = vector.load %arg8[%c1, %c0_26] : memref<8x128xf32, #tpu.memory_space<vmem>>, vector<1x128xf32>
    tpu.vector_store %arg8[%c1, %c0_26], %64 {strides = array<i32>} : memref<8x128xf32, #tpu.memory_space<vmem>>, vector<1x128xf32>,
    %66 = vector.extract_strided_slice %61 {offsets = [0, 256], sizes = [1, 128], strides = [1, 1]} : vector<1x1024xf32> to vector<1x128xf32>
    %c2 = arith.constant 2 : index
    %c0_27 = arith.constant 0 : index
    %67 = vector.load %arg8[%c2, %c0_27] : memref<8x128xf32, #tpu.memory_space<vmem>>, vector<1x128xf32>
    tpu.vector_store %arg8[%c2, %c0_27], %66 {strides = array<i32>} : memref<8x128xf32, #tpu.memory_space<vmem>>, vector<1x128xf32>,
    %68 = vector.extract_strided_slice %61 {offsets = [0, 384], sizes = [1, 128], strides = [1, 1]} : vector<1x1024xf32> to vector<1x128xf32>
    %c3 = arith.constant 3 : index
    %c0_28 = arith.constant 0 : index
    %69 = vector.load %arg8[%c3, %c0_28] : memref<8x128xf32, #tpu.memory_space<vmem>>, vector<1x128xf32>
    tpu.vector_store %arg8[%c3, %c0_28], %68 {strides = array<i32>} : memref<8x128xf32, #tpu.memory_space<vmem>>, vector<1x128xf32>,
    %70 = vector.extract_strided_slice %61 {offsets = [0, 512], sizes = [1, 128], strides = [1, 1]} : vector<1x1024xf32> to vector<1x128xf32>
    %c4 = arith.constant 4 : index
    %c0_29 = arith.constant 0 : index
    %71 = vector.load %arg8[%c4, %c0_29] : memref<8x128xf32, #tpu.memory_space<vmem>>, vector<1x128xf32>
    tpu.vector_store %arg8[%c4, %c0_29], %70 {strides = array<i32>} : memref<8x128xf32, #tpu.memory_space<vmem>>, vector<1x128xf32>,
    %72 = vector.extract_strided_slice %61 {offsets = [0, 640], sizes = [1, 128], strides = [1, 1]} : vector<1x1024xf32> to vector<1x128xf32>
    %c5 = arith.constant 5 : index
    %c0_30 = arith.constant 0 : index
    %73 = vector.load %arg8[%c5, %c0_30] : memref<8x128xf32, #tpu.memory_space<vmem>>, vector<1x128xf32>
    tpu.vector_store %arg8[%c5, %c0_30], %72 {strides = array<i32>} : memref<8x128xf32, #tpu.memory_space<vmem>>, vector<1x128xf32>,
    %74 = vector.extract_strided_slice %61 {offsets = [0, 768], sizes = [1, 128], strides = [1, 1]} : vector<1x1024xf32> to vector<1x128xf32>
    %c6 = arith.constant 6 : index
    %c0_31 = arith.constant 0 : index
    %75 = vector.load %arg8[%c6, %c0_31] : memref<8x128xf32, #tpu.memory_space<vmem>>, vector<1x128xf32>
    tpu.vector_store %arg8[%c6, %c0_31], %74 {strides = array<i32>} : memref<8x128xf32, #tpu.memory_space<vmem>>, vector<1x128xf32>,
    %76 = vector.extract_strided_slice %61 {offsets = [0, 896], sizes = [1, 128], strides = [1, 1]} : vector<1x1024xf32> to vector<1x128xf32>
    %c7 = arith.constant 7 : index
    %c0_32 = arith.constant 0 : index
    %77 = vector.load %arg8[%c7, %c0_32] : memref<8x128xf32, #tpu.memory_space<vmem>>, vector<1x128xf32>
    tpu.vector_store %arg8[%c7, %c0_32], %76 {strides = array<i32>} : memref<8x128xf32, #tpu.memory_space<vmem>>, vector<1x128xf32>,
    %c0_33 = arith.constant 0 : index
    %c0_34 = arith.constant 0 : index
    %78 = vector.load %arg8[%c0_33, %c0_34] : memref<8x128xf32, #tpu.memory_space<vmem>>, vector<8x128xf32>
    %cst_35 = arith.constant dense<0.000000e+00> : vector<8xf32>
    %79 = vector.multi_reduction <add>, %78, %cst_35 [1] : vector<8x128xf32> to vector<8xf32>
    %80 = vector.shape_cast %79 : vector<8xf32> to vector<8x1xf32>
    %c0_36 = arith.constant 0 : index
    %c0_37 = arith.constant 0 : index
    %81 = memref.load %arg5[%c0_36, %c0_37] : memref<1x1xf32, #tpu.memory_space<smem>>
    %82 = vector.broadcast %81 : f32 to vector<8x1xf32>
    %83 = arith.addf %80, %82 : vector<8x1xf32>
    %84 = arith.negf %83 : vector<8x1xf32>
    %85 = math.exp %84 : vector<8x1xf32>
    %cst_38 = arith.constant 1.000000e+00 : f32
    %86 = vector.broadcast %cst_38 : f32 to vector<8x1xf32>
    %87 = arith.addf %86, %85 : vector<8x1xf32>
    %88 = arith.divf %86, %87 : vector<8x1xf32>
    %c0_39 = arith.constant 0 : index
    %c0_40 = arith.constant 0 : index
    %89 = vector.load %arg6[%c0_39, %c0_40] : memref<8x1xf32, #tpu.memory_space<vmem>>, vector<8x1xf32>
    tpu.vector_store %arg6[%c0_39, %c0_40], %88 {strides = array<i32>} : memref<8x1xf32, #tpu.memory_space<vmem>>, vector<8x1xf32>,
    return
  }
  func.func @transform_0(%arg0: i32) -> (i32, i32) {
    %c0_i32 = arith.constant 0 : i32
    %c0_i32_0 = arith.constant 0 : i32
    return %c0_i32, %arg0 : i32, i32
  }
  func.func @transform_1(%arg0: i32) -> (i32, i32) {
    %c0_i32 = arith.constant 0 : i32
    %c0_i32_0 = arith.constant 0 : i32
    %c0_i32_1 = arith.constant 0 : i32
    return %c0_i32, %c0_i32_0 : i32, i32
  }
  func.func @transform_2(%arg0: i32) -> (i32, i32) {
    %c0_i32 = arith.constant 0 : i32
    %c0_i32_0 = arith.constant 0 : i32
    %c0_i32_1 = arith.constant 0 : i32
    return %c0_i32, %c0_i32_0 : i32, i32
  }
  func.func @transform_3(%arg0: i32) -> (i32, i32) {
    %c0_i32 = arith.constant 0 : i32
    %c0_i32_0 = arith.constant 0 : i32
    %c0_i32_1 = arith.constant 0 : i32
    return %c0_i32, %c0_i32_0 : i32, i32
  }
  func.func @transform_4(%arg0: i32) -> (i32, i32) {
    %c0_i32 = arith.constant 0 : i32
    %c0_i32_0 = arith.constant 0 : i32
    %c0_i32_1 = arith.constant 0 : i32
    return %c0_i32, %c0_i32_0 : i32, i32
  }
  func.func @transform_5(%arg0: i32) -> (i32, i32) {
    %c0_i32 = arith.constant 0 : i32
    %c0_i32_0 = arith.constant 0 : i32
    return %arg0, %c0_i32 : i32, i32
  }
}

</mosaic_0001>

<llo_original>
// kernel: tpu_custom_call.1
$region0: #{tpu_custom_call.1}
  #allocation0 [shape = 'u32[]', space=smem, size = 0x4, offset = 0x4, fixed_abs, tag = 'smem constant byte address 0x4 - core index']
  #allocation1 [shape = 'u32[144,128]{1,0:T(1,128)}', space=vmem, size = 0x12000, scoped, tag = 'internal scratch']
  #allocation2 [shape = 'f32[80,1024]{1,0:T(8,128)}', space=vmem, size = 0x50000, scoped, tag = 'scratch operand']
  #allocation3 [shape = 'f32[8,128]{1,0:T(8,128)}', space=vmem, size = 0x1000, scoped, tag = 'scratch operand']
  #allocation4 [shape = 'f32[1,1]{1,0:T(1,128)S(6)}', space=smem, size = 0x200, scoped, tag = 'scoped memory for tpu_custom_call.1']
  %s0 = inlined_call_operand.hbm [shape: f32[1,1024], index: 0, kind: input, shape index: {}]
  %s1 = inlined_call_operand.vmem [shape: f32[16,5], index: 1, kind: input, shape index: {}]
  %s2 = inlined_call_operand.vmem [shape: f32[16,80], index: 2, kind: input, shape index: {}]
  %s3 = inlined_call_operand.vmem [shape: f32[16,128], index: 3, kind: input, shape index: {}]
  %s4 = inlined_call_operand.<no memory space> [shape: f32[1,1], index: 4, kind: input, shape index: {}]
  %s5 = inlined_call_operand.vmem [shape: f32[8,1], index: 5, kind: output, shape index: {}]
  %s6 = sld [smem:[#allocation0]]
  $region34: #{tpu_custom_call.1} parent=0
    _
  %s8 = ssub.s32 1, %s6
  %s9 = scalar_select 0, %s8, %s6
  %10 = sst [smem:[#allocation4]] %s4
  $region1: #{tpu_custom_call.1} parent=0
    #allocation5 [shape = 'u8[4096]{0}', space=vmem, size = 0x1000, scoped, tag = 'input window, operand 0, single buffered']
    #allocation6 [shape = 's32[1]{0}', space=sflag, size = 0x4, scoped, tag = 'scoped memory for tpu_custom_call.1']
    %11 = vsyncpa [#allocation6], 0
    // Predicated region
    $region2: #{tpu_custom_call.1} parent=1 // pred_check
      _
    $region3: #{tpu_custom_call.1} parent=1 // pred_check_branch
      %13 = sbr.rel (0) target = $region5
    $region4: #{tpu_custom_call.1} parent=1 // pred_region
      %s15 = ssub.s32 128, 128
      %16 = vsyncadd [#allocation6], %s15
      %s18 = sshll.u32 [#allocation5], 4
      %s19 = int_to_ptr.vmem [resolvable:$true] %s18
      %21 = dma.hbm_to_vmem [thread:$0]  %s0, 128, %s19, [#allocation6]
    $region5: #{tpu_custom_call.1} parent=1 // pred_fallthru
      _
    // Predicated region
    $region6: #{tpu_custom_call.1} parent=1 // pred_check
      _
    $region7: #{tpu_custom_call.1} parent=1 // pred_check_branch
      %23 = sbr.rel (0) target = $region9
    $region8: #{tpu_custom_call.1} parent=1 // pred_region
      _
    $region9: #{tpu_custom_call.1} parent=1 // pred_fallthru
      _
    // Predicated region
    $region10: #{tpu_custom_call.1} parent=1 // pred_check
      _
    $region11: #{tpu_custom_call.1} parent=1 // pred_check_branch
      %25 = sbr.rel (0) target = $region13
    $region12: #{tpu_custom_call.1} parent=1 // pred_region
      _
    $region13: #{tpu_custom_call.1} parent=1 // pred_fallthru
      _
    // Predicated region
    $region14: #{tpu_custom_call.1} parent=1 // pred_check
      _
    $region15: #{tpu_custom_call.1} parent=1 // pred_check_branch
      %27 = sbr.rel (0) target = $region17
    $region16: #{tpu_custom_call.1} parent=1 // pred_region
      _
    $region17: #{tpu_custom_call.1} parent=1 // pred_fallthru
      _
    // Predicated region
    $region18: #{tpu_custom_call.1} parent=1 // pred_check
      _
    $region19: #{tpu_custom_call.1} parent=1 // pred_check_branch
      %29 = sbr.rel (0) target = $region21
    $region20: #{tpu_custom_call.1} parent=1 // pred_region
      _
    $region21: #{tpu_custom_call.1} parent=1 // pred_fallthru
      _
    // Predicated region
    $region22: #{tpu_custom_call.1} parent=1 // pred_check
      _
    $region23: #{tpu_custom_call.1} parent=1 // pred_check_branch
      %31 = sbr.rel (0) target = $region25
    $region24: #{tpu_custom_call.1} parent=1 // pred_region
      %32 = dma.done [#allocation6], 128
    $region25: #{tpu_custom_call.1} parent=1 // pred_fallthru
      _
    %v33 = vld [vmem:[#allocation5] sm:$0xff]
    %v34 = vld [vmem:[%s1] sm:$0xff]
    %v35 = vld [vmem:[%s1 + $0x8] sm:$0xff]
    %v37 = vlaneseq
    %v38 = vshrl.u32 %v37, 7
    %v39 = vsub.s32 0, %v38
    %v40 = vrot.slane %v33, %v39
    %v41 = vlaneseq
    %v42 = vshrl.u32 %v41, 7
    %v43 = vsub.s32 1, %v42
    %v44 = vrot.slane %v33, %v43
    %v45 = vlaneseq
    %v46 = vshrl.u32 %v45, 7
    %v47 = vsub.s32 2, %v46
    %v48 = vrot.slane %v33, %v47
    %v49 = vlaneseq
    %v50 = vshrl.u32 %v49, 7
    %v51 = vsub.s32 3, %v50
    %v52 = vrot.slane %v33, %v51
    %v53 = vlaneseq
    %v54 = vshrl.u32 %v53, 7
    %v55 = vsub.s32 4, %v54
    %v56 = vrot.slane %v33, %v55
    %v57 = vlaneseq
    %v58 = vshrl.u32 %v57, 7
    %v59 = vsub.s32 5, %v58
    %v60 = vrot.slane %v33, %v59
    %v61 = vlaneseq
    %v62 = vshrl.u32 %v61, 7
    %v63 = vsub.s32 6, %v62
    %v64 = vrot.slane %v33, %v63
    %v65 = vlaneseq
    %v66 = vshrl.u32 %v65, 7
    %v67 = vsub.s32 7, %v66
    %v68 = vrot.slane %v33, %v67
    %77 = vrot.lane.b32.xlu0 %v40, 2
    %v78 = vpop.permute.xlu0 %77
    %79 = vrot.lane.b32.xlu0 %v44, 2
    %v80 = vpop.permute.xlu0 %79
    %81 = vrot.lane.b32.xlu0 %v48, 2
    %v82 = vpop.permute.xlu0 %81
    %83 = vrot.lane.b32.xlu0 %v52, 2
    %v84 = vpop.permute.xlu0 %83
    %85 = vrot.lane.b32.xlu0 %v56, 2
    %v86 = vpop.permute.xlu0 %85
    %87 = vrot.lane.b32.xlu0 %v60, 2
    %v88 = vpop.permute.xlu0 %87
    %89 = vrot.lane.b32.xlu0 %v64, 2
    %v90 = vpop.permute.xlu0 %89
    %91 = vrot.lane.b32.xlu0 %v68, 2
    %v92 = vpop.permute.xlu0 %91
    %v93 = vlaneseq
    %v94 = vand.u32 %v93, 127
    %vm95 = vcmp.lt.s32.totalorder %v94, 2
    %v96 = vsel %vm95, %v90, %v92
    %v97 = vsel %vm95, %v88, %v90
    %v98 = vsel %vm95, %v86, %v88
    %v99 = vsel %vm95, %v84, %v86
    %v100 = vsel %vm95, %v82, %v84
    %v101 = vsel %vm95, %v80, %v82
    %v102 = vsel %vm95, %v78, %v80
    %v103 = vsel %vm95, %v92, %v78
    %105 = vset.pattern.permute.xlu0 0
    %106 = vperm.xlu0 %105, %v34
    %v107 = vpop.permute.xlu0 %106
    %110 = vset.pattern.permute.xlu0 0
    %111 = vperm.xlu0 %110, %v35
    %v112 = vpop.permute.xlu0 %111
    %v114 = vlaneseq
    %v115 = vshrl.u32 %v114, 7
    %v116 = vsub.s32 0, %v115
    %v117 = vrot.slane %v103, %v116
    %v118 = vlaneseq
    %v119 = vshrl.u32 %v118, 7
    %v120 = vsub.s32 0, %v119
    %v121 = vrot.slane %v102, %v120
    %v122 = vlaneseq
    %v123 = vshrl.u32 %v122, 7
    %v124 = vsub.s32 0, %v123
    %v125 = vrot.slane %v101, %v124
    %v126 = vlaneseq
    %v127 = vshrl.u32 %v126, 7
    %v128 = vsub.s32 0, %v127
    %v129 = vrot.slane %v100, %v128
    %v130 = vlaneseq
    %v131 = vshrl.u32 %v130, 7
    %v132 = vsub.s32 0, %v131
    %v133 = vrot.slane %v99, %v132
    %v134 = vlaneseq
    %v135 = vshrl.u32 %v134, 7
    %v136 = vsub.s32 0, %v135
    %v137 = vrot.slane %v98, %v136
    %v138 = vlaneseq
    %v139 = vshrl.u32 %v138, 7
    %v140 = vsub.s32 0, %v139
    %v141 = vrot.slane %v97, %v140
    %v142 = vlaneseq
    %v143 = vshrl.u32 %v142, 7
    %v144 = vsub.s32 0, %v143
    %v145 = vrot.slane %v96, %v144
    %v146 = vmul.f32 %v107, %v117
    %v147 = vmul.f32 %v107, %v121
    %v148 = vmul.f32 %v107, %v125
    %v149 = vmul.f32 %v107, %v129
    %v150 = vmul.f32 %v107, %v133
    %v151 = vmul.f32 %v107, %v137
    %v152 = vmul.f32 %v107, %v141
    %v153 = vmul.f32 %v107, %v145
    %v154 = vmul.f32 %v112, %v117
    %v155 = vmul.f32 %v112, %v121
    %v156 = vmul.f32 %v112, %v125
    %v157 = vmul.f32 %v112, %v129
    %v158 = vmul.f32 %v112, %v133
    %v159 = vmul.f32 %v112, %v137
    %v160 = vmul.f32 %v112, %v141
    %v161 = vmul.f32 %v112, %v145
    %162 = vrot.lane.b32.xlu0 %v40, 1
    %v163 = vpop.permute.xlu0 %162
    %164 = vrot.lane.b32.xlu0 %v44, 1
    %v165 = vpop.permute.xlu0 %164
    %166 = vrot.lane.b32.xlu0 %v48, 1
    %v167 = vpop.permute.xlu0 %166
    %168 = vrot.lane.b32.xlu0 %v52, 1
    %v169 = vpop.permute.xlu0 %168
    %170 = vrot.lane.b32.xlu0 %v56, 1
    %v171 = vpop.permute.xlu0 %170
    %172 = vrot.lane.b32.xlu0 %v60, 1
    %v173 = vpop.permute.xlu0 %172
    %174 = vrot.lane.b32.xlu0 %v64, 1
    %v175 = vpop.permute.xlu0 %174
    %176 = vrot.lane.b32.xlu0 %v68, 1
    %v177 = vpop.permute.xlu0 %176
    %vm178 = vcmp.lt.s32.totalorder %v94, 1
    %v179 = vsel %vm178, %v175, %v177
    %v180 = vsel %vm178, %v173, %v175
    %v181 = vsel %vm178, %v171, %v173
    %v182 = vsel %vm178, %v169, %v171
    %v183 = vsel %vm178, %v167, %v169
    %v184 = vsel %vm178, %v165, %v167
    %v185 = vsel %vm178, %v163, %v165
    %v186 = vsel %vm178, %v177, %v163
    %187 = vset.pattern.permute.xlu0 1
    %188 = vperm.xlu0 %187, %v34
    %v189 = vpop.permute.xlu0 %188
    %191 = vset.pattern.permute.xlu0 1
    %192 = vperm.xlu0 %191, %v35
    %v193 = vpop.permute.xlu0 %192
    %v195 = vlaneseq
    %v196 = vshrl.u32 %v195, 7
    %v197 = vsub.s32 0, %v196
    %v198 = vrot.slane %v186, %v197
    %v199 = vlaneseq
    %v200 = vshrl.u32 %v199, 7
    %v201 = vsub.s32 0, %v200
    %v202 = vrot.slane %v185, %v201
    %v203 = vlaneseq
    %v204 = vshrl.u32 %v203, 7
    %v205 = vsub.s32 0, %v204
    %v206 = vrot.slane %v184, %v205
    %v207 = vlaneseq
    %v208 = vshrl.u32 %v207, 7
    %v209 = vsub.s32 0, %v208
    %v210 = vrot.slane %v183, %v209
    %v211 = vlaneseq
    %v212 = vshrl.u32 %v211, 7
    %v213 = vsub.s32 0, %v212
    %v214 = vrot.slane %v182, %v213
    %v215 = vlaneseq
    %v216 = vshrl.u32 %v215, 7
    %v217 = vsub.s32 0, %v216
    %v218 = vrot.slane %v181, %v217
    %v219 = vlaneseq
    %v220 = vshrl.u32 %v219, 7
    %v221 = vsub.s32 0, %v220
    %v222 = vrot.slane %v180, %v221
    %v223 = vlaneseq
    %v224 = vshrl.u32 %v223, 7
    %v225 = vsub.s32 0, %v224
    %v226 = vrot.slane %v179, %v225
    %v227 = vmul.f32 %v189, %v198
    %v228 = vmul.f32 %v189, %v202
    %v229 = vmul.f32 %v189, %v206
    %v230 = vmul.f32 %v189, %v210
    %v231 = vmul.f32 %v189, %v214
    %v232 = vmul.f32 %v189, %v218
    %v233 = vmul.f32 %v189, %v222
    %v234 = vmul.f32 %v189, %v226
    %v235 = vmul.f32 %v193, %v198
    %v236 = vmul.f32 %v193, %v202
    %v237 = vmul.f32 %v193, %v206
    %v238 = vmul.f32 %v193, %v210
    %v239 = vmul.f32 %v193, %v214
    %v240 = vmul.f32 %v193, %v218
    %v241 = vmul.f32 %v193, %v222
    %v242 = vmul.f32 %v193, %v226
    %v243 = vadd.f32 %v146, %v227
    %v244 = vadd.f32 %v147, %v228
    %v245 = vadd.f32 %v148, %v229
    %v246 = vadd.f32 %v149, %v230
    %v247 = vadd.f32 %v150, %v231
    %v248 = vadd.f32 %v151, %v232
    %v249 = vadd.f32 %v152, %v233
    %v250 = vadd.f32 %v153, %v234
    %v251 = vadd.f32 %v154, %v235
    %v252 = vadd.f32 %v155, %v236
    %v253 = vadd.f32 %v156, %v237
    %v254 = vadd.f32 %v157, %v238
    %v255 = vadd.f32 %v158, %v239
    %v256 = vadd.f32 %v159, %v240
    %v257 = vadd.f32 %v160, %v241
    %v258 = vadd.f32 %v161, %v242
    %259 = vset.pattern.permute.xlu0 2
    %260 = vperm.xlu0 %259, %v34
    %v261 = vpop.permute.xlu0 %260
    %263 = vset.pattern.permute.xlu0 2
    %264 = vperm.xlu0 %263, %v35
    %v265 = vpop.permute.xlu0 %264
    %v267 = vmul.f32 %v261, %v40
    %v268 = vmul.f32 %v261, %v44
    %v269 = vmul.f32 %v261, %v48
    %v270 = vmul.f32 %v261, %v52
    %v271 = vmul.f32 %v261, %v56
    %v272 = vmul.f32 %v261, %v60
    %v273 = vmul.f32 %v261, %v64
    %v274 = vmul.f32 %v261, %v68
    %v275 = vmul.f32 %v265, %v40
    %v276 = vmul.f32 %v265, %v44
    %v277 = vmul.f32 %v265, %v48
    %v278 = vmul.f32 %v265, %v52
    %v279 = vmul.f32 %v265, %v56
    %v280 = vmul.f32 %v265, %v60
    %v281 = vmul.f32 %v265, %v64
    %v282 = vmul.f32 %v265, %v68
    %v283 = vadd.f32 %v243, %v267
    %v284 = vadd.f32 %v244, %v268
    %v285 = vadd.f32 %v245, %v269
    %v286 = vadd.f32 %v246, %v270
    %v287 = vadd.f32 %v247, %v271
    %v288 = vadd.f32 %v248, %v272
    %v289 = vadd.f32 %v249, %v273
    %v290 = vadd.f32 %v250, %v274
    %v291 = vadd.f32 %v251, %v275
    %v292 = vadd.f32 %v252, %v276
    %v293 = vadd.f32 %v253, %v277
    %v294 = vadd.f32 %v254, %v278
    %v295 = vadd.f32 %v255, %v279
    %v296 = vadd.f32 %v256, %v280
    %v297 = vadd.f32 %v257, %v281
    %v298 = vadd.f32 %v258, %v282
    %299 = vrot.lane.b32.xlu0 %v40, 127
    %v300 = vpop.permute.xlu0 %299
    %301 = vrot.lane.b32.xlu0 %v44, 127
    %v302 = vpop.permute.xlu0 %301
    %303 = vrot.lane.b32.xlu0 %v48, 127
    %v304 = vpop.permute.xlu0 %303
    %305 = vrot.lane.b32.xlu0 %v52, 127
    %v306 = vpop.permute.xlu0 %305
    %307 = vrot.lane.b32.xlu0 %v56, 127
    %v308 = vpop.permute.xlu0 %307
    %309 = vrot.lane.b32.xlu0 %v60, 127
    %v310 = vpop.permute.xlu0 %309
    %311 = vrot.lane.b32.xlu0 %v64, 127
    %v312 = vpop.permute.xlu0 %311
    %313 = vrot.lane.b32.xlu0 %v68, 127
    %v314 = vpop.permute.xlu0 %313
    %vm315 = vcmp.lt.s32.totalorder %v94, 127
    %v316 = vsel %vm315, %v312, %v314
    %v317 = vsel %vm315, %v310, %v312
    %v318 = vsel %vm315, %v308, %v310
    %v319 = vsel %vm315, %v306, %v308
    %v320 = vsel %vm315, %v304, %v306
    %v321 = vsel %vm315, %v302, %v304
    %v322 = vsel %vm315, %v300, %v302
    %v323 = vsel %vm315, %v314, %v300
    %324 = vset.pattern.permute.xlu0 3
    %325 = vperm.xlu0 %324, %v34
    %v326 = vpop.permute.xlu0 %325
    %328 = vset.pattern.permute.xlu0 3
    %329 = vperm.xlu0 %328, %v35
    %v330 = vpop.permute.xlu0 %329
    %v332 = vlaneseq
    %v333 = vshrl.u32 %v332, 7
    %v334 = vsub.s32 0, %v333
    %v335 = vrot.slane %v322, %v334
    %v336 = vlaneseq
    %v337 = vshrl.u32 %v336, 7
    %v338 = vsub.s32 0, %v337
    %v339 = vrot.slane %v321, %v338
    %v340 = vlaneseq
    %v341 = vshrl.u32 %v340, 7
    %v342 = vsub.s32 0, %v341
    %v343 = vrot.slane %v320, %v342
    %v344 = vlaneseq
    %v345 = vshrl.u32 %v344, 7
    %v346 = vsub.s32 0, %v345
    %v347 = vrot.slane %v319, %v346
    %v348 = vlaneseq
    %v349 = vshrl.u32 %v348, 7
    %v350 = vsub.s32 0, %v349
    %v351 = vrot.slane %v318, %v350
    %v352 = vlaneseq
    %v353 = vshrl.u32 %v352, 7
    %v354 = vsub.s32 0, %v353
    %v355 = vrot.slane %v317, %v354
    %v356 = vlaneseq
    %v357 = vshrl.u32 %v356, 7
    %v358 = vsub.s32 0, %v357
    %v359 = vrot.slane %v316, %v358
    %v360 = vlaneseq
    %v361 = vshrl.u32 %v360, 7
    %v362 = vsub.s32 0, %v361
    %v363 = vrot.slane %v323, %v362
    %v364 = vmul.f32 %v326, %v335
    %v365 = vmul.f32 %v326, %v339
    %v366 = vmul.f32 %v326, %v343
    %v367 = vmul.f32 %v326, %v347
    %v368 = vmul.f32 %v326, %v351
    %v369 = vmul.f32 %v326, %v355
    %v370 = vmul.f32 %v326, %v359
    %v371 = vmul.f32 %v326, %v363
    %v372 = vmul.f32 %v330, %v335
    %v373 = vmul.f32 %v330, %v339
    %v374 = vmul.f32 %v330, %v343
    %v375 = vmul.f32 %v330, %v347
    %v376 = vmul.f32 %v330, %v351
    %v377 = vmul.f32 %v330, %v355
    %v378 = vmul.f32 %v330, %v359
    %v379 = vmul.f32 %v330, %v363
    %v380 = vadd.f32 %v283, %v364
    %v381 = vadd.f32 %v284, %v365
    %v382 = vadd.f32 %v285, %v366
    %v383 = vadd.f32 %v286, %v367
    %v384 = vadd.f32 %v287, %v368
    %v385 = vadd.f32 %v288, %v369
    %v386 = vadd.f32 %v289, %v370
    %v387 = vadd.f32 %v290, %v371
    %v388 = vadd.f32 %v291, %v372
    %v389 = vadd.f32 %v292, %v373
    %v390 = vadd.f32 %v293, %v374
    %v391 = vadd.f32 %v294, %v375
    %v392 = vadd.f32 %v295, %v376
    %v393 = vadd.f32 %v296, %v377
    %v394 = vadd.f32 %v297, %v378
    %v395 = vadd.f32 %v298, %v379
    %396 = vrot.lane.b32.xlu0 %v40, 126
    %v397 = vpop.permute.xlu0 %396
    %398 = vrot.lane.b32.xlu0 %v44, 126
    %v399 = vpop.permute.xlu0 %398
    %400 = vrot.lane.b32.xlu0 %v48, 126
    %v401 = vpop.permute.xlu0 %400
    %402 = vrot.lane.b32.xlu0 %v52, 126
    %v403 = vpop.permute.xlu0 %402
    %404 = vrot.lane.b32.xlu0 %v56, 126
    %v405 = vpop.permute.xlu0 %404
    %406 = vrot.lane.b32.xlu0 %v60, 126
    %v407 = vpop.permute.xlu0 %406
    %408 = vrot.lane.b32.xlu0 %v64, 126
    %v409 = vpop.permute.xlu0 %408
    %410 = vrot.lane.b32.xlu0 %v68, 126
    %v411 = vpop.permute.xlu0 %410
    %vm412 = vcmp.lt.s32.totalorder %v94, 126
    %v413 = vsel %vm412, %v409, %v411
    %v414 = vsel %vm412, %v407, %v409
    %v415 = vsel %vm412, %v405, %v407
    %v416 = vsel %vm412, %v403, %v405
    %v417 = vsel %vm412, %v401, %v403
    %v418 = vsel %vm412, %v399, %v401
    %v419 = vsel %vm412, %v397, %v399
    %v420 = vsel %vm412, %v411, %v397
    %421 = vset.pattern.permute.xlu0 4
    %422 = vperm.xlu0 %421, %v34
    %v423 = vpop.permute.xlu0 %422
    %425 = vset.pattern.permute.xlu0 4
    %426 = vperm.xlu0 %425, %v35
    %v427 = vpop.permute.xlu0 %426
    %v429 = vlaneseq
    %v430 = vshrl.u32 %v429, 7
    %v431 = vsub.s32 0, %v430
    %v432 = vrot.slane %v419, %v431
    %v433 = vlaneseq
    %v434 = vshrl.u32 %v433, 7
    %v435 = vsub.s32 0, %v434
    %v436 = vrot.slane %v418, %v435
    %v437 = vlaneseq
    %v438 = vshrl.u32 %v437, 7
    %v439 = vsub.s32 0, %v438
    %v440 = vrot.slane %v417, %v439
    %v441 = vlaneseq
    %v442 = vshrl.u32 %v441, 7
    %v443 = vsub.s32 0, %v442
    %v444 = vrot.slane %v416, %v443
    %v445 = vlaneseq
    %v446 = vshrl.u32 %v445, 7
    %v447 = vsub.s32 0, %v446
    %v448 = vrot.slane %v415, %v447
    %v449 = vlaneseq
    %v450 = vshrl.u32 %v449, 7
    %v451 = vsub.s32 0, %v450
    %v452 = vrot.slane %v414, %v451
    %v453 = vlaneseq
    %v454 = vshrl.u32 %v453, 7
    %v455 = vsub.s32 0, %v454
    %v456 = vrot.slane %v413, %v455
    %v457 = vlaneseq
    %v458 = vshrl.u32 %v457, 7
    %v459 = vsub.s32 0, %v458
    %v460 = vrot.slane %v420, %v459
    %v461 = vmul.f32 %v423, %v432
    %v462 = vmul.f32 %v423, %v436
    %v463 = vmul.f32 %v423, %v440
    %v464 = vmul.f32 %v423, %v444
    %v465 = vmul.f32 %v423, %v448
    %v466 = vmul.f32 %v423, %v452
    %v467 = vmul.f32 %v423, %v456
    %v468 = vmul.f32 %v423, %v460
    %v469 = vmul.f32 %v427, %v432
    %v470 = vmul.f32 %v427, %v436
    %v471 = vmul.f32 %v427, %v440
    %v472 = vmul.f32 %v427, %v444
    %v473 = vmul.f32 %v427, %v448
    %v474 = vmul.f32 %v427, %v452
    %v475 = vmul.f32 %v427, %v456
    %v476 = vmul.f32 %v427, %v460
    %v477 = vadd.f32 %v380, %v461
    %v478 = vadd.f32 %v381, %v462
    %v479 = vadd.f32 %v382, %v463
    %v480 = vadd.f32 %v383, %v464
    %v481 = vadd.f32 %v384, %v465
    %v482 = vadd.f32 %v385, %v466
    %v483 = vadd.f32 %v386, %v467
    %v484 = vadd.f32 %v387, %v468
    %v485 = vadd.f32 %v388, %v469
    %v486 = vadd.f32 %v389, %v470
    %v487 = vadd.f32 %v390, %v471
    %v488 = vadd.f32 %v391, %v472
    %v489 = vadd.f32 %v392, %v473
    %v490 = vadd.f32 %v393, %v474
    %v491 = vadd.f32 %v394, %v475
    %v492 = vadd.f32 %v395, %v476
    %v493 = vadd.s32 %v94, 128
    %v494 = vadd.s32 %v94, 256
    %v495 = vadd.s32 %v94, 384
    %v496 = vadd.s32 %v94, 512
    %v497 = vadd.s32 %v94, 640
    %v498 = vadd.s32 %v94, 768
    %v499 = vadd.s32 %v94, 896
    %v500 = vand.u32 %v94, 127
    %v501 = vand.u32 %v493, 127
    %v502 = vand.u32 %v494, 127
    %v503 = vand.u32 %v495, 127
    %v504 = vand.u32 %v496, 127
    %v505 = vand.u32 %v497, 127
    %v506 = vand.u32 %v498, 127
    %v507 = vand.u32 %v499, 127
    %vm508 = vcmp.lt.s32.totalorder %v500, 100
    %vm509 = vcmp.lt.s32.totalorder %v501, 100
    %vm510 = vcmp.lt.s32.totalorder %v502, 100
    %vm511 = vcmp.lt.s32.totalorder %v503, 100
    %vm512 = vcmp.lt.s32.totalorder %v504, 100
    %vm513 = vcmp.lt.s32.totalorder %v505, 100
    %vm514 = vcmp.lt.s32.totalorder %v506, 100
    %vm515 = vcmp.lt.s32.totalorder %v507, 100
    %v516 = vmax.f32 %v477, 0.0
    %v517 = vmax.f32 %v478, 0.0
    %v518 = vmax.f32 %v479, 0.0
    %v519 = vmax.f32 %v480, 0.0
    %v520 = vmax.f32 %v481, 0.0
    %v521 = vmax.f32 %v482, 0.0
    %v522 = vmax.f32 %v483, 0.0
    %v523 = vmax.f32 %v484, 0.0
    %v524 = vmax.f32 %v485, 0.0
    %v525 = vmax.f32 %v486, 0.0
    %v526 = vmax.f32 %v487, 0.0
    %v527 = vmax.f32 %v488, 0.0
    %v528 = vmax.f32 %v489, 0.0
    %v529 = vmax.f32 %v490, 0.0
    %v530 = vmax.f32 %v491, 0.0
    %v531 = vmax.f32 %v492, 0.0
    %v532 = vsel %vm508, 1, 0
    %v533 = vsel %vm509, 1, 0
    %v534 = vsel %vm510, 1, 0
    %v535 = vsel %vm511, 1, 0
    %v536 = vsel %vm512, 1, 0
    %v537 = vsel %vm513, 1, 0
    %v538 = vsel %vm514, 1, 0
    %v539 = vsel %vm515, 1, 0
    %vm540 = vcmp.eq.s32.totalorder %v532, 1
    %vm541 = vcmp.eq.s32.totalorder %v533, 1
    %vm542 = vcmp.eq.s32.totalorder %v534, 1
    %vm543 = vcmp.eq.s32.totalorder %v535, 1
    %vm544 = vcmp.eq.s32.totalorder %v536, 1
    %vm545 = vcmp.eq.s32.totalorder %v537, 1
    %vm546 = vcmp.eq.s32.totalorder %v538, 1
    %vm547 = vcmp.eq.s32.totalorder %v539, 1
    %v548 = vsel %vm540, %v516, 0.0
    %v549 = vsel %vm541, %v517, 0.0
    %v550 = vsel %vm542, %v518, 0.0
    %v551 = vsel %vm543, %v519, 0.0
    %v552 = vsel %vm544, %v520, 0.0
    %v553 = vsel %vm545, %v521, 0.0
    %v554 = vsel %vm546, %v522, 0.0
    %v555 = vsel %vm547, %v523, 0.0
    %v556 = vsel %vm540, %v524, 0.0
    %v557 = vsel %vm541, %v525, 0.0
    %v558 = vsel %vm542, %v526, 0.0
    %v559 = vsel %vm543, %v527, 0.0
    %v560 = vsel %vm544, %v528, 0.0
    %v561 = vsel %vm545, %v529, 0.0
    %v562 = vsel %vm546, %v530, 0.0
    %v563 = vsel %vm547, %v531, 0.0
    %564 = vrot.lane.b32.xlu0 %v548, 2
    %v565 = vpop.permute.xlu0 %564
    %566 = vrot.lane.b32.xlu0 %v556, 2
    %v567 = vpop.permute.xlu0 %566
    %568 = vrot.lane.b32.xlu0 %v549, 2
    %v569 = vpop.permute.xlu0 %568
    %570 = vrot.lane.b32.xlu0 %v557, 2
    %v571 = vpop.permute.xlu0 %570
    %572 = vrot.lane.b32.xlu0 %v550, 2
    %v573 = vpop.permute.xlu0 %572
    %574 = vrot.lane.b32.xlu0 %v558, 2
    %v575 = vpop.permute.xlu0 %574
    %576 = vrot.lane.b32.xlu0 %v551, 2
    %v577 = vpop.permute.xlu0 %576
    %578 = vrot.lane.b32.xlu0 %v559, 2
    %v579 = vpop.permute.xlu0 %578
    %580 = vrot.lane.b32.xlu0 %v552, 2
    %v581 = vpop.permute.xlu0 %580
    %582 = vrot.lane.b32.xlu0 %v560, 2
    %v583 = vpop.permute.xlu0 %582
    %584 = vrot.lane.b32.xlu0 %v553, 2
    %v585 = vpop.permute.xlu0 %584
    %586 = vrot.lane.b32.xlu0 %v561, 2
    %v587 = vpop.permute.xlu0 %586
    %588 = vrot.lane.b32.xlu0 %v554, 2
    %v589 = vpop.permute.xlu0 %588
    %590 = vrot.lane.b32.xlu0 %v562, 2
    %v591 = vpop.permute.xlu0 %590
    %592 = vrot.lane.b32.xlu0 %v555, 2
    %v593 = vpop.permute.xlu0 %592
    %594 = vrot.lane.b32.xlu0 %v563, 2
    %v595 = vpop.permute.xlu0 %594
    %v596 = vsel %vm95, %v589, %v593
    %v597 = vsel %vm95, %v591, %v595
    %v598 = vsel %vm95, %v585, %v589
    %v599 = vsel %vm95, %v587, %v591
    %v600 = vsel %vm95, %v581, %v585
    %v601 = vsel %vm95, %v583, %v587
    %v602 = vsel %vm95, %v577, %v581
    %v603 = vsel %vm95, %v579, %v583
    %v604 = vsel %vm95, %v573, %v577
    %v605 = vsel %vm95, %v575, %v579
    %v606 = vsel %vm95, %v569, %v573
    %v607 = vsel %vm95, %v571, %v575
    %v608 = vsel %vm95, %v565, %v569
    %v609 = vsel %vm95, %v567, %v571
    %v610 = vsel %vm95, %v593, %v565
    %v611 = vsel %vm95, %v595, %v567
    %612 = vst [vmem:[#allocation2] sm:$0xff] %v610
    %613 = vst [vmem:[#allocation2 + $0x8] sm:$0xff] %v608
    %614 = vst [vmem:[#allocation2 + $0x10] sm:$0xff] %v606
    %615 = vst [vmem:[#allocation2 + $0x18] sm:$0xff] %v604
    %616 = vst [vmem:[#allocation2 + $0x20] sm:$0xff] %v602
    %617 = vst [vmem:[#allocation2 + $0x28] sm:$0xff] %v600
    %618 = vst [vmem:[#allocation2 + $0x30] sm:$0xff] %v598
    %619 = vst [vmem:[#allocation2 + $0x38] sm:$0xff] %v596
    %620 = vst [vmem:[#allocation2 + $0x40] sm:$0xff] %v611
    %621 = vst [vmem:[#allocation2 + $0x48] sm:$0xff] %v609
    %622 = vst [vmem:[#allocation2 + $0x50] sm:$0xff] %v607
    %623 = vst [vmem:[#allocation2 + $0x58] sm:$0xff] %v605
    %624 = vst [vmem:[#allocation2 + $0x60] sm:$0xff] %v603
    %625 = vst [vmem:[#allocation2 + $0x68] sm:$0xff] %v601
    %626 = vst [vmem:[#allocation2 + $0x70] sm:$0xff] %v599
    %627 = vst [vmem:[#allocation2 + $0x78] sm:$0xff] %v597
    %628 = vrot.lane.b32.xlu0 %v548, 1
    %v629 = vpop.permute.xlu0 %628
    %630 = vrot.lane.b32.xlu0 %v556, 1
    %v631 = vpop.permute.xlu0 %630
    %632 = vrot.lane.b32.xlu0 %v549, 1
    %v633 = vpop.permute.xlu0 %632
    %634 = vrot.lane.b32.xlu0 %v557, 1
    %v635 = vpop.permute.xlu0 %634
    %636 = vrot.lane.b32.xlu0 %v550, 1
    %v637 = vpop.permute.xlu0 %636
    %638 = vrot.lane.b32.xlu0 %v558, 1
    %v639 = vpop.permute.xlu0 %638
    %640 = vrot.lane.b32.xlu0 %v551, 1
    %v641 = vpop.permute.xlu0 %640
    %642 = vrot.lane.b32.xlu0 %v559, 1
    %v643 = vpop.permute.xlu0 %642
    %644 = vrot.lane.b32.xlu0 %v552, 1
    %v645 = vpop.permute.xlu0 %644
    %646 = vrot.lane.b32.xlu0 %v560, 1
    %v647 = vpop.permute.xlu0 %646
    %648 = vrot.lane.b32.xlu0 %v553, 1
    %v649 = vpop.permute.xlu0 %648
    %650 = vrot.lane.b32.xlu0 %v561, 1
    %v651 = vpop.permute.xlu0 %650
    %652 = vrot.lane.b32.xlu0 %v554, 1
    %v653 = vpop.permute.xlu0 %652
    %654 = vrot.lane.b32.xlu0 %v562, 1
    %v655 = vpop.permute.xlu0 %654
    %656 = vrot.lane.b32.xlu0 %v555, 1
    %v657 = vpop.permute.xlu0 %656
    %658 = vrot.lane.b32.xlu0 %v563, 1
    %v659 = vpop.permute.xlu0 %658
    %v660 = vsel %vm178, %v653, %v657
    %v661 = vsel %vm178, %v655, %v659
    %v662 = vsel %vm178, %v649, %v653
    %v663 = vsel %vm178, %v651, %v655
    %v664 = vsel %vm178, %v645, %v649
    %v665 = vsel %vm178, %v647, %v651
    %v666 = vsel %vm178, %v641, %v645
    %v667 = vsel %vm178, %v643, %v647
    %v668 = vsel %vm178, %v637, %v641
    %v669 = vsel %vm178, %v639, %v643
    %v670 = vsel %vm178, %v633, %v637
    %v671 = vsel %vm178, %v635, %v639
    %v672 = vsel %vm178, %v629, %v633
    %v673 = vsel %vm178, %v631, %v635
    %v674 = vsel %vm178, %v657, %v629
    %v675 = vsel %vm178, %v659, %v631
    %676 = vst [vmem:[#allocation2 + $0x80] sm:$0xff] %v674
    %677 = vst [vmem:[#allocation2 + $0x88] sm:$0xff] %v672
    %678 = vst [vmem:[#allocation2 + $0x90] sm:$0xff] %v670
    %679 = vst [vmem:[#allocation2 + $0x98] sm:$0xff] %v668
    %680 = vst [vmem:[#allocation2 + $0xa0] sm:$0xff] %v666
    %681 = vst [vmem:[#allocation2 + $0xa8] sm:$0xff] %v664
    %682 = vst [vmem:[#allocation2 + $0xb0] sm:$0xff] %v662
    %683 = vst [vmem:[#allocation2 + $0xb8] sm:$0xff] %v660
    %684 = vst [vmem:[#allocation2 + $0xc0] sm:$0xff] %v675
    %685 = vst [vmem:[#allocation2 + $0xc8] sm:$0xff] %v673
    %686 = vst [vmem:[#allocation2 + $0xd0] sm:$0xff] %v671
    %687 = vst [vmem:[#allocation2 + $0xd8] sm:$0xff] %v669
    %688 = vst [vmem:[#allocation2 + $0xe0] sm:$0xff] %v667
    %689 = vst [vmem:[#allocation2 + $0xe8] sm:$0xff] %v665
    %690 = vst [vmem:[#allocation2 + $0xf0] sm:$0xff] %v663
    %691 = vst [vmem:[#allocation2 + $0xf8] sm:$0xff] %v661
    %692 = vst [vmem:[#allocation2 + $0x100] sm:$0xff] %v548
    %693 = vst [vmem:[#allocation2 + $0x108] sm:$0xff] %v549
    %694 = vst [vmem:[#allocation2 + $0x110] sm:$0xff] %v550
    %695 = vst [vmem:[#allocation2 + $0x118] sm:$0xff] %v551
    %696 = vst [vmem:[#allocation2 + $0x120] sm:$0xff] %v552
    %697 = vst [vmem:[#allocation2 + $0x128] sm:$0xff] %v553
    %698 = vst [vmem:[#allocation2 + $0x130] sm:$0xff] %v554
    %699 = vst [vmem:[#allocation2 + $0x138] sm:$0xff] %v555
    %700 = vst [vmem:[#allocation2 + $0x140] sm:$0xff] %v556
    %701 = vst [vmem:[#allocation2 + $0x148] sm:$0xff] %v557
    %702 = vst [vmem:[#allocation2 + $0x150] sm:$0xff] %v558
    %703 = vst [vmem:[#allocation2 + $0x158] sm:$0xff] %v559
    %704 = vst [vmem:[#allocation2 + $0x160] sm:$0xff] %v560
    %705 = vst [vmem:[#allocation2 + $0x168] sm:$0xff] %v561
    %706 = vst [vmem:[#allocation2 + $0x170] sm:$0xff] %v562
    %707 = vst [vmem:[#allocation2 + $0x178] sm:$0xff] %v563
    %708 = vrot.lane.b32.xlu0 %v548, 127
    %v709 = vpop.permute.xlu0 %708
    %710 = vrot.lane.b32.xlu0 %v556, 127
    %v711 = vpop.permute.xlu0 %710
    %712 = vrot.lane.b32.xlu0 %v549, 127
    %v713 = vpop.permute.xlu0 %712
    %714 = vrot.lane.b32.xlu0 %v557, 127
    %v715 = vpop.permute.xlu0 %714
    %716 = vrot.lane.b32.xlu0 %v550, 127
    %v717 = vpop.permute.xlu0 %716
    %718 = vrot.lane.b32.xlu0 %v558, 127
    %v719 = vpop.permute.xlu0 %718
    %720 = vrot.lane.b32.xlu0 %v551, 127
    %v721 = vpop.permute.xlu0 %720
    %722 = vrot.lane.b32.xlu0 %v559, 127
    %v723 = vpop.permute.xlu0 %722
    %724 = vrot.lane.b32.xlu0 %v552, 127
    %v725 = vpop.permute.xlu0 %724
    %726 = vrot.lane.b32.xlu0 %v560, 127
    %v727 = vpop.permute.xlu0 %726
    %728 = vrot.lane.b32.xlu0 %v553, 127
    %v729 = vpop.permute.xlu0 %728
    %730 = vrot.lane.b32.xlu0 %v561, 127
    %v731 = vpop.permute.xlu0 %730
    %732 = vrot.lane.b32.xlu0 %v554, 127
    %v733 = vpop.permute.xlu0 %732
    %734 = vrot.lane.b32.xlu0 %v562, 127
    %v735 = vpop.permute.xlu0 %734
    %736 = vrot.lane.b32.xlu0 %v555, 127
    %v737 = vpop.permute.xlu0 %736
    %738 = vrot.lane.b32.xlu0 %v563, 127
    %v739 = vpop.permute.xlu0 %738
    %v740 = vsel %vm315, %v733, %v737
    %v741 = vsel %vm315, %v735, %v739
    %v742 = vsel %vm315, %v729, %v733
    %v743 = vsel %vm315, %v731, %v735
    %v744 = vsel %vm315, %v725, %v729
    %v745 = vsel %vm315, %v727, %v731
    %v746 = vsel %vm315, %v721, %v725
    %v747 = vsel %vm315, %v723, %v727
    %v748 = vsel %vm315, %v717, %v721
    %v749 = vsel %vm315, %v719, %v723
    %v750 = vsel %vm315, %v713, %v717
    %v751 = vsel %vm315, %v715, %v719
    %v752 = vsel %vm315, %v709, %v713
    %v753 = vsel %vm315, %v711, %v715
    %v754 = vsel %vm315, %v737, %v709
    %v755 = vsel %vm315, %v739, %v711
    %756 = vst [vmem:[#allocation2 + $0x180] sm:$0xff] %v752
    %757 = vst [vmem:[#allocation2 + $0x188] sm:$0xff] %v750
    %758 = vst [vmem:[#allocation2 + $0x190] sm:$0xff] %v748
    %759 = vst [vmem:[#allocation2 + $0x198] sm:$0xff] %v746
    %760 = vst [vmem:[#allocation2 + $0x1a0] sm:$0xff] %v744
    %761 = vst [vmem:[#allocation2 + $0x1a8] sm:$0xff] %v742
    %762 = vst [vmem:[#allocation2 + $0x1b0] sm:$0xff] %v740
    %763 = vst [vmem:[#allocation2 + $0x1b8] sm:$0xff] %v754
    %764 = vst [vmem:[#allocation2 + $0x1c0] sm:$0xff] %v753
    %765 = vst [vmem:[#allocation2 + $0x1c8] sm:$0xff] %v751
    %766 = vst [vmem:[#allocation2 + $0x1d0] sm:$0xff] %v749
    %767 = vst [vmem:[#allocation2 + $0x1d8] sm:$0xff] %v747
    %768 = vst [vmem:[#allocation2 + $0x1e0] sm:$0xff] %v745
    %769 = vst [vmem:[#allocation2 + $0x1e8] sm:$0xff] %v743
    %770 = vst [vmem:[#allocation2 + $0x1f0] sm:$0xff] %v741
    %771 = vst [vmem:[#allocation2 + $0x1f8] sm:$0xff] %v755
    %772 = vrot.lane.b32.xlu0 %v548, 126
    %v773 = vpop.permute.xlu0 %772
    %774 = vrot.lane.b32.xlu0 %v556, 126
    %v775 = vpop.permute.xlu0 %774
    %776 = vrot.lane.b32.xlu0 %v549, 126
    %v777 = vpop.permute.xlu0 %776
    %778 = vrot.lane.b32.xlu0 %v557, 126
    %v779 = vpop.permute.xlu0 %778
    %780 = vrot.lane.b32.xlu0 %v550, 126
    %v781 = vpop.permute.xlu0 %780
    %782 = vrot.lane.b32.xlu0 %v558, 126
    %v783 = vpop.permute.xlu0 %782
    %784 = vrot.lane.b32.xlu0 %v551, 126
    %v785 = vpop.permute.xlu0 %784
    %786 = vrot.lane.b32.xlu0 %v559, 126
    %v787 = vpop.permute.xlu0 %786
    %788 = vrot.lane.b32.xlu0 %v552, 126
    %v789 = vpop.permute.xlu0 %788
    %790 = vrot.lane.b32.xlu0 %v560, 126
    %v791 = vpop.permute.xlu0 %790
    %792 = vrot.lane.b32.xlu0 %v553, 126
    %v793 = vpop.permute.xlu0 %792
    %794 = vrot.lane.b32.xlu0 %v561, 126
    %v795 = vpop.permute.xlu0 %794
    %796 = vrot.lane.b32.xlu0 %v554, 126
    %v797 = vpop.permute.xlu0 %796
    %798 = vrot.lane.b32.xlu0 %v562, 126
    %v799 = vpop.permute.xlu0 %798
    %800 = vrot.lane.b32.xlu0 %v555, 126
    %v801 = vpop.permute.xlu0 %800
    %802 = vrot.lane.b32.xlu0 %v563, 126
    %v803 = vpop.permute.xlu0 %802
    %v804 = vsel %vm412, %v797, %v801
    %v805 = vsel %vm412, %v799, %v803
    %v806 = vsel %vm412, %v793, %v797
    %v807 = vsel %vm412, %v795, %v799
    %v808 = vsel %vm412, %v789, %v793
    %v809 = vsel %vm412, %v791, %v795
    %v810 = vsel %vm412, %v785, %v789
    %v811 = vsel %vm412, %v787, %v791
    %v812 = vsel %vm412, %v781, %v785
    %v813 = vsel %vm412, %v783, %v787
    %v814 = vsel %vm412, %v777, %v781
    %v815 = vsel %vm412, %v779, %v783
    %v816 = vsel %vm412, %v773, %v777
    %v817 = vsel %vm412, %v775, %v779
    %v818 = vsel %vm412, %v801, %v773
    %v819 = vsel %vm412, %v803, %v775
    %820 = vst [vmem:[#allocation2 + $0x200] sm:$0xff] %v816
    %821 = vst [vmem:[#allocation2 + $0x208] sm:$0xff] %v814
    %822 = vst [vmem:[#allocation2 + $0x210] sm:$0xff] %v812
    %823 = vst [vmem:[#allocation2 + $0x218] sm:$0xff] %v810
    %824 = vst [vmem:[#allocation2 + $0x220] sm:$0xff] %v808
    %825 = vst [vmem:[#allocation2 + $0x228] sm:$0xff] %v806
    %826 = vst [vmem:[#allocation2 + $0x230] sm:$0xff] %v804
    %827 = vst [vmem:[#allocation2 + $0x238] sm:$0xff] %v818
    %828 = vst [vmem:[#allocation2 + $0x240] sm:$0xff] %v817
    %829 = vst [vmem:[#allocation2 + $0x248] sm:$0xff] %v815
    %830 = vst [vmem:[#allocation2 + $0x250] sm:$0xff] %v813
    %831 = vst [vmem:[#allocation2 + $0x258] sm:$0xff] %v811
    %832 = vst [vmem:[#allocation2 + $0x260] sm:$0xff] %v809
    %833 = vst [vmem:[#allocation2 + $0x268] sm:$0xff] %v807
    %834 = vst [vmem:[#allocation2 + $0x270] sm:$0xff] %v805
    %835 = vst [vmem:[#allocation2 + $0x278] sm:$0xff] %v819
    %v836 = vld [vmem:[%s2] sm:$0xff]
    %v837 = vld [vmem:[%s2 + $0x8] sm:$0xff]
    %v838 = vld [vmem:[#allocation2] sm:$0xff]
    %v839 = vld [vmem:[#allocation2 + $0x8] sm:$0xff]
    %v840 = vld [vmem:[#allocation2 + $0x10] sm:$0xff]
    %v841 = vld [vmem:[#allocation2 + $0x18] sm:$0xff]
    %v842 = vld [vmem:[#allocation2 + $0x20] sm:$0xff]
    %v843 = vld [vmem:[#allocation2 + $0x28] sm:$0xff]
    %v844 = vld [vmem:[#allocation2 + $0x30] sm:$0xff]
    %v845 = vld [vmem:[#allocation2 + $0x38] sm:$0xff]
    %v846 = vld [vmem:[#allocation2 + $0x40] sm:$0xff]
    %v847 = vld [vmem:[#allocation2 + $0x48] sm:$0xff]
    %v848 = vld [vmem:[#allocation2 + $0x50] sm:$0xff]
    %v849 = vld [vmem:[#allocation2 + $0x58] sm:$0xff]
    %v850 = vld [vmem:[#allocation2 + $0x60] sm:$0xff]
    %v851 = vld [vmem:[#allocation2 + $0x68] sm:$0xff]
    %v852 = vld [vmem:[#allocation2 + $0x70] sm:$0xff]
    %v853 = vld [vmem:[#allocation2 + $0x78] sm:$0xff]
    %v854 = vld [vmem:[#allocation2 + $0x80] sm:$0xff]
    %v855 = vld [vmem:[#allocation2 + $0x88] sm:$0xff]
    %v856 = vld [vmem:[#allocation2 + $0x90] sm:$0xff]
    %v857 = vld [vmem:[#allocation2 + $0x98] sm:$0xff]
    %v858 = vld [vmem:[#allocation2 + $0xa0] sm:$0xff]
    %v859 = vld [vmem:[#allocation2 + $0xa8] sm:$0xff]
    %v860 = vld [vmem:[#allocation2 + $0xb0] sm:$0xff]
    %v861 = vld [vmem:[#allocation2 + $0xb8] sm:$0xff]
    %v862 = vld [vmem:[#allocation2 + $0xc0] sm:$0xff]
    %v863 = vld [vmem:[#allocation2 + $0xc8] sm:$0xff]
    %v864 = vld [vmem:[#allocation2 + $0xd0] sm:$0xff]
    %v865 = vld [vmem:[#allocation2 + $0xd8] sm:$0xff]
    %v866 = vld [vmem:[#allocation2 + $0xe0] sm:$0xff]
    %v867 = vld [vmem:[#allocation2 + $0xe8] sm:$0xff]
    %v868 = vld [vmem:[#allocation2 + $0xf0] sm:$0xff]
    %v869 = vld [vmem:[#allocation2 + $0xf8] sm:$0xff]
    %v870 = vld [vmem:[#allocation2 + $0x100] sm:$0xff]
    %v871 = vld [vmem:[#allocation2 + $0x108] sm:$0xff]
    %v872 = vld [vmem:[#allocation2 + $0x110] sm:$0xff]
    %v873 = vld [vmem:[#allocation2 + $0x118] sm:$0xff]
    %v874 = vld [vmem:[#allocation2 + $0x120] sm:$0xff]
    %v875 = vld [vmem:[#allocation2 + $0x128] sm:$0xff]
    %v876 = vld [vmem:[#allocation2 + $0x130] sm:$0xff]
    %v877 = vld [vmem:[#allocation2 + $0x138] sm:$0xff]
    %v878 = vld [vmem:[#allocation2 + $0x140] sm:$0xff]
    %v879 = vld [vmem:[#allocation2 + $0x148] sm:$0xff]
    %v880 = vld [vmem:[#allocation2 + $0x150] sm:$0xff]
    %v881 = vld [vmem:[#allocation2 + $0x158] sm:$0xff]
    %v882 = vld [vmem:[#allocation2 + $0x160] sm:$0xff]
    %v883 = vld [vmem:[#allocation2 + $0x168] sm:$0xff]
    %v884 = vld [vmem:[#allocation2 + $0x170] sm:$0xff]
    %v885 = vld [vmem:[#allocation2 + $0x178] sm:$0xff]
    %v886 = vld [vmem:[#allocation2 + $0x180] sm:$0xff]
    %v887 = vld [vmem:[#allocation2 + $0x188] sm:$0xff]
    %v888 = vld [vmem:[#allocation2 + $0x190] sm:$0xff]
    %v889 = vld [vmem:[#allocation2 + $0x198] sm:$0xff]
    %v890 = vld [vmem:[#allocation2 + $0x1a0] sm:$0xff]
    %v891 = vld [vmem:[#allocation2 + $0x1a8] sm:$0xff]
    %v892 = vld [vmem:[#allocation2 + $0x1b0] sm:$0xff]
    %v893 = vld [vmem:[#allocation2 + $0x1b8] sm:$0xff]
    %v894 = vld [vmem:[#allocation2 + $0x1c0] sm:$0xff]
    %v895 = vld [vmem:[#allocation2 + $0x1c8] sm:$0xff]
    %v896 = vld [vmem:[#allocation2 + $0x1d0] sm:$0xff]
    %v897 = vld [vmem:[#allocation2 + $0x1d8] sm:$0xff]
    %v898 = vld [vmem:[#allocation2 + $0x1e0] sm:$0xff]
    %v899 = vld [vmem:[#allocation2 + $0x1e8] sm:$0xff]
    %v900 = vld [vmem:[#allocation2 + $0x1f0] sm:$0xff]
    %v901 = vld [vmem:[#allocation2 + $0x1f8] sm:$0xff]
    %v902 = vld [vmem:[#allocation2 + $0x200] sm:$0xff]
    %v903 = vld [vmem:[#allocation2 + $0x208] sm:$0xff]
    %v904 = vld [vmem:[#allocation2 + $0x210] sm:$0xff]
    %v905 = vld [vmem:[#allocation2 + $0x218] sm:$0xff]
    %v906 = vld [vmem:[#allocation2 + $0x220] sm:$0xff]
    %v907 = vld [vmem:[#allocation2 + $0x228] sm:$0xff]
    %v908 = vld [vmem:[#allocation2 + $0x230] sm:$0xff]
    %v909 = vld [vmem:[#allocation2 + $0x238] sm:$0xff]
    %v910 = vld [vmem:[#allocation2 + $0x240] sm:$0xff]
    %v911 = vld [vmem:[#allocation2 + $0x248] sm:$0xff]
    %v912 = vld [vmem:[#allocation2 + $0x250] sm:$0xff]
    %v913 = vld [vmem:[#allocation2 + $0x258] sm:$0xff]
    %v914 = vld [vmem:[#allocation2 + $0x260] sm:$0xff]
    %v915 = vld [vmem:[#allocation2 + $0x268] sm:$0xff]
    %v916 = vld [vmem:[#allocation2 + $0x270] sm:$0xff]
    %v917 = vld [vmem:[#allocation2 + $0x278] sm:$0xff]
    %vm918 = vcmask 654336
    %v920 = vsel %vm918, %v836, 0
    %v923 = vsel %vm918, %v837, 0
    %v925 = vand.u32 %v839, 4294901760
    %926 = vmatprep.subr.mxu0 %v925
    %v927 = vand.u32 %v838, 4294901760
    %928 = vmatpush1.msra.mxu0 %v927
    %v929 = vand.u32 %v847, 4294901760
    %930 = vmatprep.subr.mxu0 %v929
    %v931 = vand.u32 %v846, 4294901760
    %932 = vmatpush1.msra.mxu0 %v931
    %v933 = vand.u32 %v855, 4294901760
    %934 = vmatprep.subr.mxu0 %v933
    %v935 = vand.u32 %v854, 4294901760
    %936 = vmatpush1.msra.mxu0 %v935
    %v937 = vand.u32 %v863, 4294901760
    %938 = vmatprep.subr.mxu0 %v937
    %v939 = vand.u32 %v862, 4294901760
    %940 = vmatpush1.msra.mxu0 %v939
    %v941 = vand.u32 %v871, 4294901760
    %942 = vmatprep.subr.mxu0 %v941
    %v943 = vand.u32 %v870, 4294901760
    %944 = vmatpush1.msra.mxu0 %v943
    %v945 = vand.u32 %v879, 4294901760
    %946 = vmatprep.subr.mxu0 %v945
    %v947 = vand.u32 %v878, 4294901760
    %948 = vmatpush1.msra.mxu0 %v947
    %v949 = vand.u32 %v887, 4294901760
    %950 = vmatprep.subr.mxu0 %v949
    %v951 = vand.u32 %v886, 4294901760
    %952 = vmatpush1.msra.mxu0 %v951
    %v953 = vand.u32 %v895, 4294901760
    %954 = vmatprep.subr.mxu0 %v953
    %v955 = vand.u32 %v894, 4294901760
    %956 = vmatpush1.msra.mxu0 %v955
    %v957 = vand.u32 %v903, 4294901760
    %958 = vmatprep.subr.mxu0 %v957
    %v959 = vand.u32 %v902, 4294901760
    %960 = vmatpush1.msra.mxu0 %v959
    %v961 = vand.u32 %v911, 4294901760
    %962 = vmatprep.subr.mxu0 %v961
    %v963 = vand.u32 %v910, 4294901760
    %964 = vmatpush1.msra.mxu0 %v963
    %965 = vmatprep.subr.mxu0 0.0
    %966 = vmatpush1.msra.mxu0 0.0
    %967 = vmatprep.subr.mxu0 0.0
    %968 = vmatpush1.msra.mxu0 0.0
    %969 = vmatprep.subr.mxu0 0.0
    %970 = vmatpush1.msra.mxu0 0.0
    %971 = vmatprep.subr.mxu0 0.0
    %972 = vmatpush1.msra.mxu0 0.0
    %973 = vmatprep.subr.mxu0 0.0
    %974 = vmatpush1.msra.mxu0 0.0
    %975 = vmatprep.subr.mxu0 0.0
    %976 = vmatpush1.msra.mxu0 0.0
    %977 = vmatprep.subr.mxu0 0.0
    %978 = vmatpush1.msra.mxu0 0.0
    %979 = vmatprep.subr.mxu0 0.0
    %980 = vmatpush1.msra.mxu0 0.0
    %981 = vmatprep.subr.mxu0 0.0
    %982 = vmatpush1.msra.mxu0 0.0
    %983 = vmatprep.subr.mxu0 0.0
    %984 = vmatpush1.msra.mxu0 0.0
    %985 = vmatprep.subr.mxu0 0.0
    %986 = vmatpush1.msra.mxu0 0.0
    %987 = vmatprep.subr.mxu0 0.0
    %988 = vmatpush1.msra.mxu0 0.0
    %989 = vmatprep.subr.mxu0 0.0
    %990 = vmatpush1.msra.mxu0 0.0
    %991 = vmatprep.subr.mxu0 0.0
    %992 = vmatpush1.msra.mxu0 0.0
    %993 = vmatprep.subr.mxu0 0.0
    %994 = vmatpush1.msra.mxu0 0.0
    %995 = vmatprep.subr.mxu0 0.0
    %996 = vmatpush1.msra.mxu0 0.0
    %997 = vmatprep.subr.mxu0 0.0
    %998 = vmatpush1.msra.mxu0 0.0
    %999 = vmatprep.subr.mxu0 0.0
    %1000 = vmatpush1.msra.mxu0 0.0
    %1001 = vmatprep.subr.mxu0 0.0
    %1002 = vmatpush1.msra.mxu0 0.0
    %1003 = vmatprep.subr.mxu0 0.0
    %1004 = vmatpush1.msra.mxu0 0.0
    %1005 = vmatprep.subr.mxu0 0.0
    %1006 = vmatpush1.msra.mxu0 0.0
    %1007 = vmatprep.subr.mxu0 0.0
    %1008 = vmatpush1.msra.mxu0 0.0
    %1009 = vmatprep.mubr.f32.mxu0 0.0
    %v1010 = vand.u32 %v920, 4294901760
    %v1011 = vsub.f32 %v920, %v1010
    %v1012 = vand.u32 %v1011, 4294901760
    %v1013 = vsub.f32 %v1011, %v1012
    %v1014 = vand.u32 %v1013, 4294901760
    %1015 = vmatmul.mubr.f32.gmra.mrb[0].mxu0 %v1014
    %v1016 = vpop.f32.mrb[0].mxu0
    %v1017 = vadd.f32 0.0, %v1016
    %v1018 = vpop.f32.mrb[0].mxu0
    %v1019 = vadd.f32 0.0, %v1018
    %1020 = vmatprep.mubr.f32.mxu0 0.0
    %v1021 = vand.u32 %v923, 4294901760
    %v1022 = vsub.f32 %v923, %v1021
    %v1023 = vand.u32 %v1022, 4294901760
    %v1024 = vsub.f32 %v1022, %v1023
    %v1025 = vand.u32 %v1024, 4294901760
    %1026 = vmatmul.mubr.f32.gmra.mrb[0].mxu0 %v1025
    %v1027 = vpop.f32.mrb[0].mxu0
    %v1028 = vadd.f32 0.0, %v1027
    %v1029 = vpop.f32.mrb[0].mxu0
    %v1030 = vadd.f32 0.0, %v1029
    %1031 = vdwg.mxu0
    %v1032 = vand.u32 %v839, 4294901760
    %v1033 = vsub.f32 %v839, %v1032
    %v1034 = vand.u32 %v1033, 4294901760
    %v1035 = vsub.f32 %v1033, %v1034
    %v1036 = vand.u32 %v1035, 4294901760
    %1037 = vmatprep.subr.mxu0 %v1036
    %v1038 = vand.u32 %v838, 4294901760
    %v1039 = vsub.f32 %v838, %v1038
    %v1040 = vand.u32 %v1039, 4294901760
    %v1041 = vsub.f32 %v1039, %v1040
    %v1042 = vand.u32 %v1041, 4294901760
    %1043 = vmatpush1.msra.mxu0 %v1042
    %v1044 = vand.u32 %v847, 4294901760
    %v1045 = vsub.f32 %v847, %v1044
    %v1046 = vand.u32 %v1045, 4294901760
    %v1047 = vsub.f32 %v1045, %v1046
    %v1048 = vand.u32 %v1047, 4294901760
    %1049 = vmatprep.subr.mxu0 %v1048
    %v1050 = vand.u32 %v846, 4294901760
    %v1051 = vsub.f32 %v846, %v1050
    %v1052 = vand.u32 %v1051, 4294901760
    %v1053 = vsub.f32 %v1051, %v1052
    %v1054 = vand.u32 %v1053, 4294901760
    %1055 = vmatpush1.msra.mxu0 %v1054
    %v1056 = vand.u32 %v855, 4294901760
    %v1057 = vsub.f32 %v855, %v1056
    %v1058 = vand.u32 %v1057, 4294901760
    %v1059 = vsub.f32 %v1057, %v1058
    %v1060 = vand.u32 %v1059, 4294901760
    %1061 = vmatprep.subr.mxu0 %v1060
    %v1062 = vand.u32 %v854, 4294901760
    %v1063 = vsub.f32 %v854, %v1062
    %v1064 = vand.u32 %v1063, 4294901760
    %v1065 = vsub.f32 %v1063, %v1064
    %v1066 = vand.u32 %v1065, 4294901760
    %1067 = vmatpush1.msra.mxu0 %v1066
    %v1068 = vand.u32 %v863, 4294901760
    %v1069 = vsub.f32 %v863, %v1068
    %v1070 = vand.u32 %v1069, 4294901760
    %v1071 = vsub.f32 %v1069, %v1070
    %v1072 = vand.u32 %v1071, 4294901760
    %1073 = vmatprep.subr.mxu0 %v1072
    %v1074 = vand.u32 %v862, 4294901760
    %v1075 = vsub.f32 %v862, %v1074
    %v1076 = vand.u32 %v1075, 4294901760
    %v1077 = vsub.f32 %v1075, %v1076
    %v1078 = vand.u32 %v1077, 4294901760
    %1079 = vmatpush1.msra.mxu0 %v1078
    %v1080 = vand.u32 %v871, 4294901760
    %v1081 = vsub.f32 %v871, %v1080
    %v1082 = vand.u32 %v1081, 4294901760
    %v1083 = vsub.f32 %v1081, %v1082
    %v1084 = vand.u32 %v1083, 4294901760
    %1085 = vmatprep.subr.mxu0 %v1084
    %v1086 = vand.u32 %v870, 4294901760
    %v1087 = vsub.f32 %v870, %v1086
    %v1088 = vand.u32 %v1087, 4294901760
    %v1089 = vsub.f32 %v1087, %v1088
    %v1090 = vand.u32 %v1089, 4294901760
    %1091 = vmatpush1.msra.mxu0 %v1090
    %v1092 = vand.u32 %v879, 4294901760
    %v1093 = vsub.f32 %v879, %v1092
    %v1094 = vand.u32 %v1093, 4294901760
    %v1095 = vsub.f32 %v1093, %v1094
    %v1096 = vand.u32 %v1095, 4294901760
    %1097 = vmatprep.subr.mxu0 %v1096
    %v1098 = vand.u32 %v878, 4294901760
    %v1099 = vsub.f32 %v878, %v1098
    %v1100 = vand.u32 %v1099, 4294901760
    %v1101 = vsub.f32 %v1099, %v1100
    %v1102 = vand.u32 %v1101, 4294901760
    %1103 = vmatpush1.msra.mxu0 %v1102
    %v1104 = vand.u32 %v887, 4294901760
    %v1105 = vsub.f32 %v887, %v1104
    %v1106 = vand.u32 %v1105, 4294901760
    %v1107 = vsub.f32 %v1105, %v1106
    %v1108 = vand.u32 %v1107, 4294901760
    %1109 = vmatprep.subr.mxu0 %v1108
    %v1110 = vand.u32 %v886, 4294901760
    %v1111 = vsub.f32 %v886, %v1110
    %v1112 = vand.u32 %v1111, 4294901760
    %v1113 = vsub.f32 %v1111, %v1112
    %v1114 = vand.u32 %v1113, 4294901760
    %1115 = vmatpush1.msra.mxu0 %v1114
    %v1116 = vand.u32 %v895, 4294901760
    %v1117 = vsub.f32 %v895, %v1116
    %v1118 = vand.u32 %v1117, 4294901760
    %v1119 = vsub.f32 %v1117, %v1118
    %v1120 = vand.u32 %v1119, 4294901760
    %1121 = vmatprep.subr.mxu0 %v1120
    %v1122 = vand.u32 %v894, 4294901760
    %v1123 = vsub.f32 %v894, %v1122
    %v1124 = vand.u32 %v1123, 4294901760
    %v1125 = vsub.f32 %v1123, %v1124
    %v1126 = vand.u32 %v1125, 4294901760
    %1127 = vmatpush1.msra.mxu0 %v1126
    %v1128 = vand.u32 %v903, 4294901760
    %v1129 = vsub.f32 %v903, %v1128
    %v1130 = vand.u32 %v1129, 4294901760
    %v1131 = vsub.f32 %v1129, %v1130
    %v1132 = vand.u32 %v1131, 4294901760
    %1133 = vmatprep.subr.mxu0 %v1132
    %v1134 = vand.u32 %v902, 4294901760
    %v1135 = vsub.f32 %v902, %v1134
    %v1136 = vand.u32 %v1135, 4294901760
    %v1137 = vsub.f32 %v1135, %v1136
    %v1138 = vand.u32 %v1137, 4294901760
    %1139 = vmatpush1.msra.mxu0 %v1138
    %v1140 = vand.u32 %v911, 4294901760
    %v1141 = vsub.f32 %v911, %v1140
    %v1142 = vand.u32 %v1141, 4294901760
    %v1143 = vsub.f32 %v1141, %v1142
    %v1144 = vand.u32 %v1143, 4294901760
    %1145 = vmatprep.subr.mxu0 %v1144
    %v1146 = vand.u32 %v910, 4294901760
    %v1147 = vsub.f32 %v910, %v1146
    %v1148 = vand.u32 %v1147, 4294901760
    %v1149 = vsub.f32 %v1147, %v1148
    %v1150 = vand.u32 %v1149, 4294901760
    %1151 = vmatpush1.msra.mxu0 %v1150
    %1152 = vmatprep.subr.mxu0 0.0
    %1153 = vmatpush1.msra.mxu0 0.0
    %1154 = vmatprep.subr.mxu0 0.0
    %1155 = vmatpush1.msra.mxu0 0.0
    %1156 = vmatprep.subr.mxu0 0.0
    %1157 = vmatpush1.msra.mxu0 0.0
    %1158 = vmatprep.subr.mxu0 0.0
    %1159 = vmatpush1.msra.mxu0 0.0
    %1160 = vmatprep.subr.mxu0 0.0
    %1161 = vmatpush1.msra.mxu0 0.0
    %1162 = vmatprep.subr.mxu0 0.0
    %1163 = vmatpush1.msra.mxu0 0.0
    %1164 = vmatprep.subr.mxu0 0.0
    %1165 = vmatpush1.msra.mxu0 0.0
    %1166 = vmatprep.subr.mxu0 0.0
    %1167 = vmatpush1.msra.mxu0 0.0
    %1168 = vmatprep.subr.mxu0 0.0
    %1169 = vmatpush1.msra.mxu0 0.0
    %1170 = vmatprep.subr.mxu0 0.0
    %1171 = vmatpush1.msra.mxu0 0.0
    %1172 = vmatprep.subr.mxu0 0.0
    %1173 = vmatpush1.msra.mxu0 0.0
    %1174 = vmatprep.subr.mxu0 0.0
    %1175 = vmatpush1.msra.mxu0 0.0
    %1176 = vmatprep.subr.mxu0 0.0
    %1177 = vmatpush1.msra.mxu0 0.0
    %1178 = vmatprep.subr.mxu0 0.0
    %1179 = vmatpush1.msra.mxu0 0.0
    %1180 = vmatprep.subr.mxu0 0.0
    %1181 = vmatpush1.msra.mxu0 0.0
    %1182 = vmatprep.subr.mxu0 0.0
    %1183 = vmatpush1.msra.mxu0 0.0
    %1184 = vmatprep.subr.mxu0 0.0
    %1185 = vmatpush1.msra.mxu0 0.0
    %1186 = vmatprep.subr.mxu0 0.0
    %1187 = vmatpush1.msra.mxu0 0.0
    %1188 = vmatprep.subr.mxu0 0.0
    %1189 = vmatpush1.msra.mxu0 0.0
    %1190 = vmatprep.subr.mxu0 0.0
    %1191 = vmatpush1.msra.mxu0 0.0
    %1192 = vmatprep.subr.mxu0 0.0
    %1193 = vmatpush1.msra.mxu0 0.0
    %1194 = vmatprep.subr.mxu0 0.0
    %1195 = vmatpush1.msra.mxu0 0.0
    %1196 = vmatprep.mubr.f32.mxu0 0.0
    %v1197 = vand.u32 %v920, 4294901760
    %1198 = vmatmul.mubr.f32.gmra.mrb[0].mxu0 %v1197
    %v1199 = vpop.f32.mrb[0].mxu0
    %v1200 = vadd.f32 %v1017, %v1199
    %v1201 = vpop.f32.mrb[0].mxu0
    %v1202 = vadd.f32 %v1019, %v1201
    %1203 = vmatprep.mubr.f32.mxu0 0.0
    %v1204 = vand.u32 %v923, 4294901760
    %1205 = vmatmul.mubr.f32.gmra.mrb[0].mxu0 %v1204
    %v1206 = vpop.f32.mrb[0].mxu0
    %v1207 = vadd.f32 %v1028, %v1206
    %v1208 = vpop.f32.mrb[0].mxu0
    %v1209 = vadd.f32 %v1030, %v1208
    %1210 = vdwg.mxu0
    %v1211 = vand.u32 %v839, 4294901760
    %v1212 = vsub.f32 %v839, %v1211
    %1213 = vmatprep.subr.mxu0 %v1212
    %v1214 = vand.u32 %v838, 4294901760
    %v1215 = vsub.f32 %v838, %v1214
    %1216 = vmatpush1.msra.mxu0 %v1215
    %v1217 = vand.u32 %v847, 4294901760
    %v1218 = vsub.f32 %v847, %v1217
    %1219 = vmatprep.subr.mxu0 %v1218
    %v1220 = vand.u32 %v846, 4294901760
    %v1221 = vsub.f32 %v846, %v1220
    %1222 = vmatpush1.msra.mxu0 %v1221
    %v1223 = vand.u32 %v855, 4294901760
    %v1224 = vsub.f32 %v855, %v1223
    %1225 = vmatprep.subr.mxu0 %v1224
    %v1226 = vand.u32 %v854, 4294901760
    %v1227 = vsub.f32 %v854, %v1226
    %1228 = vmatpush1.msra.mxu0 %v1227
    %v1229 = vand.u32 %v863, 4294901760
    %v1230 = vsub.f32 %v863, %v1229
    %1231 = vmatprep.subr.mxu0 %v1230
    %v1232 = vand.u32 %v862, 4294901760
    %v1233 = vsub.f32 %v862, %v1232
    %1234 = vmatpush1.msra.mxu0 %v1233
    %v1235 = vand.u32 %v871, 4294901760
    %v1236 = vsub.f32 %v871, %v1235
    %1237 = vmatprep.subr.mxu0 %v1236
    %v1238 = vand.u32 %v870, 4294901760
    %v1239 = vsub.f32 %v870, %v1238
    %1240 = vmatpush1.msra.mxu0 %v1239
    %v1241 = vand.u32 %v879, 4294901760
    %v1242 = vsub.f32 %v879, %v1241
    %1243 = vmatprep.subr.mxu0 %v1242
    %v1244 = vand.u32 %v878, 4294901760
    %v1245 = vsub.f32 %v878, %v1244
    %1246 = vmatpush1.msra.mxu0 %v1245
    %v1247 = vand.u32 %v887, 4294901760
    %v1248 = vsub.f32 %v887, %v1247
    %1249 = vmatprep.subr.mxu0 %v1248
    %v1250 = vand.u32 %v886, 4294901760
    %v1251 = vsub.f32 %v886, %v1250
    %1252 = vmatpush1.msra.mxu0 %v1251
    %v1253 = vand.u32 %v895, 4294901760
    %v1254 = vsub.f32 %v895, %v1253
    %1255 = vmatprep.subr.mxu0 %v1254
    %v1256 = vand.u32 %v894, 4294901760
    %v1257 = vsub.f32 %v894, %v1256
    %1258 = vmatpush1.msra.mxu0 %v1257
    %v1259 = vand.u32 %v903, 4294901760
    %v1260 = vsub.f32 %v903, %v1259
    %1261 = vmatprep.subr.mxu0 %v1260
    %v1262 = vand.u32 %v902, 4294901760
    %v1263 = vsub.f32 %v902, %v1262
    %1264 = vmatpush1.msra.mxu0 %v1263
    %v1265 = vand.u32 %v911, 4294901760
    %v1266 = vsub.f32 %v911, %v1265
    %1267 = vmatprep.subr.mxu0 %v1266
    %v1268 = vand.u32 %v910, 4294901760
    %v1269 = vsub.f32 %v910, %v1268
    %1270 = vmatpush1.msra.mxu0 %v1269
    %1271 = vmatprep.subr.mxu0 0.0
    %1272 = vmatpush1.msra.mxu0 0.0
    %1273 = vmatprep.subr.mxu0 0.0
    %1274 = vmatpush1.msra.mxu0 0.0
    %1275 = vmatprep.subr.mxu0 0.0
    %1276 = vmatpush1.msra.mxu0 0.0
    %1277 = vmatprep.subr.mxu0 0.0
    %1278 = vmatpush1.msra.mxu0 0.0
    %1279 = vmatprep.subr.mxu0 0.0
    %1280 = vmatpush1.msra.mxu0 0.0
    %1281 = vmatprep.subr.mxu0 0.0
    %1282 = vmatpush1.msra.mxu0 0.0
    %1283 = vmatprep.subr.mxu0 0.0
    %1284 = vmatpush1.msra.mxu0 0.0
    %1285 = vmatprep.subr.mxu0 0.0
    %1286 = vmatpush1.msra.mxu0 0.0
    %1287 = vmatprep.subr.mxu0 0.0
    %1288 = vmatpush1.msra.mxu0 0.0
    %1289 = vmatprep.subr.mxu0 0.0
    %1290 = vmatpush1.msra.mxu0 0.0
    %1291 = vmatprep.subr.mxu0 0.0
    %1292 = vmatpush1.msra.mxu0 0.0
    %1293 = vmatprep.subr.mxu0 0.0
    %1294 = vmatpush1.msra.mxu0 0.0
    %1295 = vmatprep.subr.mxu0 0.0
    %1296 = vmatpush1.msra.mxu0 0.0
    %1297 = vmatprep.subr.mxu0 0.0
    %1298 = vmatpush1.msra.mxu0 0.0
    %1299 = vmatprep.subr.mxu0 0.0
    %1300 = vmatpush1.msra.mxu0 0.0
    %1301 = vmatprep.subr.mxu0 0.0
    %1302 = vmatpush1.msra.mxu0 0.0
    %1303 = vmatprep.subr.mxu0 0.0
    %1304 = vmatpush1.msra.mxu0 0.0
    %1305 = vmatprep.subr.mxu0 0.0
    %1306 = vmatpush1.msra.mxu0 0.0
    %1307 = vmatprep.subr.mxu0 0.0
    %1308 = vmatpush1.msra.mxu0 0.0
    %1309 = vmatprep.subr.mxu0 0.0
    %1310 = vmatpush1.msra.mxu0 0.0
    %1311 = vmatprep.subr.mxu0 0.0
    %1312 = vmatpush1.msra.mxu0 0.0
    %1313 = vmatprep.subr.mxu0 0.0
    %1314 = vmatpush1.msra.mxu0 0.0
    %1315 = vmatprep.mubr.f32.mxu0 0.0
    %v1316 = vand.u32 %v920, 4294901760
    %v1317 = vsub.f32 %v920, %v1316
    %1318 = vmatmul.mubr.f32.gmra.mrb[0].mxu0 %v1317
    %v1319 = vpop.f32.mrb[0].mxu0
    %v1320 = vadd.f32 %v1200, %v1319
    %v1321 = vpop.f32.mrb[0].mxu0
    %v1322 = vadd.f32 %v1202, %v1321
    %1323 = vmatprep.mubr.f32.mxu0 0.0
    %v1324 = vand.u32 %v923, 4294901760
    %v1325 = vsub.f32 %v923, %v1324
    %1326 = vmatmul.mubr.f32.gmra.mrb[0].mxu0 %v1325
    %v1327 = vpop.f32.mrb[0].mxu0
    %v1328 = vadd.f32 %v1207, %v1327
    %v1329 = vpop.f32.mrb[0].mxu0
    %v1330 = vadd.f32 %v1209, %v1329
    %1331 = vdwg.mxu0
    %v1332 = vand.u32 %v839, 4294901760
    %1333 = vmatprep.subr.mxu0 %v1332
    %v1334 = vand.u32 %v838, 4294901760
    %1335 = vmatpush1.msra.mxu0 %v1334
    %v1336 = vand.u32 %v847, 4294901760
    %1337 = vmatprep.subr.mxu0 %v1336
    %v1338 = vand.u32 %v846, 4294901760
    %1339 = vmatpush1.msra.mxu0 %v1338
    %v1340 = vand.u32 %v855, 4294901760
    %1341 = vmatprep.subr.mxu0 %v1340
    %v1342 = vand.u32 %v854, 4294901760
    %1343 = vmatpush1.msra.mxu0 %v1342
    %v1344 = vand.u32 %v863, 4294901760
    %1345 = vmatprep.subr.mxu0 %v1344
    %v1346 = vand.u32 %v862, 4294901760
    %1347 = vmatpush1.msra.mxu0 %v1346
    %v1348 = vand.u32 %v871, 4294901760
    %1349 = vmatprep.subr.mxu0 %v1348
    %v1350 = vand.u32 %v870, 4294901760
    %1351 = vmatpush1.msra.mxu0 %v1350
    %v1352 = vand.u32 %v879, 4294901760
    %1353 = vmatprep.subr.mxu0 %v1352
    %v1354 = vand.u32 %v878, 4294901760
    %1355 = vmatpush1.msra.mxu0 %v1354
    %v1356 = vand.u32 %v887, 4294901760
    %1357 = vmatprep.subr.mxu0 %v1356
    %v1358 = vand.u32 %v886, 4294901760
    %1359 = vmatpush1.msra.mxu0 %v1358
    %v1360 = vand.u32 %v895, 4294901760
    %1361 = vmatprep.subr.mxu0 %v1360
    %v1362 = vand.u32 %v894, 4294901760
    %1363 = vmatpush1.msra.mxu0 %v1362
    %v1364 = vand.u32 %v903, 4294901760
    %1365 = vmatprep.subr.mxu0 %v1364
    %v1366 = vand.u32 %v902, 4294901760
    %1367 = vmatpush1.msra.mxu0 %v1366
    %v1368 = vand.u32 %v911, 4294901760
    %1369 = vmatprep.subr.mxu0 %v1368
    %v1370 = vand.u32 %v910, 4294901760
    %1371 = vmatpush1.msra.mxu0 %v1370
    %1372 = vmatprep.subr.mxu0 0.0
    %1373 = vmatpush1.msra.mxu0 0.0
    %1374 = vmatprep.subr.mxu0 0.0
    %1375 = vmatpush1.msra.mxu0 0.0
    %1376 = vmatprep.subr.mxu0 0.0
    %1377 = vmatpush1.msra.mxu0 0.0
    %1378 = vmatprep.subr.mxu0 0.0
    %1379 = vmatpush1.msra.mxu0 0.0
    %1380 = vmatprep.subr.mxu0 0.0
    %1381 = vmatpush1.msra.mxu0 0.0
    %1382 = vmatprep.subr.mxu0 0.0
    %1383 = vmatpush1.msra.mxu0 0.0
    %1384 = vmatprep.subr.mxu0 0.0
    %1385 = vmatpush1.msra.mxu0 0.0
    %1386 = vmatprep.subr.mxu0 0.0
    %1387 = vmatpush1.msra.mxu0 0.0
    %1388 = vmatprep.subr.mxu0 0.0
    %1389 = vmatpush1.msra.mxu0 0.0
    %1390 = vmatprep.subr.mxu0 0.0
    %1391 = vmatpush1.msra.mxu0 0.0
    %1392 = vmatprep.subr.mxu0 0.0
    %1393 = vmatpush1.msra.mxu0 0.0
    %1394 = vmatprep.subr.mxu0 0.0
    %1395 = vmatpush1.msra.mxu0 0.0
    %1396 = vmatprep.subr.mxu0 0.0
    %1397 = vmatpush1.msra.mxu0 0.0
    %1398 = vmatprep.subr.mxu0 0.0
    %1399 = vmatpush1.msra.mxu0 0.0
    %1400 = vmatprep.subr.mxu0 0.0
    %1401 = vmatpush1.msra.mxu0 0.0
    %1402 = vmatprep.subr.mxu0 0.0
    %1403 = vmatpush1.msra.mxu0 0.0
    %1404 = vmatprep.subr.mxu0 0.0
    %1405 = vmatpush1.msra.mxu0 0.0
    %1406 = vmatprep.subr.mxu0 0.0
    %1407 = vmatpush1.msra.mxu0 0.0
    %1408 = vmatprep.subr.mxu0 0.0
    %1409 = vmatpush1.msra.mxu0 0.0
    %1410 = vmatprep.subr.mxu0 0.0
    %1411 = vmatpush1.msra.mxu0 0.0
    %1412 = vmatprep.subr.mxu0 0.0
    %1413 = vmatpush1.msra.mxu0 0.0
    %1414 = vmatprep.subr.mxu0 0.0
    %1415 = vmatpush1.msra.mxu0 0.0
    %1416 = vmatprep.mubr.f32.mxu0 0.0
    %v1417 = vand.u32 %v920, 4294901760
    %v1418 = vsub.f32 %v920, %v1417
    %v1419 = vand.u32 %v1418, 4294901760
    %1420 = vmatmul.mubr.f32.gmra.mrb[0].mxu0 %v1419
    %v1421 = vpop.f32.mrb[0].mxu0
    %v1422 = vadd.f32 %v1320, %v1421
    %v1423 = vpop.f32.mrb[0].mxu0
    %v1424 = vadd.f32 %v1322, %v1423
    %1425 = vmatprep.mubr.f32.mxu0 0.0
    %v1426 = vand.u32 %v923, 4294901760
    %v1427 = vsub.f32 %v923, %v1426
    %v1428 = vand.u32 %v1427, 4294901760
    %1429 = vmatmul.mubr.f32.gmra.mrb[0].mxu0 %v1428
    %v1430 = vpop.f32.mrb[0].mxu0
    %v1431 = vadd.f32 %v1328, %v1430
    %v1432 = vpop.f32.mrb[0].mxu0
    %v1433 = vadd.f32 %v1330, %v1432
    %1434 = vdwg.mxu0
    %v1435 = vand.u32 %v839, 4294901760
    %v1436 = vsub.f32 %v839, %v1435
    %v1437 = vand.u32 %v1436, 4294901760
    %1438 = vmatprep.subr.mxu0 %v1437
    %v1439 = vand.u32 %v838, 4294901760
    %v1440 = vsub.f32 %v838, %v1439
    %v1441 = vand.u32 %v1440, 4294901760
    %1442 = vmatpush1.msra.mxu0 %v1441
    %v1443 = vand.u32 %v847, 4294901760
    %v1444 = vsub.f32 %v847, %v1443
    %v1445 = vand.u32 %v1444, 4294901760
    %1446 = vmatprep.subr.mxu0 %v1445
    %v1447 = vand.u32 %v846, 4294901760
    %v1448 = vsub.f32 %v846, %v1447
    %v1449 = vand.u32 %v1448, 4294901760
    %1450 = vmatpush1.msra.mxu0 %v1449
    %v1451 = vand.u32 %v855, 4294901760
    %v1452 = vsub.f32 %v855, %v1451
    %v1453 = vand.u32 %v1452, 4294901760
    %1454 = vmatprep.subr.mxu0 %v1453
    %v1455 = vand.u32 %v854, 4294901760
    %v1456 = vsub.f32 %v854, %v1455
    %v1457 = vand.u32 %v1456, 4294901760
    %1458 = vmatpush1.msra.mxu0 %v1457
    %v1459 = vand.u32 %v863, 4294901760
    %v1460 = vsub.f32 %v863, %v1459
    %v1461 = vand.u32 %v1460, 4294901760
    %1462 = vmatprep.subr.mxu0 %v1461
    %v1463 = vand.u32 %v862, 4294901760
    %v1464 = vsub.f32 %v862, %v1463
    %v1465 = vand.u32 %v1464, 4294901760
    %1466 = vmatpush1.msra.mxu0 %v1465
    %v1467 = vand.u32 %v871, 4294901760
    %v1468 = vsub.f32 %v871, %v1467
    %v1469 = vand.u32 %v1468, 4294901760
    %1470 = vmatprep.subr.mxu0 %v1469
    %v1471 = vand.u32 %v870, 4294901760
    %v1472 = vsub.f32 %v870, %v1471
    %v1473 = vand.u32 %v1472, 4294901760
    %1474 = vmatpush1.msra.mxu0 %v1473
    %v1475 = vand.u32 %v879, 4294901760
    %v1476 = vsub.f32 %v879, %v1475
    %v1477 = vand.u32 %v1476, 4294901760
    %1478 = vmatprep.subr.mxu0 %v1477
    %v1479 = vand.u32 %v878, 4294901760
    %v1480 = vsub.f32 %v878, %v1479
    %v1481 = vand.u32 %v1480, 4294901760
    %1482 = vmatpush1.msra.mxu0 %v1481
    %v1483 = vand.u32 %v887, 4294901760
    %v1484 = vsub.f32 %v887, %v1483
    %v1485 = vand.u32 %v1484, 4294901760
    %1486 = vmatprep.subr.mxu0 %v1485
    %v1487 = vand.u32 %v886, 4294901760
    %v1488 = vsub.f32 %v886, %v1487
    %v1489 = vand.u32 %v1488, 4294901760
    %1490 = vmatpush1.msra.mxu0 %v1489
    %v1491 = vand.u32 %v895, 4294901760
    %v1492 = vsub.f32 %v895, %v1491
    %v1493 = vand.u32 %v1492, 4294901760
    %1494 = vmatprep.subr.mxu0 %v1493
    %v1495 = vand.u32 %v894, 4294901760
    %v1496 = vsub.f32 %v894, %v1495
    %v1497 = vand.u32 %v1496, 4294901760
    %1498 = vmatpush1.msra.mxu0 %v1497
    %v1499 = vand.u32 %v903, 4294901760
    %v1500 = vsub.f32 %v903, %v1499
    %v1501 = vand.u32 %v1500, 4294901760
    %1502 = vmatprep.subr.mxu0 %v1501
    %v1503 = vand.u32 %v902, 4294901760
    %v1504 = vsub.f32 %v902, %v1503
    %v1505 = vand.u32 %v1504, 4294901760
    %1506 = vmatpush1.msra.mxu0 %v1505
    %v1507 = vand.u32 %v911, 4294901760
    %v1508 = vsub.f32 %v911, %v1507
    %v1509 = vand.u32 %v1508, 4294901760
    %1510 = vmatprep.subr.mxu0 %v1509
    %v1511 = vand.u32 %v910, 4294901760
    %v1512 = vsub.f32 %v910, %v1511
    %v1513 = vand.u32 %v1512, 4294901760
    %1514 = vmatpush1.msra.mxu0 %v1513
    %1515 = vmatprep.subr.mxu0 0.0
    %1516 = vmatpush1.msra.mxu0 0.0
    %1517 = vmatprep.subr.mxu0 0.0
    %1518 = vmatpush1.msra.mxu0 0.0
    %1519 = vmatprep.subr.mxu0 0.0
    %1520 = vmatpush1.msra.mxu0 0.0
    %1521 = vmatprep.subr.mxu0 0.0
    %1522 = vmatpush1.msra.mxu0 0.0
    %1523 = vmatprep.subr.mxu0 0.0
    %1524 = vmatpush1.msra.mxu0 0.0
    %1525 = vmatprep.subr.mxu0 0.0
    %1526 = vmatpush1.msra.mxu0 0.0
    %1527 = vmatprep.subr.mxu0 0.0
    %1528 = vmatpush1.msra.mxu0 0.0
    %1529 = vmatprep.subr.mxu0 0.0
    %1530 = vmatpush1.msra.mxu0 0.0
    %1531 = vmatprep.subr.mxu0 0.0
    %1532 = vmatpush1.msra.mxu0 0.0
    %1533 = vmatprep.subr.mxu0 0.0
    %1534 = vmatpush1.msra.mxu0 0.0
    %1535 = vmatprep.subr.mxu0 0.0
    %1536 = vmatpush1.msra.mxu0 0.0
    %1537 = vmatprep.subr.mxu0 0.0
    %1538 = vmatpush1.msra.mxu0 0.0
    %1539 = vmatprep.subr.mxu0 0.0
    %1540 = vmatpush1.msra.mxu0 0.0
    %1541 = vmatprep.subr.mxu0 0.0
    %1542 = vmatpush1.msra.mxu0 0.0
    %1543 = vmatprep.subr.mxu0 0.0
    %1544 = vmatpush1.msra.mxu0 0.0
    %1545 = vmatprep.subr.mxu0 0.0
    %1546 = vmatpush1.msra.mxu0 0.0
    %1547 = vmatprep.subr.mxu0 0.0
    %1548 = vmatpush1.msra.mxu0 0.0
    %1549 = vmatprep.subr.mxu0 0.0
    %1550 = vmatpush1.msra.mxu0 0.0
    %1551 = vmatprep.subr.mxu0 0.0
    %1552 = vmatpush1.msra.mxu0 0.0
    %1553 = vmatprep.subr.mxu0 0.0
    %1554 = vmatpush1.msra.mxu0 0.0
    %1555 = vmatprep.subr.mxu0 0.0
    %1556 = vmatpush1.msra.mxu0 0.0
    %1557 = vmatprep.subr.mxu0 0.0
    %1558 = vmatpush1.msra.mxu0 0.0
    %1559 = vmatprep.mubr.f32.mxu0 0.0
    %v1560 = vand.u32 %v920, 4294901760
    %1561 = vmatmul.mubr.f32.gmra.mrb[0].mxu0 %v1560
    %v1562 = vpop.f32.mrb[0].mxu0
    %v1563 = vadd.f32 %v1422, %v1562
    %v1564 = vpop.f32.mrb[0].mxu0
    %v1565 = vadd.f32 %v1424, %v1564
    %1566 = vmatprep.mubr.f32.mxu0 0.0
    %v1567 = vand.u32 %v923, 4294901760
    %1568 = vmatmul.mubr.f32.gmra.mrb[0].mxu0 %v1567
    %v1569 = vpop.f32.mrb[0].mxu0
    %v1570 = vadd.f32 %v1431, %v1569
    %v1571 = vpop.f32.mrb[0].mxu0
    %v1572 = vadd.f32 %v1433, %v1571
    %1573 = vdwg.mxu0
    %v1574 = vand.u32 %v839, 4294901760
    %1575 = vmatprep.subr.mxu0 %v1574
    %v1576 = vand.u32 %v838, 4294901760
    %1577 = vmatpush1.msra.mxu0 %v1576
    %v1578 = vand.u32 %v847, 4294901760
    %1579 = vmatprep.subr.mxu0 %v1578
    %v1580 = vand.u32 %v846, 4294901760
    %1581 = vmatpush1.msra.mxu0 %v1580
    %v1582 = vand.u32 %v855, 4294901760
    %1583 = vmatprep.subr.mxu0 %v1582
    %v1584 = vand.u32 %v854, 4294901760
    %1585 = vmatpush1.msra.mxu0 %v1584
    %v1586 = vand.u32 %v863, 4294901760
    %1587 = vmatprep.subr.mxu0 %v1586
    %v1588 = vand.u32 %v862, 4294901760
    %1589 = vmatpush1.msra.mxu0 %v1588
    %v1590 = vand.u32 %v871, 4294901760
    %1591 = vmatprep.subr.mxu0 %v1590
    %v1592 = vand.u32 %v870, 4294901760
    %1593 = vmatpush1.msra.mxu0 %v1592
    %v1594 = vand.u32 %v879, 4294901760
    %1595 = vmatprep.subr.mxu0 %v1594
    %v1596 = vand.u32 %v878, 4294901760
    %1597 = vmatpush1.msra.mxu0 %v1596
    %v1598 = vand.u32 %v887, 4294901760
    %1599 = vmatprep.subr.mxu0 %v1598
    %v1600 = vand.u32 %v886, 4294901760
    %1601 = vmatpush1.msra.mxu0 %v1600
    %v1602 = vand.u32 %v895, 4294901760
    %1603 = vmatprep.subr.mxu0 %v1602
    %v1604 = vand.u32 %v894, 4294901760
    %1605 = vmatpush1.msra.mxu0 %v1604
    %v1606 = vand.u32 %v903, 4294901760
    %1607 = vmatprep.subr.mxu0 %v1606
    %v1608 = vand.u32 %v902, 4294901760
    %1609 = vmatpush1.msra.mxu0 %v1608
    %v1610 = vand.u32 %v911, 4294901760
    %1611 = vmatprep.subr.mxu0 %v1610
    %v1612 = vand.u32 %v910, 4294901760
    %1613 = vmatpush1.msra.mxu0 %v1612
    %1614 = vmatprep.subr.mxu0 0.0
    %1615 = vmatpush1.msra.mxu0 0.0
    %1616 = vmatprep.subr.mxu0 0.0
    %1617 = vmatpush1.msra.mxu0 0.0
    %1618 = vmatprep.subr.mxu0 0.0
    %1619 = vmatpush1.msra.mxu0 0.0
    %1620 = vmatprep.subr.mxu0 0.0
    %1621 = vmatpush1.msra.mxu0 0.0
    %1622 = vmatprep.subr.mxu0 0.0
    %1623 = vmatpush1.msra.mxu0 0.0
    %1624 = vmatprep.subr.mxu0 0.0
    %1625 = vmatpush1.msra.mxu0 0.0
    %1626 = vmatprep.subr.mxu0 0.0
    %1627 = vmatpush1.msra.mxu0 0.0
    %1628 = vmatprep.subr.mxu0 0.0
    %1629 = vmatpush1.msra.mxu0 0.0
    %1630 = vmatprep.subr.mxu0 0.0
    %1631 = vmatpush1.msra.mxu0 0.0
    %1632 = vmatprep.subr.mxu0 0.0
    %1633 = vmatpush1.msra.mxu0 0.0
    %1634 = vmatprep.subr.mxu0 0.0
    %1635 = vmatpush1.msra.mxu0 0.0
    %1636 = vmatprep.subr.mxu0 0.0
    %1637 = vmatpush1.msra.mxu0 0.0
    %1638 = vmatprep.subr.mxu0 0.0
    %1639 = vmatpush1.msra.mxu0 0.0
    %1640 = vmatprep.subr.mxu0 0.0
    %1641 = vmatpush1.msra.mxu0 0.0
    %1642 = vmatprep.subr.mxu0 0.0
    %1643 = vmatpush1.msra.mxu0 0.0
    %1644 = vmatprep.subr.mxu0 0.0
    %1645 = vmatpush1.msra.mxu0 0.0
    %1646 = vmatprep.subr.mxu0 0.0
    %1647 = vmatpush1.msra.mxu0 0.0
    %1648 = vmatprep.subr.mxu0 0.0
    %1649 = vmatpush1.msra.mxu0 0.0
    %1650 = vmatprep.subr.mxu0 0.0
    %1651 = vmatpush1.msra.mxu0 0.0
    %1652 = vmatprep.subr.mxu0 0.0
    %1653 = vmatpush1.msra.mxu0 0.0
    %1654 = vmatprep.subr.mxu0 0.0
    %1655 = vmatpush1.msra.mxu0 0.0
    %1656 = vmatprep.subr.mxu0 0.0
    %1657 = vmatpush1.msra.mxu0 0.0
    %1658 = vmatprep.mubr.f32.mxu0 0.0
    %v1659 = vand.u32 %v920, 4294901760
    %1660 = vmatmul.mubr.f32.gmra.mrb[0].mxu0 %v1659
    %v1661 = vpop.f32.mrb[0].mxu0
    %v1662 = vadd.f32 %v1563, %v1661
    %v1663 = vpop.f32.mrb[0].mxu0
    %v1664 = vadd.f32 %v1565, %v1663
    %1665 = vmatprep.mubr.f32.mxu0 0.0
    %v1666 = vand.u32 %v923, 4294901760
    %1667 = vmatmul.mubr.f32.gmra.mrb[0].mxu0 %v1666
    %v1668 = vpop.f32.mrb[0].mxu0
    %v1669 = vadd.f32 %v1570, %v1668
    %v1670 = vpop.f32.mrb[0].mxu0
    %v1671 = vadd.f32 %v1572, %v1670
    %1672 = vdwg.mxu0
    %v1673 = vand.u32 %v841, 4294901760
    %1674 = vmatprep.subr.mxu0 %v1673
    %v1675 = vand.u32 %v840, 4294901760
    %1676 = vmatpush1.msra.mxu0 %v1675
    %v1677 = vand.u32 %v849, 4294901760
    %1678 = vmatprep.subr.mxu0 %v1677
    %v1679 = vand.u32 %v848, 4294901760
    %1680 = vmatpush1.msra.mxu0 %v1679
    %v1681 = vand.u32 %v857, 4294901760
    %1682 = vmatprep.subr.mxu0 %v1681
    %v1683 = vand.u32 %v856, 4294901760
    %1684 = vmatpush1.msra.mxu0 %v1683
    %v1685 = vand.u32 %v865, 4294901760
    %1686 = vmatprep.subr.mxu0 %v1685
    %v1687 = vand.u32 %v864, 4294901760
    %1688 = vmatpush1.msra.mxu0 %v1687
    %v1689 = vand.u32 %v873, 4294901760
    %1690 = vmatprep.subr.mxu0 %v1689
    %v1691 = vand.u32 %v872, 4294901760
    %1692 = vmatpush1.msra.mxu0 %v1691
    %v1693 = vand.u32 %v881, 4294901760
    %1694 = vmatprep.subr.mxu0 %v1693
    %v1695 = vand.u32 %v880, 4294901760
    %1696 = vmatpush1.msra.mxu0 %v1695
    %v1697 = vand.u32 %v889, 4294901760
    %1698 = vmatprep.subr.mxu0 %v1697
    %v1699 = vand.u32 %v888, 4294901760
    %1700 = vmatpush1.msra.mxu0 %v1699
    %v1701 = vand.u32 %v897, 4294901760
    %1702 = vmatprep.subr.mxu0 %v1701
    %v1703 = vand.u32 %v896, 4294901760
    %1704 = vmatpush1.msra.mxu0 %v1703
    %v1705 = vand.u32 %v905, 4294901760
    %1706 = vmatprep.subr.mxu0 %v1705
    %v1707 = vand.u32 %v904, 4294901760
    %1708 = vmatpush1.msra.mxu0 %v1707
    %v1709 = vand.u32 %v913, 4294901760
    %1710 = vmatprep.subr.mxu0 %v1709
    %v1711 = vand.u32 %v912, 4294901760
    %1712 = vmatpush1.msra.mxu0 %v1711
    %1713 = vmatprep.subr.mxu0 0.0
    %1714 = vmatpush1.msra.mxu0 0.0
    %1715 = vmatprep.subr.mxu0 0.0
    %1716 = vmatpush1.msra.mxu0 0.0
    %1717 = vmatprep.subr.mxu0 0.0
    %1718 = vmatpush1.msra.mxu0 0.0
    %1719 = vmatprep.subr.mxu0 0.0
    %1720 = vmatpush1.msra.mxu0 0.0
    %1721 = vmatprep.subr.mxu0 0.0
    %1722 = vmatpush1.msra.mxu0 0.0
    %1723 = vmatprep.subr.mxu0 0.0
    %1724 = vmatpush1.msra.mxu0 0.0
    %1725 = vmatprep.subr.mxu0 0.0
    %1726 = vmatpush1.msra.mxu0 0.0
    %1727 = vmatprep.subr.mxu0 0.0
    %1728 = vmatpush1.msra.mxu0 0.0
    %1729 = vmatprep.subr.mxu0 0.0
    %1730 = vmatpush1.msra.mxu0 0.0
    %1731 = vmatprep.subr.mxu0 0.0
    %1732 = vmatpush1.msra.mxu0 0.0
    %1733 = vmatprep.subr.mxu0 0.0
    %1734 = vmatpush1.msra.mxu0 0.0
    %1735 = vmatprep.subr.mxu0 0.0
    %1736 = vmatpush1.msra.mxu0 0.0
    %1737 = vmatprep.subr.mxu0 0.0
    %1738 = vmatpush1.msra.mxu0 0.0
    %1739 = vmatprep.subr.mxu0 0.0
    %1740 = vmatpush1.msra.mxu0 0.0
    %1741 = vmatprep.subr.mxu0 0.0
    %1742 = vmatpush1.msra.mxu0 0.0
    %1743 = vmatprep.subr.mxu0 0.0
    %1744 = vmatpush1.msra.mxu0 0.0
    %1745 = vmatprep.subr.mxu0 0.0
    %1746 = vmatpush1.msra.mxu0 0.0
    %1747 = vmatprep.subr.mxu0 0.0
    %1748 = vmatpush1.msra.mxu0 0.0
    %1749 = vmatprep.subr.mxu0 0.0
    %1750 = vmatpush1.msra.mxu0 0.0
    %1751 = vmatprep.subr.mxu0 0.0
    %1752 = vmatpush1.msra.mxu0 0.0
    %1753 = vmatprep.subr.mxu0 0.0
    %1754 = vmatpush1.msra.mxu0 0.0
    %1755 = vmatprep.subr.mxu0 0.0
    %1756 = vmatpush1.msra.mxu0 0.0
    %1757 = vmatprep.mubr.f32.mxu0 0.0
    %v1758 = vand.u32 %v920, 4294901760
    %v1759 = vsub.f32 %v920, %v1758
    %v1760 = vand.u32 %v1759, 4294901760
    %v1761 = vsub.f32 %v1759, %v1760
    %v1762 = vand.u32 %v1761, 4294901760
    %1763 = vmatmul.mubr.f32.gmra.mrb[0].mxu0 %v1762
    %v1764 = vpop.f32.mrb[0].mxu0
    %v1765 = vadd.f32 0.0, %v1764
    %v1766 = vpop.f32.mrb[0].mxu0
    %v1767 = vadd.f32 0.0, %v1766
    %1768 = vmatprep.mubr.f32.mxu0 0.0
    %v1769 = vand.u32 %v923, 4294901760
    %v1770 = vsub.f32 %v923, %v1769
    %v1771 = vand.u32 %v1770, 4294901760
    %v1772 = vsub.f32 %v1770, %v1771
    %v1773 = vand.u32 %v1772, 4294901760
    %1774 = vmatmul.mubr.f32.gmra.mrb[0].mxu0 %v1773
    %v1775 = vpop.f32.mrb[0].mxu0
    %v1776 = vadd.f32 0.0, %v1775
    %v1777 = vpop.f32.mrb[0].mxu0
    %v1778 = vadd.f32 0.0, %v1777
    %1779 = vdwg.mxu0
    %v1780 = vand.u32 %v841, 4294901760
    %v1781 = vsub.f32 %v841, %v1780
    %v1782 = vand.u32 %v1781, 4294901760
    %v1783 = vsub.f32 %v1781, %v1782
    %v1784 = vand.u32 %v1783, 4294901760
    %1785 = vmatprep.subr.mxu0 %v1784
    %v1786 = vand.u32 %v840, 4294901760
    %v1787 = vsub.f32 %v840, %v1786
    %v1788 = vand.u32 %v1787, 4294901760
    %v1789 = vsub.f32 %v1787, %v1788
    %v1790 = vand.u32 %v1789, 4294901760
    %1791 = vmatpush1.msra.mxu0 %v1790
    %v1792 = vand.u32 %v849, 4294901760
    %v1793 = vsub.f32 %v849, %v1792
    %v1794 = vand.u32 %v1793, 4294901760
    %v1795 = vsub.f32 %v1793, %v1794
    %v1796 = vand.u32 %v1795, 4294901760
    %1797 = vmatprep.subr.mxu0 %v1796
    %v1798 = vand.u32 %v848, 4294901760
    %v1799 = vsub.f32 %v848, %v1798
    %v1800 = vand.u32 %v1799, 4294901760
    %v1801 = vsub.f32 %v1799, %v1800
    %v1802 = vand.u32 %v1801, 4294901760
    %1803 = vmatpush1.msra.mxu0 %v1802
    %v1804 = vand.u32 %v857, 4294901760
    %v1805 = vsub.f32 %v857, %v1804
    %v1806 = vand.u32 %v1805, 4294901760
    %v1807 = vsub.f32 %v1805, %v1806
    %v1808 = vand.u32 %v1807, 4294901760
    %1809 = vmatprep.subr.mxu0 %v1808
    %v1810 = vand.u32 %v856, 4294901760
    %v1811 = vsub.f32 %v856, %v1810
    %v1812 = vand.u32 %v1811, 4294901760
    %v1813 = vsub.f32 %v1811, %v1812
    %v1814 = vand.u32 %v1813, 4294901760
    %1815 = vmatpush1.msra.mxu0 %v1814
    %v1816 = vand.u32 %v865, 4294901760
    %v1817 = vsub.f32 %v865, %v1816
    %v1818 = vand.u32 %v1817, 4294901760
    %v1819 = vsub.f32 %v1817, %v1818
    %v1820 = vand.u32 %v1819, 4294901760
    %1821 = vmatprep.subr.mxu0 %v1820
    %v1822 = vand.u32 %v864, 4294901760
    %v1823 = vsub.f32 %v864, %v1822
    %v1824 = vand.u32 %v1823, 4294901760
    %v1825 = vsub.f32 %v1823, %v1824
    %v1826 = vand.u32 %v1825, 4294901760
    %1827 = vmatpush1.msra.mxu0 %v1826
    %v1828 = vand.u32 %v873, 4294901760
    %v1829 = vsub.f32 %v873, %v1828
    %v1830 = vand.u32 %v1829, 4294901760
    %v1831 = vsub.f32 %v1829, %v1830
    %v1832 = vand.u32 %v1831, 4294901760
    %1833 = vmatprep.subr.mxu0 %v1832
    %v1834 = vand.u32 %v872, 4294901760
    %v1835 = vsub.f32 %v872, %v1834
    %v1836 = vand.u32 %v1835, 4294901760
    %v1837 = vsub.f32 %v1835, %v1836
    %v1838 = vand.u32 %v1837, 4294901760
    %1839 = vmatpush1.msra.mxu0 %v1838
    %v1840 = vand.u32 %v881, 4294901760
    %v1841 = vsub.f32 %v881, %v1840
    %v1842 = vand.u32 %v1841, 4294901760
    %v1843 = vsub.f32 %v1841, %v1842
    %v1844 = vand.u32 %v1843, 4294901760
    %1845 = vmatprep.subr.mxu0 %v1844
    %v1846 = vand.u32 %v880, 4294901760
    %v1847 = vsub.f32 %v880, %v1846
    %v1848 = vand.u32 %v1847, 4294901760
    %v1849 = vsub.f32 %v1847, %v1848
    %v1850 = vand.u32 %v1849, 4294901760
    %1851 = vmatpush1.msra.mxu0 %v1850
    %v1852 = vand.u32 %v889, 4294901760
    %v1853 = vsub.f32 %v889, %v1852
    %v1854 = vand.u32 %v1853, 4294901760
    %v1855 = vsub.f32 %v1853, %v1854
    %v1856 = vand.u32 %v1855, 4294901760
    %1857 = vmatprep.subr.mxu0 %v1856
    %v1858 = vand.u32 %v888, 4294901760
    %v1859 = vsub.f32 %v888, %v1858
    %v1860 = vand.u32 %v1859, 4294901760
    %v1861 = vsub.f32 %v1859, %v1860
    %v1862 = vand.u32 %v1861, 4294901760
    %1863 = vmatpush1.msra.mxu0 %v1862
    %v1864 = vand.u32 %v897, 4294901760
    %v1865 = vsub.f32 %v897, %v1864
    %v1866 = vand.u32 %v1865, 4294901760
    %v1867 = vsub.f32 %v1865, %v1866
    %v1868 = vand.u32 %v1867, 4294901760
    %1869 = vmatprep.subr.mxu0 %v1868
    %v1870 = vand.u32 %v896, 4294901760
    %v1871 = vsub.f32 %v896, %v1870
    %v1872 = vand.u32 %v1871, 4294901760
    %v1873 = vsub.f32 %v1871, %v1872
    %v1874 = vand.u32 %v1873, 4294901760
    %1875 = vmatpush1.msra.mxu0 %v1874
    %v1876 = vand.u32 %v905, 4294901760
    %v1877 = vsub.f32 %v905, %v1876
    %v1878 = vand.u32 %v1877, 4294901760
    %v1879 = vsub.f32 %v1877, %v1878
    %v1880 = vand.u32 %v1879, 4294901760
    %1881 = vmatprep.subr.mxu0 %v1880
    %v1882 = vand.u32 %v904, 4294901760
    %v1883 = vsub.f32 %v904, %v1882
    %v1884 = vand.u32 %v1883, 4294901760
    %v1885 = vsub.f32 %v1883, %v1884
    %v1886 = vand.u32 %v1885, 4294901760
    %1887 = vmatpush1.msra.mxu0 %v1886
    %v1888 = vand.u32 %v913, 4294901760
    %v1889 = vsub.f32 %v913, %v1888
    %v1890 = vand.u32 %v1889, 4294901760
    %v1891 = vsub.f32 %v1889, %v1890
    %v1892 = vand.u32 %v1891, 4294901760
    %1893 = vmatprep.subr.mxu0 %v1892
    %v1894 = vand.u32 %v912, 4294901760
    %v1895 = vsub.f32 %v912, %v1894
    %v1896 = vand.u32 %v1895, 4294901760
    %v1897 = vsub.f32 %v1895, %v1896
    %v1898 = vand.u32 %v1897, 4294901760
    %1899 = vmatpush1.msra.mxu0 %v1898
    %1900 = vmatprep.subr.mxu0 0.0
    %1901 = vmatpush1.msra.mxu0 0.0
    %1902 = vmatprep.subr.mxu0 0.0
    %1903 = vmatpush1.msra.mxu0 0.0
    %1904 = vmatprep.subr.mxu0 0.0
    %1905 = vmatpush1.msra.mxu0 0.0
    %1906 = vmatprep.subr.mxu0 0.0
    %1907 = vmatpush1.msra.mxu0 0.0
    %1908 = vmatprep.subr.mxu0 0.0
    %1909 = vmatpush1.msra.mxu0 0.0
    %1910 = vmatprep.subr.mxu0 0.0
    %1911 = vmatpush1.msra.mxu0 0.0
    %1912 = vmatprep.subr.mxu0 0.0
    %1913 = vmatpush1.msra.mxu0 0.0
    %1914 = vmatprep.subr.mxu0 0.0
    %1915 = vmatpush1.msra.mxu0 0.0
    %1916 = vmatprep.subr.mxu0 0.0
    %1917 = vmatpush1.msra.mxu0 0.0
    %1918 = vmatprep.subr.mxu0 0.0
    %1919 = vmatpush1.msra.mxu0 0.0
    %1920 = vmatprep.subr.mxu0 0.0
    %1921 = vmatpush1.msra.mxu0 0.0
    %1922 = vmatprep.subr.mxu0 0.0
    %1923 = vmatpush1.msra.mxu0 0.0
    %1924 = vmatprep.subr.mxu0 0.0
    %1925 = vmatpush1.msra.mxu0 0.0
    %1926 = vmatprep.subr.mxu0 0.0
    %1927 = vmatpush1.msra.mxu0 0.0
    %1928 = vmatprep.subr.mxu0 0.0
    %1929 = vmatpush1.msra.mxu0 0.0
    %1930 = vmatprep.subr.mxu0 0.0
    %1931 = vmatpush1.msra.mxu0 0.0
    %1932 = vmatprep.subr.mxu0 0.0
    %1933 = vmatpush1.msra.mxu0 0.0
    %1934 = vmatprep.subr.mxu0 0.0
    %1935 = vmatpush1.msra.mxu0 0.0
    %1936 = vmatprep.subr.mxu0 0.0
    %1937 = vmatpush1.msra.mxu0 0.0
    %1938 = vmatprep.subr.mxu0 0.0
    %1939 = vmatpush1.msra.mxu0 0.0
    %1940 = vmatprep.subr.mxu0 0.0
    %1941 = vmatpush1.msra.mxu0 0.0
    %1942 = vmatprep.subr.mxu0 0.0
    %1943 = vmatpush1.msra.mxu0 0.0
    %1944 = vmatprep.mubr.f32.mxu0 0.0
    %v1945 = vand.u32 %v920, 4294901760
    %1946 = vmatmul.mubr.f32.gmra.mrb[0].mxu0 %v1945
    %v1947 = vpop.f32.mrb[0].mxu0
    %v1948 = vadd.f32 %v1765, %v1947
    %v1949 = vpop.f32.mrb[0].mxu0
    %v1950 = vadd.f32 %v1767, %v1949
    %1951 = vmatprep.mubr.f32.mxu0 0.0
    %v1952 = vand.u32 %v923, 4294901760
    %1953 = vmatmul.mubr.f32.gmra.mrb[0].mxu0 %v1952
    %v1954 = vpop.f32.mrb[0].mxu0
    %v1955 = vadd.f32 %v1776, %v1954
    %v1956 = vpop.f32.mrb[0].mxu0
    %v1957 = vadd.f32 %v1778, %v1956
    %1958 = vdwg.mxu0
    %v1959 = vand.u32 %v841, 4294901760
    %v1960 = vsub.f32 %v841, %v1959
    %1961 = vmatprep.subr.mxu0 %v1960
    %v1962 = vand.u32 %v840, 4294901760
    %v1963 = vsub.f32 %v840, %v1962
    %1964 = vmatpush1.msra.mxu0 %v1963
    %v1965 = vand.u32 %v849, 4294901760
    %v1966 = vsub.f32 %v849, %v1965
    %1967 = vmatprep.subr.mxu0 %v1966
    %v1968 = vand.u32 %v848, 4294901760
    %v1969 = vsub.f32 %v848, %v1968
    %1970 = vmatpush1.msra.mxu0 %v1969
    %v1971 = vand.u32 %v857, 4294901760
    %v1972 = vsub.f32 %v857, %v1971
    %1973 = vmatprep.subr.mxu0 %v1972
    %v1974 = vand.u32 %v856, 4294901760
    %v1975 = vsub.f32 %v856, %v1974
    %1976 = vmatpush1.msra.mxu0 %v1975
    %v1977 = vand.u32 %v865, 4294901760
    %v1978 = vsub.f32 %v865, %v1977
    %1979 = vmatprep.subr.mxu0 %v1978
    %v1980 = vand.u32 %v864, 4294901760
    %v1981 = vsub.f32 %v864, %v1980
    %1982 = vmatpush1.msra.mxu0 %v1981
    %v1983 = vand.u32 %v873, 4294901760
    %v1984 = vsub.f32 %v873, %v1983
    %1985 = vmatprep.subr.mxu0 %v1984
    %v1986 = vand.u32 %v872, 4294901760
    %v1987 = vsub.f32 %v872, %v1986
    %1988 = vmatpush1.msra.mxu0 %v1987
    %v1989 = vand.u32 %v881, 4294901760
    %v1990 = vsub.f32 %v881, %v1989
    %1991 = vmatprep.subr.mxu0 %v1990
    %v1992 = vand.u32 %v880, 4294901760
    %v1993 = vsub.f32 %v880, %v1992
    %1994 = vmatpush1.msra.mxu0 %v1993
    %v1995 = vand.u32 %v889, 4294901760
    %v1996 = vsub.f32 %v889, %v1995
    %1997 = vmatprep.subr.mxu0 %v1996
    %v1998 = vand.u32 %v888, 4294901760
    %v1999 = vsub.f32 %v888, %v1998
    %2000 = vmatpush1.msra.mxu0 %v1999
    %v2001 = vand.u32 %v897, 4294901760
    %v2002 = vsub.f32 %v897, %v2001
    %2003 = vmatprep.subr.mxu0 %v2002
    %v2004 = vand.u32 %v896, 4294901760
    %v2005 = vsub.f32 %v896, %v2004
    %2006 = vmatpush1.msra.mxu0 %v2005
    %v2007 = vand.u32 %v905, 4294901760
    %v2008 = vsub.f32 %v905, %v2007
    %2009 = vmatprep.subr.mxu0 %v2008
    %v2010 = vand.u32 %v904, 4294901760
    %v2011 = vsub.f32 %v904, %v2010
    %2012 = vmatpush1.msra.mxu0 %v2011
    %v2013 = vand.u32 %v913, 4294901760
    %v2014 = vsub.f32 %v913, %v2013
    %2015 = vmatprep.subr.mxu0 %v2014
    %v2016 = vand.u32 %v912, 4294901760
    %v2017 = vsub.f32 %v912, %v2016
    %2018 = vmatpush1.msra.mxu0 %v2017
    %2019 = vmatprep.subr.mxu0 0.0
    %2020 = vmatpush1.msra.mxu0 0.0
    %2021 = vmatprep.subr.mxu0 0.0
    %2022 = vmatpush1.msra.mxu0 0.0
    %2023 = vmatprep.subr.mxu0 0.0
    %2024 = vmatpush1.msra.mxu0 0.0
    %2025 = vmatprep.subr.mxu0 0.0
    %2026 = vmatpush1.msra.mxu0 0.0
    %2027 = vmatprep.subr.mxu0 0.0
    %2028 = vmatpush1.msra.mxu0 0.0
    %2029 = vmatprep.subr.mxu0 0.0
    %2030 = vmatpush1.msra.mxu0 0.0
    %2031 = vmatprep.subr.mxu0 0.0
    %2032 = vmatpush1.msra.mxu0 0.0
    %2033 = vmatprep.subr.mxu0 0.0
    %2034 = vmatpush1.msra.mxu0 0.0
    %2035 = vmatprep.subr.mxu0 0.0
    %2036 = vmatpush1.msra.mxu0 0.0
    %2037 = vmatprep.subr.mxu0 0.0
    %2038 = vmatpush1.msra.mxu0 0.0
    %2039 = vmatprep.subr.mxu0 0.0
    %2040 = vmatpush1.msra.mxu0 0.0
    %2041 = vmatprep.subr.mxu0 0.0
    %2042 = vmatpush1.msra.mxu0 0.0
    %2043 = vmatprep.subr.mxu0 0.0
    %2044 = vmatpush1.msra.mxu0 0.0
    %2045 = vmatprep.subr.mxu0 0.0
    %2046 = vmatpush1.msra.mxu0 0.0
    %2047 = vmatprep.subr.mxu0 0.0
    %2048 = vmatpush1.msra.mxu0 0.0
    %2049 = vmatprep.subr.mxu0 0.0
    %2050 = vmatpush1.msra.mxu0 0.0
    %2051 = vmatprep.subr.mxu0 0.0
    %2052 = vmatpush1.msra.mxu0 0.0
    %2053 = vmatprep.subr.mxu0 0.0
    %2054 = vmatpush1.msra.mxu0 0.0
    %2055 = vmatprep.subr.mxu0 0.0
    %2056 = vmatpush1.msra.mxu0 0.0
    %2057 = vmatprep.subr.mxu0 0.0
    %2058 = vmatpush1.msra.mxu0 0.0
    %2059 = vmatprep.subr.mxu0 0.0
    %2060 = vmatpush1.msra.mxu0 0.0
    %2061 = vmatprep.subr.mxu0 0.0
    %2062 = vmatpush1.msra.mxu0 0.0
    %2063 = vmatprep.mubr.f32.mxu0 0.0
    %v2064 = vand.u32 %v920, 4294901760
    %v2065 = vsub.f32 %v920, %v2064
    %2066 = vmatmul.mubr.f32.gmra.mrb[0].mxu0 %v2065
    %v2067 = vpop.f32.mrb[0].mxu0
    %v2068 = vadd.f32 %v1948, %v2067
    %v2069 = vpop.f32.mrb[0].mxu0
    %v2070 = vadd.f32 %v1950, %v2069
    %2071 = vmatprep.mubr.f32.mxu0 0.0
    %v2072 = vand.u32 %v923, 4294901760
    %v2073 = vsub.f32 %v923, %v2072
    %2074 = vmatmul.mubr.f32.gmra.mrb[0].mxu0 %v2073
    %v2075 = vpop.f32.mrb[0].mxu0
    %v2076 = vadd.f32 %v1955, %v2075
    %v2077 = vpop.f32.mrb[0].mxu0
    %v2078 = vadd.f32 %v1957, %v2077
    %2079 = vdwg.mxu0
    %v2080 = vand.u32 %v841, 4294901760
    %2081 = vmatprep.subr.mxu0 %v2080
    %v2082 = vand.u32 %v840, 4294901760
    %2083 = vmatpush1.msra.mxu0 %v2082
    %v2084 = vand.u32 %v849, 4294901760
    %2085 = vmatprep.subr.mxu0 %v2084
    %v2086 = vand.u32 %v848, 4294901760
    %2087 = vmatpush1.msra.mxu0 %v2086
    %v2088 = vand.u32 %v857, 4294901760
    %2089 = vmatprep.subr.mxu0 %v2088
    %v2090 = vand.u32 %v856, 4294901760
    %2091 = vmatpush1.msra.mxu0 %v2090
    %v2092 = vand.u32 %v865, 4294901760
    %2093 = vmatprep.subr.mxu0 %v2092
    %v2094 = vand.u32 %v864, 4294901760
    %2095 = vmatpush1.msra.mxu0 %v2094
    %v2096 = vand.u32 %v873, 4294901760
    %2097 = vmatprep.subr.mxu0 %v2096
    %v2098 = vand.u32 %v872, 4294901760
    %2099 = vmatpush1.msra.mxu0 %v2098
    %v2100 = vand.u32 %v881, 4294901760
    %2101 = vmatprep.subr.mxu0 %v2100
    %v2102 = vand.u32 %v880, 4294901760
    %2103 = vmatpush1.msra.mxu0 %v2102
    %v2104 = vand.u32 %v889, 4294901760
    %2105 = vmatprep.subr.mxu0 %v2104
    %v2106 = vand.u32 %v888, 4294901760
    %2107 = vmatpush1.msra.mxu0 %v2106
    %v2108 = vand.u32 %v897, 4294901760
    %2109 = vmatprep.subr.mxu0 %v2108
    %v2110 = vand.u32 %v896, 4294901760
    %2111 = vmatpush1.msra.mxu0 %v2110
    %v2112 = vand.u32 %v905, 4294901760
    %2113 = vmatprep.subr.mxu0 %v2112
    %v2114 = vand.u32 %v904, 4294901760
    %2115 = vmatpush1.msra.mxu0 %v2114
    %v2116 = vand.u32 %v913, 4294901760
    %2117 = vmatprep.subr.mxu0 %v2116
    %v2118 = vand.u32 %v912, 4294901760
    %2119 = vmatpush1.msra.mxu0 %v2118
    %2120 = vmatprep.subr.mxu0 0.0
    %2121 = vmatpush1.msra.mxu0 0.0
    %2122 = vmatprep.subr.mxu0 0.0
    %2123 = vmatpush1.msra.mxu0 0.0
    %2124 = vmatprep.subr.mxu0 0.0
    %2125 = vmatpush1.msra.mxu0 0.0
    %2126 = vmatprep.subr.mxu0 0.0
    %2127 = vmatpush1.msra.mxu0 0.0
    %2128 = vmatprep.subr.mxu0 0.0
    %2129 = vmatpush1.msra.mxu0 0.0
    %2130 = vmatprep.subr.mxu0 0.0
    %2131 = vmatpush1.msra.mxu0 0.0
    %2132 = vmatprep.subr.mxu0 0.0
    %2133 = vmatpush1.msra.mxu0 0.0
    %2134 = vmatprep.subr.mxu0 0.0
    %2135 = vmatpush1.msra.mxu0 0.0
    %2136 = vmatprep.subr.mxu0 0.0
    %2137 = vmatpush1.msra.mxu0 0.0
    %2138 = vmatprep.subr.mxu0 0.0
    %2139 = vmatpush1.msra.mxu0 0.0
    %2140 = vmatprep.subr.mxu0 0.0
    %2141 = vmatpush1.msra.mxu0 0.0
    %2142 = vmatprep.subr.mxu0 0.0
    %2143 = vmatpush1.msra.mxu0 0.0
    %2144 = vmatprep.subr.mxu0 0.0
    %2145 = vmatpush1.msra.mxu0 0.0
    %2146 = vmatprep.subr.mxu0 0.0
    %2147 = vmatpush1.msra.mxu0 0.0
    %2148 = vmatprep.subr.mxu0 0.0
    %2149 = vmatpush1.msra.mxu0 0.0
    %2150 = vmatprep.subr.mxu0 0.0
    %2151 = vmatpush1.msra.mxu0 0.0
    %2152 = vmatprep.subr.mxu0 0.0
    %2153 = vmatpush1.msra.mxu0 0.0
    %2154 = vmatprep.subr.mxu0 0.0
    %2155 = vmatpush1.msra.mxu0 0.0
    %2156 = vmatprep.subr.mxu0 0.0
    %2157 = vmatpush1.msra.mxu0 0.0
    %2158 = vmatprep.subr.mxu0 0.0
    %2159 = vmatpush1.msra.mxu0 0.0
    %2160 = vmatprep.subr.mxu0 0.0
    %2161 = vmatpush1.msra.mxu0 0.0
    %2162 = vmatprep.subr.mxu0 0.0
    %2163 = vmatpush1.msra.mxu0 0.0
    %2164 = vmatprep.mubr.f32.mxu0 0.0
    %v2165 = vand.u32 %v920, 4294901760
    %v2166 = vsub.f32 %v920, %v2165
    %v2167 = vand.u32 %v2166, 4294901760
    %2168 = vmatmul.mubr.f32.gmra.mrb[0].mxu0 %v2167
    %v2169 = vpop.f32.mrb[0].mxu0
    %v2170 = vadd.f32 %v2068, %v2169
    %v2171 = vpop.f32.mrb[0].mxu0
    %v2172 = vadd.f32 %v2070, %v2171
    %2173 = vmatprep.mubr.f32.mxu0 0.0
    %v2174 = vand.u32 %v923, 4294901760
    %v2175 = vsub.f32 %v923, %v2174
    %v2176 = vand.u32 %v2175, 4294901760
    %2177 = vmatmul.mubr.f32.gmra.mrb[0].mxu0 %v2176
    %v2178 = vpop.f32.mrb[0].mxu0
    %v2179 = vadd.f32 %v2076, %v2178
    %v2180 = vpop.f32.mrb[0].mxu0
    %v2181 = vadd.f32 %v2078, %v2180
    %2182 = vdwg.mxu0
    %v2183 = vand.u32 %v841, 4294901760
    %v2184 = vsub.f32 %v841, %v2183
    %v2185 = vand.u32 %v2184, 4294901760
    %2186 = vmatprep.subr.mxu0 %v2185
    %v2187 = vand.u32 %v840, 4294901760
    %v2188 = vsub.f32 %v840, %v2187
    %v2189 = vand.u32 %v2188, 4294901760
    %2190 = vmatpush1.msra.mxu0 %v2189
    %v2191 = vand.u32 %v849, 4294901760
    %v2192 = vsub.f32 %v849, %v2191
    %v2193 = vand.u32 %v2192, 4294901760
    %2194 = vmatprep.subr.mxu0 %v2193
    %v2195 = vand.u32 %v848, 4294901760
    %v2196 = vsub.f32 %v848, %v2195
    %v2197 = vand.u32 %v2196, 4294901760
    %2198 = vmatpush1.msra.mxu0 %v2197
    %v2199 = vand.u32 %v857, 4294901760
    %v2200 = vsub.f32 %v857, %v2199
    %v2201 = vand.u32 %v2200, 4294901760
    %2202 = vmatprep.subr.mxu0 %v2201
    %v2203 = vand.u32 %v856, 4294901760
    %v2204 = vsub.f32 %v856, %v2203
    %v2205 = vand.u32 %v2204, 4294901760
    %2206 = vmatpush1.msra.mxu0 %v2205
    %v2207 = vand.u32 %v865, 4294901760
    %v2208 = vsub.f32 %v865, %v2207
    %v2209 = vand.u32 %v2208, 4294901760
    %2210 = vmatprep.subr.mxu0 %v2209
    %v2211 = vand.u32 %v864, 4294901760
    %v2212 = vsub.f32 %v864, %v2211
    %v2213 = vand.u32 %v2212, 4294901760
    %2214 = vmatpush1.msra.mxu0 %v2213
    %v2215 = vand.u32 %v873, 4294901760
    %v2216 = vsub.f32 %v873, %v2215
    %v2217 = vand.u32 %v2216, 4294901760
    %2218 = vmatprep.subr.mxu0 %v2217
    %v2219 = vand.u32 %v872, 4294901760
    %v2220 = vsub.f32 %v872, %v2219
    %v2221 = vand.u32 %v2220, 4294901760
    %2222 = vmatpush1.msra.mxu0 %v2221
    %v2223 = vand.u32 %v881, 4294901760
    %v2224 = vsub.f32 %v881, %v2223
    %v2225 = vand.u32 %v2224, 4294901760
    %2226 = vmatprep.subr.mxu0 %v2225
    %v2227 = vand.u32 %v880, 4294901760
    %v2228 = vsub.f32 %v880, %v2227
    %v2229 = vand.u32 %v2228, 4294901760
    %2230 = vmatpush1.msra.mxu0 %v2229
    %v2231 = vand.u32 %v889, 4294901760
    %v2232 = vsub.f32 %v889, %v2231
    %v2233 = vand.u32 %v2232, 4294901760
    %2234 = vmatprep.subr.mxu0 %v2233
    %v2235 = vand.u32 %v888, 4294901760
    %v2236 = vsub.f32 %v888, %v2235
    %v2237 = vand.u32 %v2236, 4294901760
    %2238 = vmatpush1.msra.mxu0 %v2237
    %v2239 = vand.u32 %v897, 4294901760
    %v2240 = vsub.f32 %v897, %v2239
    %v2241 = vand.u32 %v2240, 4294901760
    %2242 = vmatprep.subr.mxu0 %v2241
    %v2243 = vand.u32 %v896, 4294901760
    %v2244 = vsub.f32 %v896, %v2243
    %v2245 = vand.u32 %v2244, 4294901760
    %2246 = vmatpush1.msra.mxu0 %v2245
    %v2247 = vand.u32 %v905, 4294901760
    %v2248 = vsub.f32 %v905, %v2247
    %v2249 = vand.u32 %v2248, 4294901760
    %2250 = vmatprep.subr.mxu0 %v2249
    %v2251 = vand.u32 %v904, 4294901760
    %v2252 = vsub.f32 %v904, %v2251
    %v2253 = vand.u32 %v2252, 4294901760
    %2254 = vmatpush1.msra.mxu0 %v2253
    %v2255 = vand.u32 %v913, 4294901760
    %v2256 = vsub.f32 %v913, %v2255
    %v2257 = vand.u32 %v2256, 4294901760
    %2258 = vmatprep.subr.mxu0 %v2257
    %v2259 = vand.u32 %v912, 4294901760
    %v2260 = vsub.f32 %v912, %v2259
    %v2261 = vand.u32 %v2260, 4294901760
    %2262 = vmatpush1.msra.mxu0 %v2261
    %2263 = vmatprep.subr.mxu0 0.0
    %2264 = vmatpush1.msra.mxu0 0.0
    %2265 = vmatprep.subr.mxu0 0.0
    %2266 = vmatpush1.msra.mxu0 0.0
    %2267 = vmatprep.subr.mxu0 0.0
    %2268 = vmatpush1.msra.mxu0 0.0
    %2269 = vmatprep.subr.mxu0 0.0
    %2270 = vmatpush1.msra.mxu0 0.0
    %2271 = vmatprep.subr.mxu0 0.0
    %2272 = vmatpush1.msra.mxu0 0.0
    %2273 = vmatprep.subr.mxu0 0.0
    %2274 = vmatpush1.msra.mxu0 0.0
    %2275 = vmatprep.subr.mxu0 0.0
    %2276 = vmatpush1.msra.mxu0 0.0
    %2277 = vmatprep.subr.mxu0 0.0
    %2278 = vmatpush1.msra.mxu0 0.0
    %2279 = vmatprep.subr.mxu0 0.0
    %2280 = vmatpush1.msra.mxu0 0.0
    %2281 = vmatprep.subr.mxu0 0.0
    %2282 = vmatpush1.msra.mxu0 0.0
    %2283 = vmatprep.subr.mxu0 0.0
    %2284 = vmatpush1.msra.mxu0 0.0
    %2285 = vmatprep.subr.mxu0 0.0
    %2286 = vmatpush1.msra.mxu0 0.0
    %2287 = vmatprep.subr.mxu0 0.0
    %2288 = vmatpush1.msra.mxu0 0.0
    %2289 = vmatprep.subr.mxu0 0.0
    %2290 = vmatpush1.msra.mxu0 0.0
    %2291 = vmatprep.subr.mxu0 0.0
    %2292 = vmatpush1.msra.mxu0 0.0
    %2293 = vmatprep.subr.mxu0 0.0
    %2294 = vmatpush1.msra.mxu0 0.0
    %2295 = vmatprep.subr.mxu0 0.0
    %2296 = vmatpush1.msra.mxu0 0.0
    %2297 = vmatprep.subr.mxu0 0.0
    %2298 = vmatpush1.msra.mxu0 0.0
    %2299 = vmatprep.subr.mxu0 0.0
    %2300 = vmatpush1.msra.mxu0 0.0
    %2301 = vmatprep.subr.mxu0 0.0
    %2302 = vmatpush1.msra.mxu0 0.0
    %2303 = vmatprep.subr.mxu0 0.0
    %2304 = vmatpush1.msra.mxu0 0.0
    %2305 = vmatprep.subr.mxu0 0.0
    %2306 = vmatpush1.msra.mxu0 0.0
    %2307 = vmatprep.mubr.f32.mxu0 0.0
    %v2308 = vand.u32 %v920, 4294901760
    %2309 = vmatmul.mubr.f32.gmra.mrb[0].mxu0 %v2308
    %v2310 = vpop.f32.mrb[0].mxu0
    %v2311 = vadd.f32 %v2170, %v2310
    %v2312 = vpop.f32.mrb[0].mxu0
    %v2313 = vadd.f32 %v2172, %v2312
    %2314 = vmatprep.mubr.f32.mxu0 0.0
    %v2315 = vand.u32 %v923, 4294901760
    %2316 = vmatmul.mubr.f32.gmra.mrb[0].mxu0 %v2315
    %v2317 = vpop.f32.mrb[0].mxu0
    %v2318 = vadd.f32 %v2179, %v2317
    %v2319 = vpop.f32.mrb[0].mxu0
    %v2320 = vadd.f32 %v2181, %v2319
    %2321 = vdwg.mxu0
    %v2322 = vand.u32 %v841, 4294901760
    %2323 = vmatprep.subr.mxu0 %v2322
    %v2324 = vand.u32 %v840, 4294901760
    %2325 = vmatpush1.msra.mxu0 %v2324
    %v2326 = vand.u32 %v849, 4294901760
    %2327 = vmatprep.subr.mxu0 %v2326
    %v2328 = vand.u32 %v848, 4294901760
    %2329 = vmatpush1.msra.mxu0 %v2328
    %v2330 = vand.u32 %v857, 4294901760
    %2331 = vmatprep.subr.mxu0 %v2330
    %v2332 = vand.u32 %v856, 4294901760
    %2333 = vmatpush1.msra.mxu0 %v2332
    %v2334 = vand.u32 %v865, 4294901760
    %2335 = vmatprep.subr.mxu0 %v2334
    %v2336 = vand.u32 %v864, 4294901760
    %2337 = vmatpush1.msra.mxu0 %v2336
    %v2338 = vand.u32 %v873, 4294901760
    %2339 = vmatprep.subr.mxu0 %v2338
    %v2340 = vand.u32 %v872, 4294901760
    %2341 = vmatpush1.msra.mxu0 %v2340
    %v2342 = vand.u32 %v881, 4294901760
    %2343 = vmatprep.subr.mxu0 %v2342
    %v2344 = vand.u32 %v880, 4294901760
    %2345 = vmatpush1.msra.mxu0 %v2344
    %v2346 = vand.u32 %v889, 4294901760
    %2347 = vmatprep.subr.mxu0 %v2346
    %v2348 = vand.u32 %v888, 4294901760
    %2349 = vmatpush1.msra.mxu0 %v2348
    %v2350 = vand.u32 %v897, 4294901760
    %2351 = vmatprep.subr.mxu0 %v2350
    %v2352 = vand.u32 %v896, 4294901760
    %2353 = vmatpush1.msra.mxu0 %v2352
    %v2354 = vand.u32 %v905, 4294901760
    %2355 = vmatprep.subr.mxu0 %v2354
    %v2356 = vand.u32 %v904, 4294901760
    %2357 = vmatpush1.msra.mxu0 %v2356
    %v2358 = vand.u32 %v913, 4294901760
    %2359 = vmatprep.subr.mxu0 %v2358
    %v2360 = vand.u32 %v912, 4294901760
    %2361 = vmatpush1.msra.mxu0 %v2360
    %2362 = vmatprep.subr.mxu0 0.0
    %2363 = vmatpush1.msra.mxu0 0.0
    %2364 = vmatprep.subr.mxu0 0.0
    %2365 = vmatpush1.msra.mxu0 0.0
    %2366 = vmatprep.subr.mxu0 0.0
    %2367 = vmatpush1.msra.mxu0 0.0
    %2368 = vmatprep.subr.mxu0 0.0
    %2369 = vmatpush1.msra.mxu0 0.0
    %2370 = vmatprep.subr.mxu0 0.0
    %2371 = vmatpush1.msra.mxu0 0.0
    %2372 = vmatprep.subr.mxu0 0.0
    %2373 = vmatpush1.msra.mxu0 0.0
    %2374 = vmatprep.subr.mxu0 0.0
    %2375 = vmatpush1.msra.mxu0 0.0
    %2376 = vmatprep.subr.mxu0 0.0
    %2377 = vmatpush1.msra.mxu0 0.0
    %2378 = vmatprep.subr.mxu0 0.0
    %2379 = vmatpush1.msra.mxu0 0.0
    %2380 = vmatprep.subr.mxu0 0.0
    %2381 = vmatpush1.msra.mxu0 0.0
    %2382 = vmatprep.subr.mxu0 0.0
    %2383 = vmatpush1.msra.mxu0 0.0
    %2384 = vmatprep.subr.mxu0 0.0
    %2385 = vmatpush1.msra.mxu0 0.0
    %2386 = vmatprep.subr.mxu0 0.0
    %2387 = vmatpush1.msra.mxu0 0.0
    %2388 = vmatprep.subr.mxu0 0.0
    %2389 = vmatpush1.msra.mxu0 0.0
    %2390 = vmatprep.subr.mxu0 0.0
    %2391 = vmatpush1.msra.mxu0 0.0
    %2392 = vmatprep.subr.mxu0 0.0
    %2393 = vmatpush1.msra.mxu0 0.0
    %2394 = vmatprep.subr.mxu0 0.0
    %2395 = vmatpush1.msra.mxu0 0.0
    %2396 = vmatprep.subr.mxu0 0.0
    %2397 = vmatpush1.msra.mxu0 0.0
    %2398 = vmatprep.subr.mxu0 0.0
    %2399 = vmatpush1.msra.mxu0 0.0
    %2400 = vmatprep.subr.mxu0 0.0
    %2401 = vmatpush1.msra.mxu0 0.0
    %2402 = vmatprep.subr.mxu0 0.0
    %2403 = vmatpush1.msra.mxu0 0.0
    %2404 = vmatprep.subr.mxu0 0.0
    %2405 = vmatpush1.msra.mxu0 0.0
    %2406 = vmatprep.mubr.f32.mxu0 0.0
    %v2407 = vand.u32 %v920, 4294901760
    %2408 = vmatmul.mubr.f32.gmra.mrb[0].mxu0 %v2407
    %v2409 = vpop.f32.mrb[0].mxu0
    %v2410 = vadd.f32 %v2311, %v2409
    %v2411 = vpop.f32.mrb[0].mxu0
    %v2412 = vadd.f32 %v2313, %v2411
    %2413 = vmatprep.mubr.f32.mxu0 0.0
    %v2414 = vand.u32 %v923, 4294901760
    %2415 = vmatmul.mubr.f32.gmra.mrb[0].mxu0 %v2414
    %v2416 = vpop.f32.mrb[0].mxu0
    %v2417 = vadd.f32 %v2318, %v2416
    %v2418 = vpop.f32.mrb[0].mxu0
    %v2419 = vadd.f32 %v2320, %v2418
    %2420 = vdwg.mxu0
    %v2421 = vand.u32 %v843, 4294901760
    %2422 = vmatprep.subr.mxu0 %v2421
    %v2423 = vand.u32 %v842, 4294901760
    %2424 = vmatpush1.msra.mxu0 %v2423
    %v2425 = vand.u32 %v851, 4294901760
    %2426 = vmatprep.subr.mxu0 %v2425
    %v2427 = vand.u32 %v850, 4294901760
    %2428 = vmatpush1.msra.mxu0 %v2427
    %v2429 = vand.u32 %v859, 4294901760
    %2430 = vmatprep.subr.mxu0 %v2429
    %v2431 = vand.u32 %v858, 4294901760
    %2432 = vmatpush1.msra.mxu0 %v2431
    %v2433 = vand.u32 %v867, 4294901760
    %2434 = vmatprep.subr.mxu0 %v2433
    %v2435 = vand.u32 %v866, 4294901760
    %2436 = vmatpush1.msra.mxu0 %v2435
    %v2437 = vand.u32 %v875, 4294901760
    %2438 = vmatprep.subr.mxu0 %v2437
    %v2439 = vand.u32 %v874, 4294901760
    %2440 = vmatpush1.msra.mxu0 %v2439
    %v2441 = vand.u32 %v883, 4294901760
    %2442 = vmatprep.subr.mxu0 %v2441
    %v2443 = vand.u32 %v882, 4294901760
    %2444 = vmatpush1.msra.mxu0 %v2443
    %v2445 = vand.u32 %v891, 4294901760
    %2446 = vmatprep.subr.mxu0 %v2445
    %v2447 = vand.u32 %v890, 4294901760
    %2448 = vmatpush1.msra.mxu0 %v2447
    %v2449 = vand.u32 %v899, 4294901760
    %2450 = vmatprep.subr.mxu0 %v2449
    %v2451 = vand.u32 %v898, 4294901760
    %2452 = vmatpush1.msra.mxu0 %v2451
    %v2453 = vand.u32 %v907, 4294901760
    %2454 = vmatprep.subr.mxu0 %v2453
    %v2455 = vand.u32 %v906, 4294901760
    %2456 = vmatpush1.msra.mxu0 %v2455
    %v2457 = vand.u32 %v915, 4294901760
    %2458 = vmatprep.subr.mxu0 %v2457
    %v2459 = vand.u32 %v914, 4294901760
    %2460 = vmatpush1.msra.mxu0 %v2459
    %2461 = vmatprep.subr.mxu0 0.0
    %2462 = vmatpush1.msra.mxu0 0.0
    %2463 = vmatprep.subr.mxu0 0.0
    %2464 = vmatpush1.msra.mxu0 0.0
    %2465 = vmatprep.subr.mxu0 0.0
    %2466 = vmatpush1.msra.mxu0 0.0
    %2467 = vmatprep.subr.mxu0 0.0
    %2468 = vmatpush1.msra.mxu0 0.0
    %2469 = vmatprep.subr.mxu0 0.0
    %2470 = vmatpush1.msra.mxu0 0.0
    %2471 = vmatprep.subr.mxu0 0.0
    %2472 = vmatpush1.msra.mxu0 0.0
    %2473 = vmatprep.subr.mxu0 0.0
    %2474 = vmatpush1.msra.mxu0 0.0
    %2475 = vmatprep.subr.mxu0 0.0
    %2476 = vmatpush1.msra.mxu0 0.0
    %2477 = vmatprep.subr.mxu0 0.0
    %2478 = vmatpush1.msra.mxu0 0.0
    %2479 = vmatprep.subr.mxu0 0.0
    %2480 = vmatpush1.msra.mxu0 0.0
    %2481 = vmatprep.subr.mxu0 0.0
    %2482 = vmatpush1.msra.mxu0 0.0
    %2483 = vmatprep.subr.mxu0 0.0
    %2484 = vmatpush1.msra.mxu0 0.0
    %2485 = vmatprep.subr.mxu0 0.0
    %2486 = vmatpush1.msra.mxu0 0.0
    %2487 = vmatprep.subr.mxu0 0.0
    %2488 = vmatpush1.msra.mxu0 0.0
    %2489 = vmatprep.subr.mxu0 0.0
    %2490 = vmatpush1.msra.mxu0 0.0
    %2491 = vmatprep.subr.mxu0 0.0
    %2492 = vmatpush1.msra.mxu0 0.0
    %2493 = vmatprep.subr.mxu0 0.0
    %2494 = vmatpush1.msra.mxu0 0.0
    %2495 = vmatprep.subr.mxu0 0.0
    %2496 = vmatpush1.msra.mxu0 0.0
    %2497 = vmatprep.subr.mxu0 0.0
    %2498 = vmatpush1.msra.mxu0 0.0
    %2499 = vmatprep.subr.mxu0 0.0
    %2500 = vmatpush1.msra.mxu0 0.0
    %2501 = vmatprep.subr.mxu0 0.0
    %2502 = vmatpush1.msra.mxu0 0.0
    %2503 = vmatprep.subr.mxu0 0.0
    %2504 = vmatpush1.msra.mxu0 0.0
    %2505 = vmatprep.mubr.f32.mxu0 0.0
    %v2506 = vand.u32 %v920, 4294901760
    %v2507 = vsub.f32 %v920, %v2506
    %v2508 = vand.u32 %v2507, 4294901760
    %v2509 = vsub.f32 %v2507, %v2508
    %v2510 = vand.u32 %v2509, 4294901760
    %2511 = vmatmul.mubr.f32.gmra.mrb[0].mxu0 %v2510
    %v2512 = vpop.f32.mrb[0].mxu0
    %v2513 = vadd.f32 0.0, %v2512
    %v2514 = vpop.f32.mrb[0].mxu0
    %v2515 = vadd.f32 0.0, %v2514
    %2516 = vmatprep.mubr.f32.mxu0 0.0
    %v2517 = vand.u32 %v923, 4294901760
    %v2518 = vsub.f32 %v923, %v2517
    %v2519 = vand.u32 %v2518, 4294901760
    %v2520 = vsub.f32 %v2518, %v2519
    %v2521 = vand.u32 %v2520, 4294901760
    %2522 = vmatmul.mubr.f32.gmra.mrb[0].mxu0 %v2521
    %v2523 = vpop.f32.mrb[0].mxu0
    %v2524 = vadd.f32 0.0, %v2523
    %v2525 = vpop.f32.mrb[0].mxu0
    %v2526 = vadd.f32 0.0, %v2525
    %2527 = vdwg.mxu0
    %v2528 = vand.u32 %v843, 4294901760
    %v2529 = vsub.f32 %v843, %v2528
    %v2530 = vand.u32 %v2529, 4294901760
    %v2531 = vsub.f32 %v2529, %v2530
    %v2532 = vand.u32 %v2531, 4294901760
    %2533 = vmatprep.subr.mxu0 %v2532
    %v2534 = vand.u32 %v842, 4294901760
    %v2535 = vsub.f32 %v842, %v2534
    %v2536 = vand.u32 %v2535, 4294901760
    %v2537 = vsub.f32 %v2535, %v2536
    %v2538 = vand.u32 %v2537, 4294901760
    %2539 = vmatpush1.msra.mxu0 %v2538
    %v2540 = vand.u32 %v851, 4294901760
    %v2541 = vsub.f32 %v851, %v2540
    %v2542 = vand.u32 %v2541, 4294901760
    %v2543 = vsub.f32 %v2541, %v2542
    %v2544 = vand.u32 %v2543, 4294901760
    %2545 = vmatprep.subr.mxu0 %v2544
    %v2546 = vand.u32 %v850, 4294901760
    %v2547 = vsub.f32 %v850, %v2546
    %v2548 = vand.u32 %v2547, 4294901760
    %v2549 = vsub.f32 %v2547, %v2548
    %v2550 = vand.u32 %v2549, 4294901760
    %2551 = vmatpush1.msra.mxu0 %v2550
    %v2552 = vand.u32 %v859, 4294901760
    %v2553 = vsub.f32 %v859, %v2552
    %v2554 = vand.u32 %v2553, 4294901760
    %v2555 = vsub.f32 %v2553, %v2554
    %v2556 = vand.u32 %v2555, 4294901760
    %2557 = vmatprep.subr.mxu0 %v2556
    %v2558 = vand.u32 %v858, 4294901760
    %v2559 = vsub.f32 %v858, %v2558
    %v2560 = vand.u32 %v2559, 4294901760
    %v2561 = vsub.f32 %v2559, %v2560
    %v2562 = vand.u32 %v2561, 4294901760
    %2563 = vmatpush1.msra.mxu0 %v2562
    %v2564 = vand.u32 %v867, 4294901760
    %v2565 = vsub.f32 %v867, %v2564
    %v2566 = vand.u32 %v2565, 4294901760
    %v2567 = vsub.f32 %v2565, %v2566
    %v2568 = vand.u32 %v2567, 4294901760
    %2569 = vmatprep.subr.mxu0 %v2568
    %v2570 = vand.u32 %v866, 4294901760
    %v2571 = vsub.f32 %v866, %v2570
    %v2572 = vand.u32 %v2571, 4294901760
    %v2573 = vsub.f32 %v2571, %v2572
    %v2574 = vand.u32 %v2573, 4294901760
    %2575 = vmatpush1.msra.mxu0 %v2574
    %v2576 = vand.u32 %v875, 4294901760
    %v2577 = vsub.f32 %v875, %v2576
    %v2578 = vand.u32 %v2577, 4294901760
    %v2579 = vsub.f32 %v2577, %v2578
    %v2580 = vand.u32 %v2579, 4294901760
    %2581 = vmatprep.subr.mxu0 %v2580
    %v2582 = vand.u32 %v874, 4294901760
    %v2583 = vsub.f32 %v874, %v2582
    %v2584 = vand.u32 %v2583, 4294901760
    %v2585 = vsub.f32 %v2583, %v2584
    %v2586 = vand.u32 %v2585, 4294901760
    %2587 = vmatpush1.msra.mxu0 %v2586
    %v2588 = vand.u32 %v883, 4294901760
    %v2589 = vsub.f32 %v883, %v2588
    %v2590 = vand.u32 %v2589, 4294901760
    %v2591 = vsub.f32 %v2589, %v2590
    %v2592 = vand.u32 %v2591, 4294901760
    %2593 = vmatprep.subr.mxu0 %v2592
    %v2594 = vand.u32 %v882, 4294901760
    %v2595 = vsub.f32 %v882, %v2594
    %v2596 = vand.u32 %v2595, 4294901760
    %v2597 = vsub.f32 %v2595, %v2596
    %v2598 = vand.u32 %v2597, 4294901760
    %2599 = vmatpush1.msra.mxu0 %v2598
    %v2600 = vand.u32 %v891, 4294901760
    %v2601 = vsub.f32 %v891, %v2600
    %v2602 = vand.u32 %v2601, 4294901760
    %v2603 = vsub.f32 %v2601, %v2602
    %v2604 = vand.u32 %v2603, 4294901760
    %2605 = vmatprep.subr.mxu0 %v2604
    %v2606 = vand.u32 %v890, 4294901760
    %v2607 = vsub.f32 %v890, %v2606
    %v2608 = vand.u32 %v2607, 4294901760
    %v2609 = vsub.f32 %v2607, %v2608
    %v2610 = vand.u32 %v2609, 4294901760
    %2611 = vmatpush1.msra.mxu0 %v2610
    %v2612 = vand.u32 %v899, 4294901760
    %v2613 = vsub.f32 %v899, %v2612
    %v2614 = vand.u32 %v2613, 4294901760
    %v2615 = vsub.f32 %v2613, %v2614
    %v2616 = vand.u32 %v2615, 4294901760
    %2617 = vmatprep.subr.mxu0 %v2616
    %v2618 = vand.u32 %v898, 4294901760
    %v2619 = vsub.f32 %v898, %v2618
    %v2620 = vand.u32 %v2619, 4294901760
    %v2621 = vsub.f32 %v2619, %v2620
    %v2622 = vand.u32 %v2621, 4294901760
    %2623 = vmatpush1.msra.mxu0 %v2622
    %v2624 = vand.u32 %v907, 4294901760
    %v2625 = vsub.f32 %v907, %v2624
    %v2626 = vand.u32 %v2625, 4294901760
    %v2627 = vsub.f32 %v2625, %v2626
    %v2628 = vand.u32 %v2627, 4294901760
    %2629 = vmatprep.subr.mxu0 %v2628
    %v2630 = vand.u32 %v906, 4294901760
    %v2631 = vsub.f32 %v906, %v2630
    %v2632 = vand.u32 %v2631, 4294901760
    %v2633 = vsub.f32 %v2631, %v2632
    %v2634 = vand.u32 %v2633, 4294901760
    %2635 = vmatpush1.msra.mxu0 %v2634
    %v2636 = vand.u32 %v915, 4294901760
    %v2637 = vsub.f32 %v915, %v2636
    %v2638 = vand.u32 %v2637, 4294901760
    %v2639 = vsub.f32 %v2637, %v2638
    %v2640 = vand.u32 %v2639, 4294901760
    %2641 = vmatprep.subr.mxu0 %v2640
    %v2642 = vand.u32 %v914, 4294901760
    %v2643 = vsub.f32 %v914, %v2642
    %v2644 = vand.u32 %v2643, 4294901760
    %v2645 = vsub.f32 %v2643, %v2644
    %v2646 = vand.u32 %v2645, 4294901760
    %2647 = vmatpush1.msra.mxu0 %v2646
    %2648 = vmatprep.subr.mxu0 0.0
    %2649 = vmatpush1.msra.mxu0 0.0
    %2650 = vmatprep.subr.mxu0 0.0
    %2651 = vmatpush1.msra.mxu0 0.0
    %2652 = vmatprep.subr.mxu0 0.0
    %2653 = vmatpush1.msra.mxu0 0.0
    %2654 = vmatprep.subr.mxu0 0.0
    %2655 = vmatpush1.msra.mxu0 0.0
    %2656 = vmatprep.subr.mxu0 0.0
    %2657 = vmatpush1.msra.mxu0 0.0
    %2658 = vmatprep.subr.mxu0 0.0
    %2659 = vmatpush1.msra.mxu0 0.0
    %2660 = vmatprep.subr.mxu0 0.0
    %2661 = vmatpush1.msra.mxu0 0.0
    %2662 = vmatprep.subr.mxu0 0.0
    %2663 = vmatpush1.msra.mxu0 0.0
    %2664 = vmatprep.subr.mxu0 0.0
    %2665 = vmatpush1.msra.mxu0 0.0
    %2666 = vmatprep.subr.mxu0 0.0
    %2667 = vmatpush1.msra.mxu0 0.0
    %2668 = vmatprep.subr.mxu0 0.0
    %2669 = vmatpush1.msra.mxu0 0.0
    %2670 = vmatprep.subr.mxu0 0.0
    %2671 = vmatpush1.msra.mxu0 0.0
    %2672 = vmatprep.subr.mxu0 0.0
    %2673 = vmatpush1.msra.mxu0 0.0
    %2674 = vmatprep.subr.mxu0 0.0
    %2675 = vmatpush1.msra.mxu0 0.0
    %2676 = vmatprep.subr.mxu0 0.0
    %2677 = vmatpush1.msra.mxu0 0.0
    %2678 = vmatprep.subr.mxu0 0.0
    %2679 = vmatpush1.msra.mxu0 0.0
    %2680 = vmatprep.subr.mxu0 0.0
    %2681 = vmatpush1.msra.mxu0 0.0
    %2682 = vmatprep.subr.mxu0 0.0
    %2683 = vmatpush1.msra.mxu0 0.0
    %2684 = vmatprep.subr.mxu0 0.0
    %2685 = vmatpush1.msra.mxu0 0.0
    %2686 = vmatprep.subr.mxu0 0.0
    %2687 = vmatpush1.msra.mxu0 0.0
    %2688 = vmatprep.subr.mxu0 0.0
    %2689 = vmatpush1.msra.mxu0 0.0
    %2690 = vmatprep.subr.mxu0 0.0
    %2691 = vmatpush1.msra.mxu0 0.0
    %2692 = vmatprep.mubr.f32.mxu0 0.0
    %v2693 = vand.u32 %v920, 4294901760
    %2694 = vmatmul.mubr.f32.gmra.mrb[0].mxu0 %v2693
    %v2695 = vpop.f32.mrb[0].mxu0
    %v2696 = vadd.f32 %v2513, %v2695
    %v2697 = vpop.f32.mrb[0].mxu0
    %v2698 = vadd.f32 %v2515, %v2697
    %2699 = vmatprep.mubr.f32.mxu0 0.0
    %v2700 = vand.u32 %v923, 4294901760
    %2701 = vmatmul.mubr.f32.gmra.mrb[0].mxu0 %v2700
    %v2702 = vpop.f32.mrb[0].mxu0
    %v2703 = vadd.f32 %v2524, %v2702
    %v2704 = vpop.f32.mrb[0].mxu0
    %v2705 = vadd.f32 %v2526, %v2704
    %2706 = vdwg.mxu0
    %v2707 = vand.u32 %v843, 4294901760
    %v2708 = vsub.f32 %v843, %v2707
    %2709 = vmatprep.subr.mxu0 %v2708
    %v2710 = vand.u32 %v842, 4294901760
    %v2711 = vsub.f32 %v842, %v2710
    %2712 = vmatpush1.msra.mxu0 %v2711
    %v2713 = vand.u32 %v851, 4294901760
    %v2714 = vsub.f32 %v851, %v2713
    %2715 = vmatprep.subr.mxu0 %v2714
    %v2716 = vand.u32 %v850, 4294901760
    %v2717 = vsub.f32 %v850, %v2716
    %2718 = vmatpush1.msra.mxu0 %v2717
    %v2719 = vand.u32 %v859, 4294901760
    %v2720 = vsub.f32 %v859, %v2719
    %2721 = vmatprep.subr.mxu0 %v2720
    %v2722 = vand.u32 %v858, 4294901760
    %v2723 = vsub.f32 %v858, %v2722
    %2724 = vmatpush1.msra.mxu0 %v2723
    %v2725 = vand.u32 %v867, 4294901760
    %v2726 = vsub.f32 %v867, %v2725
    %2727 = vmatprep.subr.mxu0 %v2726
    %v2728 = vand.u32 %v866, 4294901760
    %v2729 = vsub.f32 %v866, %v2728
    %2730 = vmatpush1.msra.mxu0 %v2729
    %v2731 = vand.u32 %v875, 4294901760
    %v2732 = vsub.f32 %v875, %v2731
    %2733 = vmatprep.subr.mxu0 %v2732
    %v2734 = vand.u32 %v874, 4294901760
    %v2735 = vsub.f32 %v874, %v2734
    %2736 = vmatpush1.msra.mxu0 %v2735
    %v2737 = vand.u32 %v883, 4294901760
    %v2738 = vsub.f32 %v883, %v2737
    %2739 = vmatprep.subr.mxu0 %v2738
    %v2740 = vand.u32 %v882, 4294901760
    %v2741 = vsub.f32 %v882, %v2740
    %2742 = vmatpush1.msra.mxu0 %v2741
    %v2743 = vand.u32 %v891, 4294901760
    %v2744 = vsub.f32 %v891, %v2743
    %2745 = vmatprep.subr.mxu0 %v2744
    %v2746 = vand.u32 %v890, 4294901760
    %v2747 = vsub.f32 %v890, %v2746
    %2748 = vmatpush1.msra.mxu0 %v2747
    %v2749 = vand.u32 %v899, 4294901760
    %v2750 = vsub.f32 %v899, %v2749
    %2751 = vmatprep.subr.mxu0 %v2750
    %v2752 = vand.u32 %v898, 4294901760
    %v2753 = vsub.f32 %v898, %v2752
    %2754 = vmatpush1.msra.mxu0 %v2753
    %v2755 = vand.u32 %v907, 4294901760
    %v2756 = vsub.f32 %v907, %v2755
    %2757 = vmatprep.subr.mxu0 %v2756
    %v2758 = vand.u32 %v906, 4294901760
    %v2759 = vsub.f32 %v906, %v2758
    %2760 = vmatpush1.msra.mxu0 %v2759
    %v2761 = vand.u32 %v915, 4294901760
    %v2762 = vsub.f32 %v915, %v2761
    %2763 = vmatprep.subr.mxu0 %v2762
    %v2764 = vand.u32 %v914, 4294901760
    %v2765 = vsub.f32 %v914, %v2764
    %2766 = vmatpush1.msra.mxu0 %v2765
    %2767 = vmatprep.subr.mxu0 0.0
    %2768 = vmatpush1.msra.mxu0 0.0
    %2769 = vmatprep.subr.mxu0 0.0
    %2770 = vmatpush1.msra.mxu0 0.0
    %2771 = vmatprep.subr.mxu0 0.0
    %2772 = vmatpush1.msra.mxu0 0.0
    %2773 = vmatprep.subr.mxu0 0.0
    %2774 = vmatpush1.msra.mxu0 0.0
    %2775 = vmatprep.subr.mxu0 0.0
    %2776 = vmatpush1.msra.mxu0 0.0
    %2777 = vmatprep.subr.mxu0 0.0
    %2778 = vmatpush1.msra.mxu0 0.0
    %2779 = vmatprep.subr.mxu0 0.0
    %2780 = vmatpush1.msra.mxu0 0.0
    %2781 = vmatprep.subr.mxu0 0.0
    %2782 = vmatpush1.msra.mxu0 0.0
    %2783 = vmatprep.subr.mxu0 0.0
    %2784 = vmatpush1.msra.mxu0 0.0
    %2785 = vmatprep.subr.mxu0 0.0
    %2786 = vmatpush1.msra.mxu0 0.0
    %2787 = vmatprep.subr.mxu0 0.0
    %2788 = vmatpush1.msra.mxu0 0.0
    %2789 = vmatprep.subr.mxu0 0.0
    %2790 = vmatpush1.msra.mxu0 0.0
    %2791 = vmatprep.subr.mxu0 0.0
    %2792 = vmatpush1.msra.mxu0 0.0
    %2793 = vmatprep.subr.mxu0 0.0
    %2794 = vmatpush1.msra.mxu0 0.0
    %2795 = vmatprep.subr.mxu0 0.0
    %2796 = vmatpush1.msra.mxu0 0.0
    %2797 = vmatprep.subr.mxu0 0.0
    %2798 = vmatpush1.msra.mxu0 0.0
    %2799 = vmatprep.subr.mxu0 0.0
    %2800 = vmatpush1.msra.mxu0 0.0
    %2801 = vmatprep.subr.mxu0 0.0
    %2802 = vmatpush1.msra.mxu0 0.0
    %2803 = vmatprep.subr.mxu0 0.0
    %2804 = vmatpush1.msra.mxu0 0.0
    %2805 = vmatprep.subr.mxu0 0.0
    %2806 = vmatpush1.msra.mxu0 0.0
    %2807 = vmatprep.subr.mxu0 0.0
    %2808 = vmatpush1.msra.mxu0 0.0
    %2809 = vmatprep.subr.mxu0 0.0
    %2810 = vmatpush1.msra.mxu0 0.0
    %2811 = vmatprep.mubr.f32.mxu0 0.0
    %v2812 = vand.u32 %v920, 4294901760
    %v2813 = vsub.f32 %v920, %v2812
    %2814 = vmatmul.mubr.f32.gmra.mrb[0].mxu0 %v2813
    %v2815 = vpop.f32.mrb[0].mxu0
    %v2816 = vadd.f32 %v2696, %v2815
    %v2817 = vpop.f32.mrb[0].mxu0
    %v2818 = vadd.f32 %v2698, %v2817
    %2819 = vmatprep.mubr.f32.mxu0 0.0
    %v2820 = vand.u32 %v923, 4294901760
    %v2821 = vsub.f32 %v923, %v2820
    %2822 = vmatmul.mubr.f32.gmra.mrb[0].mxu0 %v2821
    %v2823 = vpop.f32.mrb[0].mxu0
    %v2824 = vadd.f32 %v2703, %v2823
    %v2825 = vpop.f32.mrb[0].mxu0
    %v2826 = vadd.f32 %v2705, %v2825
    %2827 = vdwg.mxu0
    %v2828 = vand.u32 %v843, 4294901760
    %2829 = vmatprep.subr.mxu0 %v2828
    %v2830 = vand.u32 %v842, 4294901760
    %2831 = vmatpush1.msra.mxu0 %v2830
    %v2832 = vand.u32 %v851, 4294901760
    %2833 = vmatprep.subr.mxu0 %v2832
    %v2834 = vand.u32 %v850, 4294901760
    %2835 = vmatpush1.msra.mxu0 %v2834
    %v2836 = vand.u32 %v859, 4294901760
    %2837 = vmatprep.subr.mxu0 %v2836
    %v2838 = vand.u32 %v858, 4294901760
    %2839 = vmatpush1.msra.mxu0 %v2838
    %v2840 = vand.u32 %v867, 4294901760
    %2841 = vmatprep.subr.mxu0 %v2840
    %v2842 = vand.u32 %v866, 4294901760
    %2843 = vmatpush1.msra.mxu0 %v2842
    %v2844 = vand.u32 %v875, 4294901760
    %2845 = vmatprep.subr.mxu0 %v2844
    %v2846 = vand.u32 %v874, 4294901760
    %2847 = vmatpush1.msra.mxu0 %v2846
    %v2848 = vand.u32 %v883, 4294901760
    %2849 = vmatprep.subr.mxu0 %v2848
    %v2850 = vand.u32 %v882, 4294901760
    %2851 = vmatpush1.msra.mxu0 %v2850
    %v2852 = vand.u32 %v891, 4294901760
    %2853 = vmatprep.subr.mxu0 %v2852
    %v2854 = vand.u32 %v890, 4294901760
    %2855 = vmatpush1.msra.mxu0 %v2854
    %v2856 = vand.u32 %v899, 4294901760
    %2857 = vmatprep.subr.mxu0 %v2856
    %v2858 = vand.u32 %v898, 4294901760
    %2859 = vmatpush1.msra.mxu0 %v2858
    %v2860 = vand.u32 %v907, 4294901760
    %2861 = vmatprep.subr.mxu0 %v2860
    %v2862 = vand.u32 %v906, 4294901760
    %2863 = vmatpush1.msra.mxu0 %v2862
    %v2864 = vand.u32 %v915, 4294901760
    %2865 = vmatprep.subr.mxu0 %v2864
    %v2866 = vand.u32 %v914, 4294901760
    %2867 = vmatpush1.msra.mxu0 %v2866
    %2868 = vmatprep.subr.mxu0 0.0
    %2869 = vmatpush1.msra.mxu0 0.0
    %2870 = vmatprep.subr.mxu0 0.0
    %2871 = vmatpush1.msra.mxu0 0.0
    %2872 = vmatprep.subr.mxu0 0.0
    %2873 = vmatpush1.msra.mxu0 0.0
    %2874 = vmatprep.subr.mxu0 0.0
    %2875 = vmatpush1.msra.mxu0 0.0
    %2876 = vmatprep.subr.mxu0 0.0
    %2877 = vmatpush1.msra.mxu0 0.0
    %2878 = vmatprep.subr.mxu0 0.0
    %2879 = vmatpush1.msra.mxu0 0.0
    %2880 = vmatprep.subr.mxu0 0.0
    %2881 = vmatpush1.msra.mxu0 0.0
    %2882 = vmatprep.subr.mxu0 0.0
    %2883 = vmatpush1.msra.mxu0 0.0
    %2884 = vmatprep.subr.mxu0 0.0
    %2885 = vmatpush1.msra.mxu0 0.0
    %2886 = vmatprep.subr.mxu0 0.0
    %2887 = vmatpush1.msra.mxu0 0.0
    %2888 = vmatprep.subr.mxu0 0.0
    %2889 = vmatpush1.msra.mxu0 0.0
    %2890 = vmatprep.subr.mxu0 0.0
    %2891 = vmatpush1.msra.mxu0 0.0
    %2892 = vmatprep.subr.mxu0 0.0
    %2893 = vmatpush1.msra.mxu0 0.0
    %2894 = vmatprep.subr.mxu0 0.0
    %2895 = vmatpush1.msra.mxu0 0.0
    %2896 = vmatprep.subr.mxu0 0.0
    %2897 = vmatpush1.msra.mxu0 0.0
    %2898 = vmatprep.subr.mxu0 0.0
    %2899 = vmatpush1.msra.mxu0 0.0
    %2900 = vmatprep.subr.mxu0 0.0
    %2901 = vmatpush1.msra.mxu0 0.0
    %2902 = vmatprep.subr.mxu0 0.0
    %2903 = vmatpush1.msra.mxu0 0.0
    %2904 = vmatprep.subr.mxu0 0.0
    %2905 = vmatpush1.msra.mxu0 0.0
    %2906 = vmatprep.subr.mxu0 0.0
    %2907 = vmatpush1.msra.mxu0 0.0
    %2908 = vmatprep.subr.mxu0 0.0
    %2909 = vmatpush1.msra.mxu0 0.0
    %2910 = vmatprep.subr.mxu0 0.0
    %2911 = vmatpush1.msra.mxu0 0.0
    %2912 = vmatprep.mubr.f32.mxu0 0.0
    %v2913 = vand.u32 %v920, 4294901760
    %v2914 = vsub.f32 %v920, %v2913
    %v2915 = vand.u32 %v2914, 4294901760
    %2916 = vmatmul.mubr.f32.gmra.mrb[0].mxu0 %v2915
    %v2917 = vpop.f32.mrb[0].mxu0
    %v2918 = vadd.f32 %v2816, %v2917
    %v2919 = vpop.f32.mrb[0].mxu0
    %v2920 = vadd.f32 %v2818, %v2919
    %2921 = vmatprep.mubr.f32.mxu0 0.0
    %v2922 = vand.u32 %v923, 4294901760
    %v2923 = vsub.f32 %v923, %v2922
    %v2924 = vand.u32 %v2923, 4294901760
    %2925 = vmatmul.mubr.f32.gmra.mrb[0].mxu0 %v2924
    %v2926 = vpop.f32.mrb[0].mxu0
    %v2927 = vadd.f32 %v2824, %v2926
    %v2928 = vpop.f32.mrb[0].mxu0
    %v2929 = vadd.f32 %v2826, %v2928
    %2930 = vdwg.mxu0
    %v2931 = vand.u32 %v843, 4294901760
    %v2932 = vsub.f32 %v843, %v2931
    %v2933 = vand.u32 %v2932, 4294901760
    %2934 = vmatprep.subr.mxu0 %v2933
    %v2935 = vand.u32 %v842, 4294901760
    %v2936 = vsub.f32 %v842, %v2935
    %v2937 = vand.u32 %v2936, 4294901760
    %2938 = vmatpush1.msra.mxu0 %v2937
    %v2939 = vand.u32 %v851, 4294901760
    %v2940 = vsub.f32 %v851, %v2939
    %v2941 = vand.u32 %v2940, 4294901760
    %2942 = vmatprep.subr.mxu0 %v2941
    %v2943 = vand.u32 %v850, 4294901760
    %v2944 = vsub.f32 %v850, %v2943
    %v2945 = vand.u32 %v2944, 4294901760
    %2946 = vmatpush1.msra.mxu0 %v2945
    %v2947 = vand.u32 %v859, 4294901760
    %v2948 = vsub.f32 %v859, %v2947
    %v2949 = vand.u32 %v2948, 4294901760
    %2950 = vmatprep.subr.mxu0 %v2949
    %v2951 = vand.u32 %v858, 4294901760
    %v2952 = vsub.f32 %v858, %v2951
    %v2953 = vand.u32 %v2952, 4294901760
    %2954 = vmatpush1.msra.mxu0 %v2953
    %v2955 = vand.u32 %v867, 4294901760
    %v2956 = vsub.f32 %v867, %v2955
    %v2957 = vand.u32 %v2956, 4294901760
    %2958 = vmatprep.subr.mxu0 %v2957
    %v2959 = vand.u32 %v866, 4294901760
    %v2960 = vsub.f32 %v866, %v2959
    %v2961 = vand.u32 %v2960, 4294901760
    %2962 = vmatpush1.msra.mxu0 %v2961
    %v2963 = vand.u32 %v875, 4294901760
    %v2964 = vsub.f32 %v875, %v2963
    %v2965 = vand.u32 %v2964, 4294901760
    %2966 = vmatprep.subr.mxu0 %v2965
    %v2967 = vand.u32 %v874, 4294901760
    %v2968 = vsub.f32 %v874, %v2967
    %v2969 = vand.u32 %v2968, 4294901760
    %2970 = vmatpush1.msra.mxu0 %v2969
    %v2971 = vand.u32 %v883, 4294901760
    %v2972 = vsub.f32 %v883, %v2971
    %v2973 = vand.u32 %v2972, 4294901760
    %2974 = vmatprep.subr.mxu0 %v2973
    %v2975 = vand.u32 %v882, 4294901760
    %v2976 = vsub.f32 %v882, %v2975
    %v2977 = vand.u32 %v2976, 4294901760
    %2978 = vmatpush1.msra.mxu0 %v2977
    %v2979 = vand.u32 %v891, 4294901760
    %v2980 = vsub.f32 %v891, %v2979
    %v2981 = vand.u32 %v2980, 4294901760
    %2982 = vmatprep.subr.mxu0 %v2981
    %v2983 = vand.u32 %v890, 4294901760
    %v2984 = vsub.f32 %v890, %v2983
    %v2985 = vand.u32 %v2984, 4294901760
    %2986 = vmatpush1.msra.mxu0 %v2985
    %v2987 = vand.u32 %v899, 4294901760
    %v2988 = vsub.f32 %v899, %v2987
    %v2989 = vand.u32 %v2988, 4294901760
    %2990 = vmatprep.subr.mxu0 %v2989
    %v2991 = vand.u32 %v898, 4294901760
    %v2992 = vsub.f32 %v898, %v2991
    %v2993 = vand.u32 %v2992, 4294901760
    %2994 = vmatpush1.msra.mxu0 %v2993
    %v2995 = vand.u32 %v907, 4294901760
    %v2996 = vsub.f32 %v907, %v2995
    %v2997 = vand.u32 %v2996, 4294901760
    %2998 = vmatprep.subr.mxu0 %v2997
    %v2999 = vand.u32 %v906, 4294901760
    %v3000 = vsub.f32 %v906, %v2999
    %v3001 = vand.u32 %v3000, 4294901760
    %3002 = vmatpush1.msra.mxu0 %v3001
    %v3003 = vand.u32 %v915, 4294901760
    %v3004 = vsub.f32 %v915, %v3003
    %v3005 = vand.u32 %v3004, 4294901760
    %3006 = vmatprep.subr.mxu0 %v3005
    %v3007 = vand.u32 %v914, 4294901760
    %v3008 = vsub.f32 %v914, %v3007
    %v3009 = vand.u32 %v3008, 4294901760
    %3010 = vmatpush1.msra.mxu0 %v3009
    %3011 = vmatprep.subr.mxu0 0.0
    %3012 = vmatpush1.msra.mxu0 0.0
    %3013 = vmatprep.subr.mxu0 0.0
    %3014 = vmatpush1.msra.mxu0 0.0
    %3015 = vmatprep.subr.mxu0 0.0
    %3016 = vmatpush1.msra.mxu0 0.0
    %3017 = vmatprep.subr.mxu0 0.0
    %3018 = vmatpush1.msra.mxu0 0.0
    %3019 = vmatprep.subr.mxu0 0.0
    %3020 = vmatpush1.msra.mxu0 0.0
    %3021 = vmatprep.subr.mxu0 0.0
    %3022 = vmatpush1.msra.mxu0 0.0
    %3023 = vmatprep.subr.mxu0 0.0
    %3024 = vmatpush1.msra.mxu0 0.0
    %3025 = vmatprep.subr.mxu0 0.0
    %3026 = vmatpush1.msra.mxu0 0.0
    %3027 = vmatprep.subr.mxu0 0.0
    %3028 = vmatpush1.msra.mxu0 0.0
    %3029 = vmatprep.subr.mxu0 0.0
    %3030 = vmatpush1.msra.mxu0 0.0
    %3031 = vmatprep.subr.mxu0 0.0
    %3032 = vmatpush1.msra.mxu0 0.0
    %3033 = vmatprep.subr.mxu0 0.0
    %3034 = vmatpush1.msra.mxu0 0.0
    %3035 = vmatprep.subr.mxu0 0.0
    %3036 = vmatpush1.msra.mxu0 0.0
    %3037 = vmatprep.subr.mxu0 0.0
    %3038 = vmatpush1.msra.mxu0 0.0
    %3039 = vmatprep.subr.mxu0 0.0
    %3040 = vmatpush1.msra.mxu0 0.0
    %3041 = vmatprep.subr.mxu0 0.0
    %3042 = vmatpush1.msra.mxu0 0.0
    %3043 = vmatprep.subr.mxu0 0.0
    %3044 = vmatpush1.msra.mxu0 0.0
    %3045 = vmatprep.subr.mxu0 0.0
    %3046 = vmatpush1.msra.mxu0 0.0
    %3047 = vmatprep.subr.mxu0 0.0
    %3048 = vmatpush1.msra.mxu0 0.0
    %3049 = vmatprep.subr.mxu0 0.0
    %3050 = vmatpush1.msra.mxu0 0.0
    %3051 = vmatprep.subr.mxu0 0.0
    %3052 = vmatpush1.msra.mxu0 0.0
    %3053 = vmatprep.subr.mxu0 0.0
    %3054 = vmatpush1.msra.mxu0 0.0
    %3055 = vmatprep.mubr.f32.mxu0 0.0
    %v3056 = vand.u32 %v920, 4294901760
    %3057 = vmatmul.mubr.f32.gmra.mrb[0].mxu0 %v3056
    %v3058 = vpop.f32.mrb[0].mxu0
    %v3059 = vadd.f32 %v2918, %v3058
    %v3060 = vpop.f32.mrb[0].mxu0
    %v3061 = vadd.f32 %v2920, %v3060
    %3062 = vmatprep.mubr.f32.mxu0 0.0
    %v3063 = vand.u32 %v923, 4294901760
    %3064 = vmatmul.mubr.f32.gmra.mrb[0].mxu0 %v3063
    %v3065 = vpop.f32.mrb[0].mxu0
    %v3066 = vadd.f32 %v2927, %v3065
    %v3067 = vpop.f32.mrb[0].mxu0
    %v3068 = vadd.f32 %v2929, %v3067
    %3069 = vdwg.mxu0
    %v3070 = vand.u32 %v843, 4294901760
    %3071 = vmatprep.subr.mxu0 %v3070
    %v3072 = vand.u32 %v842, 4294901760
    %3073 = vmatpush1.msra.mxu0 %v3072
    %v3074 = vand.u32 %v851, 4294901760
    %3075 = vmatprep.subr.mxu0 %v3074
    %v3076 = vand.u32 %v850, 4294901760
    %3077 = vmatpush1.msra.mxu0 %v3076
    %v3078 = vand.u32 %v859, 4294901760
    %3079 = vmatprep.subr.mxu0 %v3078
    %v3080 = vand.u32 %v858, 4294901760
    %3081 = vmatpush1.msra.mxu0 %v3080
    %v3082 = vand.u32 %v867, 4294901760
    %3083 = vmatprep.subr.mxu0 %v3082
    %v3084 = vand.u32 %v866, 4294901760
    %3085 = vmatpush1.msra.mxu0 %v3084
    %v3086 = vand.u32 %v875, 4294901760
    %3087 = vmatprep.subr.mxu0 %v3086
    %v3088 = vand.u32 %v874, 4294901760
    %3089 = vmatpush1.msra.mxu0 %v3088
    %v3090 = vand.u32 %v883, 4294901760
    %3091 = vmatprep.subr.mxu0 %v3090
    %v3092 = vand.u32 %v882, 4294901760
    %3093 = vmatpush1.msra.mxu0 %v3092
    %v3094 = vand.u32 %v891, 4294901760
    %3095 = vmatprep.subr.mxu0 %v3094
    %v3096 = vand.u32 %v890, 4294901760
    %3097 = vmatpush1.msra.mxu0 %v3096
    %v3098 = vand.u32 %v899, 4294901760
    %3099 = vmatprep.subr.mxu0 %v3098
    %v3100 = vand.u32 %v898, 4294901760
    %3101 = vmatpush1.msra.mxu0 %v3100
    %v3102 = vand.u32 %v907, 4294901760
    %3103 = vmatprep.subr.mxu0 %v3102
    %v3104 = vand.u32 %v906, 4294901760
    %3105 = vmatpush1.msra.mxu0 %v3104
    %v3106 = vand.u32 %v915, 4294901760
    %3107 = vmatprep.subr.mxu0 %v3106
    %v3108 = vand.u32 %v914, 4294901760
    %3109 = vmatpush1.msra.mxu0 %v3108
    %3110 = vmatprep.subr.mxu0 0.0
    %3111 = vmatpush1.msra.mxu0 0.0
    %3112 = vmatprep.subr.mxu0 0.0
    %3113 = vmatpush1.msra.mxu0 0.0
    %3114 = vmatprep.subr.mxu0 0.0
    %3115 = vmatpush1.msra.mxu0 0.0
    %3116 = vmatprep.subr.mxu0 0.0
    %3117 = vmatpush1.msra.mxu0 0.0
    %3118 = vmatprep.subr.mxu0 0.0
    %3119 = vmatpush1.msra.mxu0 0.0
    %3120 = vmatprep.subr.mxu0 0.0
    %3121 = vmatpush1.msra.mxu0 0.0
    %3122 = vmatprep.subr.mxu0 0.0
    %3123 = vmatpush1.msra.mxu0 0.0
    %3124 = vmatprep.subr.mxu0 0.0
    %3125 = vmatpush1.msra.mxu0 0.0
    %3126 = vmatprep.subr.mxu0 0.0
    %3127 = vmatpush1.msra.mxu0 0.0
    %3128 = vmatprep.subr.mxu0 0.0
    %3129 = vmatpush1.msra.mxu0 0.0
    %3130 = vmatprep.subr.mxu0 0.0
    %3131 = vmatpush1.msra.mxu0 0.0
    %3132 = vmatprep.subr.mxu0 0.0
    %3133 = vmatpush1.msra.mxu0 0.0
    %3134 = vmatprep.subr.mxu0 0.0
    %3135 = vmatpush1.msra.mxu0 0.0
    %3136 = vmatprep.subr.mxu0 0.0
    %3137 = vmatpush1.msra.mxu0 0.0
    %3138 = vmatprep.subr.mxu0 0.0
    %3139 = vmatpush1.msra.mxu0 0.0
    %3140 = vmatprep.subr.mxu0 0.0
    %3141 = vmatpush1.msra.mxu0 0.0
    %3142 = vmatprep.subr.mxu0 0.0
    %3143 = vmatpush1.msra.mxu0 0.0
    %3144 = vmatprep.subr.mxu0 0.0
    %3145 = vmatpush1.msra.mxu0 0.0
    %3146 = vmatprep.subr.mxu0 0.0
    %3147 = vmatpush1.msra.mxu0 0.0
    %3148 = vmatprep.subr.mxu0 0.0
    %3149 = vmatpush1.msra.mxu0 0.0
    %3150 = vmatprep.subr.mxu0 0.0
    %3151 = vmatpush1.msra.mxu0 0.0
    %3152 = vmatprep.subr.mxu0 0.0
    %3153 = vmatpush1.msra.mxu0 0.0
    %3154 = vmatprep.mubr.f32.mxu0 0.0
    %v3155 = vand.u32 %v920, 4294901760
    %3156 = vmatmul.mubr.f32.gmra.mrb[0].mxu0 %v3155
    %v3157 = vpop.f32.mrb[0].mxu0
    %v3158 = vadd.f32 %v3059, %v3157
    %v3159 = vpop.f32.mrb[0].mxu0
    %v3160 = vadd.f32 %v3061, %v3159
    %3161 = vmatprep.mubr.f32.mxu0 0.0
    %v3162 = vand.u32 %v923, 4294901760
    %3163 = vmatmul.mubr.f32.gmra.mrb[0].mxu0 %v3162
    %v3164 = vpop.f32.mrb[0].mxu0
    %v3165 = vadd.f32 %v3066, %v3164
    %v3166 = vpop.f32.mrb[0].mxu0
    %v3167 = vadd.f32 %v3068, %v3166
    %3168 = vdwg.mxu0
    %v3169 = vand.u32 %v845, 4294901760
    %3170 = vmatprep.subr.mxu0 %v3169
    %v3171 = vand.u32 %v844, 4294901760
    %3172 = vmatpush1.msra.mxu0 %v3171
    %v3173 = vand.u32 %v853, 4294901760
    %3174 = vmatprep.subr.mxu0 %v3173
    %v3175 = vand.u32 %v852, 4294901760
    %3176 = vmatpush1.msra.mxu0 %v3175
    %v3177 = vand.u32 %v861, 4294901760
    %3178 = vmatprep.subr.mxu0 %v3177
    %v3179 = vand.u32 %v860, 4294901760
    %3180 = vmatpush1.msra.mxu0 %v3179
    %v3181 = vand.u32 %v869, 4294901760
    %3182 = vmatprep.subr.mxu0 %v3181
    %v3183 = vand.u32 %v868, 4294901760
    %3184 = vmatpush1.msra.mxu0 %v3183
    %v3185 = vand.u32 %v877, 4294901760
    %3186 = vmatprep.subr.mxu0 %v3185
    %v3187 = vand.u32 %v876, 4294901760
    %3188 = vmatpush1.msra.mxu0 %v3187
    %v3189 = vand.u32 %v885, 4294901760
    %3190 = vmatprep.subr.mxu0 %v3189
    %v3191 = vand.u32 %v884, 4294901760
    %3192 = vmatpush1.msra.mxu0 %v3191
    %v3193 = vand.u32 %v893, 4294901760
    %3194 = vmatprep.subr.mxu0 %v3193
    %v3195 = vand.u32 %v892, 4294901760
    %3196 = vmatpush1.msra.mxu0 %v3195
    %v3197 = vand.u32 %v901, 4294901760
    %3198 = vmatprep.subr.mxu0 %v3197
    %v3199 = vand.u32 %v900, 4294901760
    %3200 = vmatpush1.msra.mxu0 %v3199
    %v3201 = vand.u32 %v909, 4294901760
    %3202 = vmatprep.subr.mxu0 %v3201
    %v3203 = vand.u32 %v908, 4294901760
    %3204 = vmatpush1.msra.mxu0 %v3203
    %v3205 = vand.u32 %v917, 4294901760
    %3206 = vmatprep.subr.mxu0 %v3205
    %v3207 = vand.u32 %v916, 4294901760
    %3208 = vmatpush1.msra.mxu0 %v3207
    %3209 = vmatprep.subr.mxu0 0.0
    %3210 = vmatpush1.msra.mxu0 0.0
    %3211 = vmatprep.subr.mxu0 0.0
    %3212 = vmatpush1.msra.mxu0 0.0
    %3213 = vmatprep.subr.mxu0 0.0
    %3214 = vmatpush1.msra.mxu0 0.0
    %3215 = vmatprep.subr.mxu0 0.0
    %3216 = vmatpush1.msra.mxu0 0.0
    %3217 = vmatprep.subr.mxu0 0.0
    %3218 = vmatpush1.msra.mxu0 0.0
    %3219 = vmatprep.subr.mxu0 0.0
    %3220 = vmatpush1.msra.mxu0 0.0
    %3221 = vmatprep.subr.mxu0 0.0
    %3222 = vmatpush1.msra.mxu0 0.0
    %3223 = vmatprep.subr.mxu0 0.0
    %3224 = vmatpush1.msra.mxu0 0.0
    %3225 = vmatprep.subr.mxu0 0.0
    %3226 = vmatpush1.msra.mxu0 0.0
    %3227 = vmatprep.subr.mxu0 0.0
    %3228 = vmatpush1.msra.mxu0 0.0
    %3229 = vmatprep.subr.mxu0 0.0
    %3230 = vmatpush1.msra.mxu0 0.0
    %3231 = vmatprep.subr.mxu0 0.0
    %3232 = vmatpush1.msra.mxu0 0.0
    %3233 = vmatprep.subr.mxu0 0.0
    %3234 = vmatpush1.msra.mxu0 0.0
    %3235 = vmatprep.subr.mxu0 0.0
    %3236 = vmatpush1.msra.mxu0 0.0
    %3237 = vmatprep.subr.mxu0 0.0
    %3238 = vmatpush1.msra.mxu0 0.0
    %3239 = vmatprep.subr.mxu0 0.0
    %3240 = vmatpush1.msra.mxu0 0.0
    %3241 = vmatprep.subr.mxu0 0.0
    %3242 = vmatpush1.msra.mxu0 0.0
    %3243 = vmatprep.subr.mxu0 0.0
    %3244 = vmatpush1.msra.mxu0 0.0
    %3245 = vmatprep.subr.mxu0 0.0
    %3246 = vmatpush1.msra.mxu0 0.0
    %3247 = vmatprep.subr.mxu0 0.0
    %3248 = vmatpush1.msra.mxu0 0.0
    %3249 = vmatprep.subr.mxu0 0.0
    %3250 = vmatpush1.msra.mxu0 0.0
    %3251 = vmatprep.subr.mxu0 0.0
    %3252 = vmatpush1.msra.mxu0 0.0
    %3253 = vmatprep.mubr.f32.mxu0 0.0
    %v3254 = vand.u32 %v920, 4294901760
    %v3255 = vsub.f32 %v920, %v3254
    %v3256 = vand.u32 %v3255, 4294901760
    %v3257 = vsub.f32 %v3255, %v3256
    %v3258 = vand.u32 %v3257, 4294901760
    %3259 = vmatmul.mubr.f32.gmra.mrb[0].mxu0 %v3258
    %v3260 = vpop.f32.mrb[0].mxu0
    %v3261 = vadd.f32 0.0, %v3260
    %v3262 = vpop.f32.mrb[0].mxu0
    %v3263 = vadd.f32 0.0, %v3262
    %3264 = vmatprep.mubr.f32.mxu0 0.0
    %v3265 = vand.u32 %v923, 4294901760
    %v3266 = vsub.f32 %v923, %v3265
    %v3267 = vand.u32 %v3266, 4294901760
    %v3268 = vsub.f32 %v3266, %v3267
    %v3269 = vand.u32 %v3268, 4294901760
    %3270 = vmatmul.mubr.f32.gmra.mrb[0].mxu0 %v3269
    %v3271 = vpop.f32.mrb[0].mxu0
    %v3272 = vadd.f32 0.0, %v3271
    %v3273 = vpop.f32.mrb[0].mxu0
    %v3274 = vadd.f32 0.0, %v3273
    %3275 = vdwg.mxu0
    %v3276 = vand.u32 %v845, 4294901760
    %v3277 = vsub.f32 %v845, %v3276
    %v3278 = vand.u32 %v3277, 4294901760
    %v3279 = vsub.f32 %v3277, %v3278
    %v3280 = vand.u32 %v3279, 4294901760
    %3281 = vmatprep.subr.mxu0 %v3280
    %v3282 = vand.u32 %v844, 4294901760
    %v3283 = vsub.f32 %v844, %v3282
    %v3284 = vand.u32 %v3283, 4294901760
    %v3285 = vsub.f32 %v3283, %v3284
    %v3286 = vand.u32 %v3285, 4294901760
    %3287 = vmatpush1.msra.mxu0 %v3286
    %v3288 = vand.u32 %v853, 4294901760
    %v3289 = vsub.f32 %v853, %v3288
    %v3290 = vand.u32 %v3289, 4294901760
    %v3291 = vsub.f32 %v3289, %v3290
    %v3292 = vand.u32 %v3291, 4294901760
    %3293 = vmatprep.subr.mxu0 %v3292
    %v3294 = vand.u32 %v852, 4294901760
    %v3295 = vsub.f32 %v852, %v3294
    %v3296 = vand.u32 %v3295, 4294901760
    %v3297 = vsub.f32 %v3295, %v3296
    %v3298 = vand.u32 %v3297, 4294901760
    %3299 = vmatpush1.msra.mxu0 %v3298
    %v3300 = vand.u32 %v861, 4294901760
    %v3301 = vsub.f32 %v861, %v3300
    %v3302 = vand.u32 %v3301, 4294901760
    %v3303 = vsub.f32 %v3301, %v3302
    %v3304 = vand.u32 %v3303, 4294901760
    %3305 = vmatprep.subr.mxu0 %v3304
    %v3306 = vand.u32 %v860, 4294901760
    %v3307 = vsub.f32 %v860, %v3306
    %v3308 = vand.u32 %v3307, 4294901760
    %v3309 = vsub.f32 %v3307, %v3308
    %v3310 = vand.u32 %v3309, 4294901760
    %3311 = vmatpush1.msra.mxu0 %v3310
    %v3312 = vand.u32 %v869, 4294901760
    %v3313 = vsub.f32 %v869, %v3312
    %v3314 = vand.u32 %v3313, 4294901760
    %v3315 = vsub.f32 %v3313, %v3314
    %v3316 = vand.u32 %v3315, 4294901760
    %3317 = vmatprep.subr.mxu0 %v3316
    %v3318 = vand.u32 %v868, 4294901760
    %v3319 = vsub.f32 %v868, %v3318
    %v3320 = vand.u32 %v3319, 4294901760
    %v3321 = vsub.f32 %v3319, %v3320
    %v3322 = vand.u32 %v3321, 4294901760
    %3323 = vmatpush1.msra.mxu0 %v3322
    %v3324 = vand.u32 %v877, 4294901760
    %v3325 = vsub.f32 %v877, %v3324
    %v3326 = vand.u32 %v3325, 4294901760
    %v3327 = vsub.f32 %v3325, %v3326
    %v3328 = vand.u32 %v3327, 4294901760
    %3329 = vmatprep.subr.mxu0 %v3328
    %v3330 = vand.u32 %v876, 4294901760
    %v3331 = vsub.f32 %v876, %v3330
    %v3332 = vand.u32 %v3331, 4294901760
    %v3333 = vsub.f32 %v3331, %v3332
    %v3334 = vand.u32 %v3333, 4294901760
    %3335 = vmatpush1.msra.mxu0 %v3334
    %v3336 = vand.u32 %v885, 4294901760
    %v3337 = vsub.f32 %v885, %v3336
    %v3338 = vand.u32 %v3337, 4294901760
    %v3339 = vsub.f32 %v3337, %v3338
    %v3340 = vand.u32 %v3339, 4294901760
    %3341 = vmatprep.subr.mxu0 %v3340
    %v3342 = vand.u32 %v884, 4294901760
    %v3343 = vsub.f32 %v884, %v3342
    %v3344 = vand.u32 %v3343, 4294901760
    %v3345 = vsub.f32 %v3343, %v3344
    %v3346 = vand.u32 %v3345, 4294901760
    %3347 = vmatpush1.msra.mxu0 %v3346
    %v3348 = vand.u32 %v893, 4294901760
    %v3349 = vsub.f32 %v893, %v3348
    %v3350 = vand.u32 %v3349, 4294901760
    %v3351 = vsub.f32 %v3349, %v3350
    %v3352 = vand.u32 %v3351, 4294901760
    %3353 = vmatprep.subr.mxu0 %v3352
    %v3354 = vand.u32 %v892, 4294901760
    %v3355 = vsub.f32 %v892, %v3354
    %v3356 = vand.u32 %v3355, 4294901760
    %v3357 = vsub.f32 %v3355, %v3356
    %v3358 = vand.u32 %v3357, 4294901760
    %3359 = vmatpush1.msra.mxu0 %v3358
    %v3360 = vand.u32 %v901, 4294901760
    %v3361 = vsub.f32 %v901, %v3360
    %v3362 = vand.u32 %v3361, 4294901760
    %v3363 = vsub.f32 %v3361, %v3362
    %v3364 = vand.u32 %v3363, 4294901760
    %3365 = vmatprep.subr.mxu0 %v3364
    %v3366 = vand.u32 %v900, 4294901760
    %v3367 = vsub.f32 %v900, %v3366
    %v3368 = vand.u32 %v3367, 4294901760
    %v3369 = vsub.f32 %v3367, %v3368
    %v3370 = vand.u32 %v3369, 4294901760
    %3371 = vmatpush1.msra.mxu0 %v3370
    %v3372 = vand.u32 %v909, 4294901760
    %v3373 = vsub.f32 %v909, %v3372
    %v3374 = vand.u32 %v3373, 4294901760
    %v3375 = vsub.f32 %v3373, %v3374
    %v3376 = vand.u32 %v3375, 4294901760
    %3377 = vmatprep.subr.mxu0 %v3376
    %v3378 = vand.u32 %v908, 4294901760
    %v3379 = vsub.f32 %v908, %v3378
    %v3380 = vand.u32 %v3379, 4294901760
    %v3381 = vsub.f32 %v3379, %v3380
    %v3382 = vand.u32 %v3381, 4294901760
    %3383 = vmatpush1.msra.mxu0 %v3382
    %v3384 = vand.u32 %v917, 4294901760
    %v3385 = vsub.f32 %v917, %v3384
    %v3386 = vand.u32 %v3385, 4294901760
    %v3387 = vsub.f32 %v3385, %v3386
    %v3388 = vand.u32 %v3387, 4294901760
    %3389 = vmatprep.subr.mxu0 %v3388
    %v3390 = vand.u32 %v916, 4294901760
    %v3391 = vsub.f32 %v916, %v3390
    %v3392 = vand.u32 %v3391, 4294901760
    %v3393 = vsub.f32 %v3391, %v3392
    %v3394 = vand.u32 %v3393, 4294901760
    %3395 = vmatpush1.msra.mxu0 %v3394
    %3396 = vmatprep.subr.mxu0 0.0
    %3397 = vmatpush1.msra.mxu0 0.0
    %3398 = vmatprep.subr.mxu0 0.0
    %3399 = vmatpush1.msra.mxu0 0.0
    %3400 = vmatprep.subr.mxu0 0.0
    %3401 = vmatpush1.msra.mxu0 0.0
    %3402 = vmatprep.subr.mxu0 0.0
    %3403 = vmatpush1.msra.mxu0 0.0
    %3404 = vmatprep.subr.mxu0 0.0
    %3405 = vmatpush1.msra.mxu0 0.0
    %3406 = vmatprep.subr.mxu0 0.0
    %3407 = vmatpush1.msra.mxu0 0.0
    %3408 = vmatprep.subr.mxu0 0.0
    %3409 = vmatpush1.msra.mxu0 0.0
    %3410 = vmatprep.subr.mxu0 0.0
    %3411 = vmatpush1.msra.mxu0 0.0
    %3412 = vmatprep.subr.mxu0 0.0
    %3413 = vmatpush1.msra.mxu0 0.0
    %3414 = vmatprep.subr.mxu0 0.0
    %3415 = vmatpush1.msra.mxu0 0.0
    %3416 = vmatprep.subr.mxu0 0.0
    %3417 = vmatpush1.msra.mxu0 0.0
    %3418 = vmatprep.subr.mxu0 0.0
    %3419 = vmatpush1.msra.mxu0 0.0
    %3420 = vmatprep.subr.mxu0 0.0
    %3421 = vmatpush1.msra.mxu0 0.0
    %3422 = vmatprep.subr.mxu0 0.0
    %3423 = vmatpush1.msra.mxu0 0.0
    %3424 = vmatprep.subr.mxu0 0.0
    %3425 = vmatpush1.msra.mxu0 0.0
    %3426 = vmatprep.subr.mxu0 0.0
    %3427 = vmatpush1.msra.mxu0 0.0
    %3428 = vmatprep.subr.mxu0 0.0
    %3429 = vmatpush1.msra.mxu0 0.0
    %3430 = vmatprep.subr.mxu0 0.0
    %3431 = vmatpush1.msra.mxu0 0.0
    %3432 = vmatprep.subr.mxu0 0.0
    %3433 = vmatpush1.msra.mxu0 0.0
    %3434 = vmatprep.subr.mxu0 0.0
    %3435 = vmatpush1.msra.mxu0 0.0
    %3436 = vmatprep.subr.mxu0 0.0
    %3437 = vmatpush1.msra.mxu0 0.0
    %3438 = vmatprep.subr.mxu0 0.0
    %3439 = vmatpush1.msra.mxu0 0.0
    %3440 = vmatprep.mubr.f32.mxu0 0.0
    %v3441 = vand.u32 %v920, 4294901760
    %3442 = vmatmul.mubr.f32.gmra.mrb[0].mxu0 %v3441
    %v3443 = vpop.f32.mrb[0].mxu0
    %v3444 = vadd.f32 %v3261, %v3443
    %v3445 = vpop.f32.mrb[0].mxu0
    %v3446 = vadd.f32 %v3263, %v3445
    %3447 = vmatprep.mubr.f32.mxu0 0.0
    %v3448 = vand.u32 %v923, 4294901760
    %3449 = vmatmul.mubr.f32.gmra.mrb[0].mxu0 %v3448
    %v3450 = vpop.f32.mrb[0].mxu0
    %v3451 = vadd.f32 %v3272, %v3450
    %v3452 = vpop.f32.mrb[0].mxu0
    %v3453 = vadd.f32 %v3274, %v3452
    %3454 = vdwg.mxu0
    %v3455 = vand.u32 %v845, 4294901760
    %v3456 = vsub.f32 %v845, %v3455
    %3457 = vmatprep.subr.mxu0 %v3456
    %v3458 = vand.u32 %v844, 4294901760
    %v3459 = vsub.f32 %v844, %v3458
    %3460 = vmatpush1.msra.mxu0 %v3459
    %v3461 = vand.u32 %v853, 4294901760
    %v3462 = vsub.f32 %v853, %v3461
    %3463 = vmatprep.subr.mxu0 %v3462
    %v3464 = vand.u32 %v852, 4294901760
    %v3465 = vsub.f32 %v852, %v3464
    %3466 = vmatpush1.msra.mxu0 %v3465
    %v3467 = vand.u32 %v861, 4294901760
    %v3468 = vsub.f32 %v861, %v3467
    %3469 = vmatprep.subr.mxu0 %v3468
    %v3470 = vand.u32 %v860, 4294901760
    %v3471 = vsub.f32 %v860, %v3470
    %3472 = vmatpush1.msra.mxu0 %v3471
    %v3473 = vand.u32 %v869, 4294901760
    %v3474 = vsub.f32 %v869, %v3473
    %3475 = vmatprep.subr.mxu0 %v3474
    %v3476 = vand.u32 %v868, 4294901760
    %v3477 = vsub.f32 %v868, %v3476
    %3478 = vmatpush1.msra.mxu0 %v3477
    %v3479 = vand.u32 %v877, 4294901760
    %v3480 = vsub.f32 %v877, %v3479
    %3481 = vmatprep.subr.mxu0 %v3480
    %v3482 = vand.u32 %v876, 4294901760
    %v3483 = vsub.f32 %v876, %v3482
    %3484 = vmatpush1.msra.mxu0 %v3483
    %v3485 = vand.u32 %v885, 4294901760
    %v3486 = vsub.f32 %v885, %v3485
    %3487 = vmatprep.subr.mxu0 %v3486
    %v3488 = vand.u32 %v884, 4294901760
    %v3489 = vsub.f32 %v884, %v3488
    %3490 = vmatpush1.msra.mxu0 %v3489
    %v3491 = vand.u32 %v893, 4294901760
    %v3492 = vsub.f32 %v893, %v3491
    %3493 = vmatprep.subr.mxu0 %v3492
    %v3494 = vand.u32 %v892, 4294901760
    %v3495 = vsub.f32 %v892, %v3494
    %3496 = vmatpush1.msra.mxu0 %v3495
    %v3497 = vand.u32 %v901, 4294901760
    %v3498 = vsub.f32 %v901, %v3497
    %3499 = vmatprep.subr.mxu0 %v3498
    %v3500 = vand.u32 %v900, 4294901760
    %v3501 = vsub.f32 %v900, %v3500
    %3502 = vmatpush1.msra.mxu0 %v3501
    %v3503 = vand.u32 %v909, 4294901760
    %v3504 = vsub.f32 %v909, %v3503
    %3505 = vmatprep.subr.mxu0 %v3504
    %v3506 = vand.u32 %v908, 4294901760
    %v3507 = vsub.f32 %v908, %v3506
    %3508 = vmatpush1.msra.mxu0 %v3507
    %v3509 = vand.u32 %v917, 4294901760
    %v3510 = vsub.f32 %v917, %v3509
    %3511 = vmatprep.subr.mxu0 %v3510
    %v3512 = vand.u32 %v916, 4294901760
    %v3513 = vsub.f32 %v916, %v3512
    %3514 = vmatpush1.msra.mxu0 %v3513
    %3515 = vmatprep.subr.mxu0 0.0
    %3516 = vmatpush1.msra.mxu0 0.0
    %3517 = vmatprep.subr.mxu0 0.0
    %3518 = vmatpush1.msra.mxu0 0.0
    %3519 = vmatprep.subr.mxu0 0.0
    %3520 = vmatpush1.msra.mxu0 0.0
    %3521 = vmatprep.subr.mxu0 0.0
    %3522 = vmatpush1.msra.mxu0 0.0
    %3523 = vmatprep.subr.mxu0 0.0
    %3524 = vmatpush1.msra.mxu0 0.0
    %3525 = vmatprep.subr.mxu0 0.0
    %3526 = vmatpush1.msra.mxu0 0.0
    %3527 = vmatprep.subr.mxu0 0.0
    %3528 = vmatpush1.msra.mxu0 0.0
    %3529 = vmatprep.subr.mxu0 0.0
    %3530 = vmatpush1.msra.mxu0 0.0
    %3531 = vmatprep.subr.mxu0 0.0
    %3532 = vmatpush1.msra.mxu0 0.0
    %3533 = vmatprep.subr.mxu0 0.0
    %3534 = vmatpush1.msra.mxu0 0.0
    %3535 = vmatprep.subr.mxu0 0.0
    %3536 = vmatpush1.msra.mxu0 0.0
    %3537 = vmatprep.subr.mxu0 0.0
    %3538 = vmatpush1.msra.mxu0 0.0
    %3539 = vmatprep.subr.mxu0 0.0
    %3540 = vmatpush1.msra.mxu0 0.0
    %3541 = vmatprep.subr.mxu0 0.0
    %3542 = vmatpush1.msra.mxu0 0.0
    %3543 = vmatprep.subr.mxu0 0.0
    %3544 = vmatpush1.msra.mxu0 0.0
    %3545 = vmatprep.subr.mxu0 0.0
    %3546 = vmatpush1.msra.mxu0 0.0
    %3547 = vmatprep.subr.mxu0 0.0
    %3548 = vmatpush1.msra.mxu0 0.0
    %3549 = vmatprep.subr.mxu0 0.0
    %3550 = vmatpush1.msra.mxu0 0.0
    %3551 = vmatprep.subr.mxu0 0.0
    %3552 = vmatpush1.msra.mxu0 0.0
    %3553 = vmatprep.subr.mxu0 0.0
    %3554 = vmatpush1.msra.mxu0 0.0
    %3555 = vmatprep.subr.mxu0 0.0
    %3556 = vmatpush1.msra.mxu0 0.0
    %3557 = vmatprep.subr.mxu0 0.0
    %3558 = vmatpush1.msra.mxu0 0.0
    %3559 = vmatprep.mubr.f32.mxu0 0.0
    %v3560 = vand.u32 %v920, 4294901760
    %v3561 = vsub.f32 %v920, %v3560
    %3562 = vmatmul.mubr.f32.gmra.mrb[0].mxu0 %v3561
    %v3563 = vpop.f32.mrb[0].mxu0
    %v3564 = vadd.f32 %v3444, %v3563
    %v3565 = vpop.f32.mrb[0].mxu0
    %v3566 = vadd.f32 %v3446, %v3565
    %3567 = vmatprep.mubr.f32.mxu0 0.0
    %v3568 = vand.u32 %v923, 4294901760
    %v3569 = vsub.f32 %v923, %v3568
    %3570 = vmatmul.mubr.f32.gmra.mrb[0].mxu0 %v3569
    %v3571 = vpop.f32.mrb[0].mxu0
    %v3572 = vadd.f32 %v3451, %v3571
    %v3573 = vpop.f32.mrb[0].mxu0
    %v3574 = vadd.f32 %v3453, %v3573
    %3575 = vdwg.mxu0
    %v3576 = vand.u32 %v845, 4294901760
    %3577 = vmatprep.subr.mxu0 %v3576
    %v3578 = vand.u32 %v844, 4294901760
    %3579 = vmatpush1.msra.mxu0 %v3578
    %v3580 = vand.u32 %v853, 4294901760
    %3581 = vmatprep.subr.mxu0 %v3580
    %v3582 = vand.u32 %v852, 4294901760
    %3583 = vmatpush1.msra.mxu0 %v3582
    %v3584 = vand.u32 %v861, 4294901760
    %3585 = vmatprep.subr.mxu0 %v3584
    %v3586 = vand.u32 %v860, 4294901760
    %3587 = vmatpush1.msra.mxu0 %v3586
    %v3588 = vand.u32 %v869, 4294901760
    %3589 = vmatprep.subr.mxu0 %v3588
    %v3590 = vand.u32 %v868, 4294901760
    %3591 = vmatpush1.msra.mxu0 %v3590
    %v3592 = vand.u32 %v877, 4294901760
    %3593 = vmatprep.subr.mxu0 %v3592
    %v3594 = vand.u32 %v876, 4294901760
    %3595 = vmatpush1.msra.mxu0 %v3594
    %v3596 = vand.u32 %v885, 4294901760
    %3597 = vmatprep.subr.mxu0 %v3596
    %v3598 = vand.u32 %v884, 4294901760
    %3599 = vmatpush1.msra.mxu0 %v3598
    %v3600 = vand.u32 %v893, 4294901760
    %3601 = vmatprep.subr.mxu0 %v3600
    %v3602 = vand.u32 %v892, 4294901760
    %3603 = vmatpush1.msra.mxu0 %v3602
    %v3604 = vand.u32 %v901, 4294901760
    %3605 = vmatprep.subr.mxu0 %v3604
    %v3606 = vand.u32 %v900, 4294901760
    %3607 = vmatpush1.msra.mxu0 %v3606
    %v3608 = vand.u32 %v909, 4294901760
    %3609 = vmatprep.subr.mxu0 %v3608
    %v3610 = vand.u32 %v908, 4294901760
    %3611 = vmatpush1.msra.mxu0 %v3610
    %v3612 = vand.u32 %v917, 4294901760
    %3613 = vmatprep.subr.mxu0 %v3612
    %v3614 = vand.u32 %v916, 4294901760
    %3615 = vmatpush1.msra.mxu0 %v3614
    %3616 = vmatprep.subr.mxu0 0.0
    %3617 = vmatpush1.msra.mxu0 0.0
    %3618 = vmatprep.subr.mxu0 0.0
    %3619 = vmatpush1.msra.mxu0 0.0
    %3620 = vmatprep.subr.mxu0 0.0
    %3621 = vmatpush1.msra.mxu0 0.0
    %3622 = vmatprep.subr.mxu0 0.0
    %3623 = vmatpush1.msra.mxu0 0.0
    %3624 = vmatprep.subr.mxu0 0.0
    %3625 = vmatpush1.msra.mxu0 0.0
    %3626 = vmatprep.subr.mxu0 0.0
    %3627 = vmatpush1.msra.mxu0 0.0
    %3628 = vmatprep.subr.mxu0 0.0
    %3629 = vmatpush1.msra.mxu0 0.0
    %3630 = vmatprep.subr.mxu0 0.0
    %3631 = vmatpush1.msra.mxu0 0.0
    %3632 = vmatprep.subr.mxu0 0.0
    %3633 = vmatpush1.msra.mxu0 0.0
    %3634 = vmatprep.subr.mxu0 0.0
    %3635 = vmatpush1.msra.mxu0 0.0
    %3636 = vmatprep.subr.mxu0 0.0
    %3637 = vmatpush1.msra.mxu0 0.0
    %3638 = vmatprep.subr.mxu0 0.0
    %3639 = vmatpush1.msra.mxu0 0.0
    %3640 = vmatprep.subr.mxu0 0.0
    %3641 = vmatpush1.msra.mxu0 0.0
    %3642 = vmatprep.subr.mxu0 0.0
    %3643 = vmatpush1.msra.mxu0 0.0
    %3644 = vmatprep.subr.mxu0 0.0
    %3645 = vmatpush1.msra.mxu0 0.0
    %3646 = vmatprep.subr.mxu0 0.0
    %3647 = vmatpush1.msra.mxu0 0.0
    %3648 = vmatprep.subr.mxu0 0.0
    %3649 = vmatpush1.msra.mxu0 0.0
    %3650 = vmatprep.subr.mxu0 0.0
    %3651 = vmatpush1.msra.mxu0 0.0
    %3652 = vmatprep.subr.mxu0 0.0
    %3653 = vmatpush1.msra.mxu0 0.0
    %3654 = vmatprep.subr.mxu0 0.0
    %3655 = vmatpush1.msra.mxu0 0.0
    %3656 = vmatprep.subr.mxu0 0.0
    %3657 = vmatpush1.msra.mxu0 0.0
    %3658 = vmatprep.subr.mxu0 0.0
    %3659 = vmatpush1.msra.mxu0 0.0
    %3660 = vmatprep.mubr.f32.mxu0 0.0
    %v3661 = vand.u32 %v920, 4294901760
    %v3662 = vsub.f32 %v920, %v3661
    %v3663 = vand.u32 %v3662, 4294901760
    %3664 = vmatmul.mubr.f32.gmra.mrb[0].mxu0 %v3663
    %v3665 = vpop.f32.mrb[0].mxu0
    %v3666 = vadd.f32 %v3564, %v3665
    %v3667 = vpop.f32.mrb[0].mxu0
    %v3668 = vadd.f32 %v3566, %v3667
    %3669 = vmatprep.mubr.f32.mxu0 0.0
    %v3670 = vand.u32 %v923, 4294901760
    %v3671 = vsub.f32 %v923, %v3670
    %v3672 = vand.u32 %v3671, 4294901760
    %3673 = vmatmul.mubr.f32.gmra.mrb[0].mxu0 %v3672
    %v3674 = vpop.f32.mrb[0].mxu0
    %v3675 = vadd.f32 %v3572, %v3674
    %v3676 = vpop.f32.mrb[0].mxu0
    %v3677 = vadd.f32 %v3574, %v3676
    %3678 = vdwg.mxu0
    %v3679 = vand.u32 %v845, 4294901760
    %v3680 = vsub.f32 %v845, %v3679
    %v3681 = vand.u32 %v3680, 4294901760
    %3682 = vmatprep.subr.mxu0 %v3681
    %v3683 = vand.u32 %v844, 4294901760
    %v3684 = vsub.f32 %v844, %v3683
    %v3685 = vand.u32 %v3684, 4294901760
    %3686 = vmatpush1.msra.mxu0 %v3685
    %v3687 = vand.u32 %v853, 4294901760
    %v3688 = vsub.f32 %v853, %v3687
    %v3689 = vand.u32 %v3688, 4294901760
    %3690 = vmatprep.subr.mxu0 %v3689
    %v3691 = vand.u32 %v852, 4294901760
    %v3692 = vsub.f32 %v852, %v3691
    %v3693 = vand.u32 %v3692, 4294901760
    %3694 = vmatpush1.msra.mxu0 %v3693
    %v3695 = vand.u32 %v861, 4294901760
    %v3696 = vsub.f32 %v861, %v3695
    %v3697 = vand.u32 %v3696, 4294901760
    %3698 = vmatprep.subr.mxu0 %v3697
    %v3699 = vand.u32 %v860, 4294901760
    %v3700 = vsub.f32 %v860, %v3699
    %v3701 = vand.u32 %v3700, 4294901760
    %3702 = vmatpush1.msra.mxu0 %v3701
    %v3703 = vand.u32 %v869, 4294901760
    %v3704 = vsub.f32 %v869, %v3703
    %v3705 = vand.u32 %v3704, 4294901760
    %3706 = vmatprep.subr.mxu0 %v3705
    %v3707 = vand.u32 %v868, 4294901760
    %v3708 = vsub.f32 %v868, %v3707
    %v3709 = vand.u32 %v3708, 4294901760
    %3710 = vmatpush1.msra.mxu0 %v3709
    %v3711 = vand.u32 %v877, 4294901760
    %v3712 = vsub.f32 %v877, %v3711
    %v3713 = vand.u32 %v3712, 4294901760
    %3714 = vmatprep.subr.mxu0 %v3713
    %v3715 = vand.u32 %v876, 4294901760
    %v3716 = vsub.f32 %v876, %v3715
    %v3717 = vand.u32 %v3716, 4294901760
    %3718 = vmatpush1.msra.mxu0 %v3717
    %v3719 = vand.u32 %v885, 4294901760
    %v3720 = vsub.f32 %v885, %v3719
    %v3721 = vand.u32 %v3720, 4294901760
    %3722 = vmatprep.subr.mxu0 %v3721
    %v3723 = vand.u32 %v884, 4294901760
    %v3724 = vsub.f32 %v884, %v3723
    %v3725 = vand.u32 %v3724, 4294901760
    %3726 = vmatpush1.msra.mxu0 %v3725
    %v3727 = vand.u32 %v893, 4294901760
    %v3728 = vsub.f32 %v893, %v3727
    %v3729 = vand.u32 %v3728, 4294901760
    %3730 = vmatprep.subr.mxu0 %v3729
    %v3731 = vand.u32 %v892, 4294901760
    %v3732 = vsub.f32 %v892, %v3731
    %v3733 = vand.u32 %v3732, 4294901760
    %3734 = vmatpush1.msra.mxu0 %v3733
    %v3735 = vand.u32 %v901, 4294901760
    %v3736 = vsub.f32 %v901, %v3735
    %v3737 = vand.u32 %v3736, 4294901760
    %3738 = vmatprep.subr.mxu0 %v3737
    %v3739 = vand.u32 %v900, 4294901760
    %v3740 = vsub.f32 %v900, %v3739
    %v3741 = vand.u32 %v3740, 4294901760
    %3742 = vmatpush1.msra.mxu0 %v3741
    %v3743 = vand.u32 %v909, 4294901760
    %v3744 = vsub.f32 %v909, %v3743
    %v3745 = vand.u32 %v3744, 4294901760
    %3746 = vmatprep.subr.mxu0 %v3745
    %v3747 = vand.u32 %v908, 4294901760
    %v3748 = vsub.f32 %v908, %v3747
    %v3749 = vand.u32 %v3748, 4294901760
    %3750 = vmatpush1.msra.mxu0 %v3749
    %v3751 = vand.u32 %v917, 4294901760
    %v3752 = vsub.f32 %v917, %v3751
    %v3753 = vand.u32 %v3752, 4294901760
    %3754 = vmatprep.subr.mxu0 %v3753
    %v3755 = vand.u32 %v916, 4294901760
    %v3756 = vsub.f32 %v916, %v3755
    %v3757 = vand.u32 %v3756, 4294901760
    %3758 = vmatpush1.msra.mxu0 %v3757
    %3759 = vmatprep.subr.mxu0 0.0
    %3760 = vmatpush1.msra.mxu0 0.0
    %3761 = vmatprep.subr.mxu0 0.0
    %3762 = vmatpush1.msra.mxu0 0.0
    %3763 = vmatprep.subr.mxu0 0.0
    %3764 = vmatpush1.msra.mxu0 0.0
    %3765 = vmatprep.subr.mxu0 0.0
    %3766 = vmatpush1.msra.mxu0 0.0
    %3767 = vmatprep.subr.mxu0 0.0
    %3768 = vmatpush1.msra.mxu0 0.0
    %3769 = vmatprep.subr.mxu0 0.0
    %3770 = vmatpush1.msra.mxu0 0.0
    %3771 = vmatprep.subr.mxu0 0.0
    %3772 = vmatpush1.msra.mxu0 0.0
    %3773 = vmatprep.subr.mxu0 0.0
    %3774 = vmatpush1.msra.mxu0 0.0
    %3775 = vmatprep.subr.mxu0 0.0
    %3776 = vmatpush1.msra.mxu0 0.0
    %3777 = vmatprep.subr.mxu0 0.0
    %3778 = vmatpush1.msra.mxu0 0.0
    %3779 = vmatprep.subr.mxu0 0.0
    %3780 = vmatpush1.msra.mxu0 0.0
    %3781 = vmatprep.subr.mxu0 0.0
    %3782 = vmatpush1.msra.mxu0 0.0
    %3783 = vmatprep.subr.mxu0 0.0
    %3784 = vmatpush1.msra.mxu0 0.0
    %3785 = vmatprep.subr.mxu0 0.0
    %3786 = vmatpush1.msra.mxu0 0.0
    %3787 = vmatprep.subr.mxu0 0.0
    %3788 = vmatpush1.msra.mxu0 0.0
    %3789 = vmatprep.subr.mxu0 0.0
    %3790 = vmatpush1.msra.mxu0 0.0
    %3791 = vmatprep.subr.mxu0 0.0
    %3792 = vmatpush1.msra.mxu0 0.0
    %3793 = vmatprep.subr.mxu0 0.0
    %3794 = vmatpush1.msra.mxu0 0.0
    %3795 = vmatprep.subr.mxu0 0.0
    %3796 = vmatpush1.msra.mxu0 0.0
    %3797 = vmatprep.subr.mxu0 0.0
    %3798 = vmatpush1.msra.mxu0 0.0
    %3799 = vmatprep.subr.mxu0 0.0
    %3800 = vmatpush1.msra.mxu0 0.0
    %3801 = vmatprep.subr.mxu0 0.0
    %3802 = vmatpush1.msra.mxu0 0.0
    %3803 = vmatprep.mubr.f32.mxu0 0.0
    %v3804 = vand.u32 %v920, 4294901760
    %3805 = vmatmul.mubr.f32.gmra.mrb[0].mxu0 %v3804
    %v3806 = vpop.f32.mrb[0].mxu0
    %v3807 = vadd.f32 %v3666, %v3806
    %v3808 = vpop.f32.mrb[0].mxu0
    %v3809 = vadd.f32 %v3668, %v3808
    %3810 = vmatprep.mubr.f32.mxu0 0.0
    %v3811 = vand.u32 %v923, 4294901760
    %3812 = vmatmul.mubr.f32.gmra.mrb[0].mxu0 %v3811
    %v3813 = vpop.f32.mrb[0].mxu0
    %v3814 = vadd.f32 %v3675, %v3813
    %v3815 = vpop.f32.mrb[0].mxu0
    %v3816 = vadd.f32 %v3677, %v3815
    %3817 = vdwg.mxu0
    %v3818 = vand.u32 %v845, 4294901760
    %3819 = vmatprep.subr.mxu0 %v3818
    %v3820 = vand.u32 %v844, 4294901760
    %3821 = vmatpush1.msra.mxu0 %v3820
    %v3822 = vand.u32 %v853, 4294901760
    %3823 = vmatprep.subr.mxu0 %v3822
    %v3824 = vand.u32 %v852, 4294901760
    %3825 = vmatpush1.msra.mxu0 %v3824
    %v3826 = vand.u32 %v861, 4294901760
    %3827 = vmatprep.subr.mxu0 %v3826
    %v3828 = vand.u32 %v860, 4294901760
    %3829 = vmatpush1.msra.mxu0 %v3828
    %v3830 = vand.u32 %v869, 4294901760
    %3831 = vmatprep.subr.mxu0 %v3830
    %v3832 = vand.u32 %v868, 4294901760
    %3833 = vmatpush1.msra.mxu0 %v3832
    %v3834 = vand.u32 %v877, 4294901760
    %3835 = vmatprep.subr.mxu0 %v3834
    %v3836 = vand.u32 %v876, 4294901760
    %3837 = vmatpush1.msra.mxu0 %v3836
    %v3838 = vand.u32 %v885, 4294901760
    %3839 = vmatprep.subr.mxu0 %v3838
    %v3840 = vand.u32 %v884, 4294901760
    %3841 = vmatpush1.msra.mxu0 %v3840
    %v3842 = vand.u32 %v893, 4294901760
    %3843 = vmatprep.subr.mxu0 %v3842
    %v3844 = vand.u32 %v892, 4294901760
    %3845 = vmatpush1.msra.mxu0 %v3844
    %v3846 = vand.u32 %v901, 4294901760
    %3847 = vmatprep.subr.mxu0 %v3846
    %v3848 = vand.u32 %v900, 4294901760
    %3849 = vmatpush1.msra.mxu0 %v3848
    %v3850 = vand.u32 %v909, 4294901760
    %3851 = vmatprep.subr.mxu0 %v3850
    %v3852 = vand.u32 %v908, 4294901760
    %3853 = vmatpush1.msra.mxu0 %v3852
    %v3854 = vand.u32 %v917, 4294901760
    %3855 = vmatprep.subr.mxu0 %v3854
    %v3856 = vand.u32 %v916, 4294901760
    %3857 = vmatpush1.msra.mxu0 %v3856
    %3858 = vmatprep.subr.mxu0 0.0
    %3859 = vmatpush1.msra.mxu0 0.0
    %3860 = vmatprep.subr.mxu0 0.0
    %3861 = vmatpush1.msra.mxu0 0.0
    %3862 = vmatprep.subr.mxu0 0.0
    %3863 = vmatpush1.msra.mxu0 0.0
    %3864 = vmatprep.subr.mxu0 0.0
    %3865 = vmatpush1.msra.mxu0 0.0
    %3866 = vmatprep.subr.mxu0 0.0
    %3867 = vmatpush1.msra.mxu0 0.0
    %3868 = vmatprep.subr.mxu0 0.0
    %3869 = vmatpush1.msra.mxu0 0.0
    %3870 = vmatprep.subr.mxu0 0.0
    %3871 = vmatpush1.msra.mxu0 0.0
    %3872 = vmatprep.subr.mxu0 0.0
    %3873 = vmatpush1.msra.mxu0 0.0
    %3874 = vmatprep.subr.mxu0 0.0
    %3875 = vmatpush1.msra.mxu0 0.0
    %3876 = vmatprep.subr.mxu0 0.0
    %3877 = vmatpush1.msra.mxu0 0.0
    %3878 = vmatprep.subr.mxu0 0.0
    %3879 = vmatpush1.msra.mxu0 0.0
    %3880 = vmatprep.subr.mxu0 0.0
    %3881 = vmatpush1.msra.mxu0 0.0
    %3882 = vmatprep.subr.mxu0 0.0
    %3883 = vmatpush1.msra.mxu0 0.0
    %3884 = vmatprep.subr.mxu0 0.0
    %3885 = vmatpush1.msra.mxu0 0.0
    %3886 = vmatprep.subr.mxu0 0.0
    %3887 = vmatpush1.msra.mxu0 0.0
    %3888 = vmatprep.subr.mxu0 0.0
    %3889 = vmatpush1.msra.mxu0 0.0
    %3890 = vmatprep.subr.mxu0 0.0
    %3891 = vmatpush1.msra.mxu0 0.0
    %3892 = vmatprep.subr.mxu0 0.0
    %3893 = vmatpush1.msra.mxu0 0.0
    %3894 = vmatprep.subr.mxu0 0.0
    %3895 = vmatpush1.msra.mxu0 0.0
    %3896 = vmatprep.subr.mxu0 0.0
    %3897 = vmatpush1.msra.mxu0 0.0
    %3898 = vmatprep.subr.mxu0 0.0
    %3899 = vmatpush1.msra.mxu0 0.0
    %3900 = vmatprep.subr.mxu0 0.0
    %3901 = vmatpush1.msra.mxu0 0.0
    %3902 = vmatprep.mubr.f32.mxu0 0.0
    %v3903 = vand.u32 %v920, 4294901760
    %3904 = vmatmul.mubr.f32.gmra.mrb[0].mxu0 %v3903
    %v3905 = vpop.f32.mrb[0].mxu0
    %v3906 = vadd.f32 %v3807, %v3905
    %v3907 = vpop.f32.mrb[0].mxu0
    %v3908 = vadd.f32 %v3809, %v3907
    %3909 = vmatprep.mubr.f32.mxu0 0.0
    %v3910 = vand.u32 %v923, 4294901760
    %3911 = vmatmul.mubr.f32.gmra.mrb[0].mxu0 %v3910
    %v3912 = vpop.f32.mrb[0].mxu0
    %v3913 = vadd.f32 %v3814, %v3912
    %v3914 = vpop.f32.mrb[0].mxu0
    %v3915 = vadd.f32 %v3816, %v3914
    %3916 = vdwg.mxu0
    %v3917 = vmax.f32 %v1662, 0.0
    %v3918 = vmax.f32 %v1664, 0.0
    %v3919 = vmax.f32 %v2410, 0.0
    %v3920 = vmax.f32 %v2412, 0.0
    %v3921 = vmax.f32 %v3158, 0.0
    %v3922 = vmax.f32 %v3160, 0.0
    %v3923 = vmax.f32 %v3906, 0.0
    %v3924 = vmax.f32 %v3908, 0.0
    %v3925 = vmax.f32 %v1669, 0.0
    %v3926 = vmax.f32 %v1671, 0.0
    %v3927 = vmax.f32 %v2417, 0.0
    %v3928 = vmax.f32 %v2419, 0.0
    %v3929 = vmax.f32 %v3165, 0.0
    %v3930 = vmax.f32 %v3167, 0.0
    %v3931 = vmax.f32 %v3913, 0.0
    %v3932 = vmax.f32 %v3915, 0.0
    %3933 = vrot.lane.b32.xlu0 %v3917, 127
    %v3934 = vpop.permute.xlu0 %3933
    %3935 = vrot.lane.b32.xlu0 %v3925, 127
    %v3936 = vpop.permute.xlu0 %3935
    %3937 = vrot.lane.b32.xlu0 %v3918, 127
    %v3938 = vpop.permute.xlu0 %3937
    %3939 = vrot.lane.b32.xlu0 %v3926, 127
    %v3940 = vpop.permute.xlu0 %3939
    %3941 = vrot.lane.b32.xlu0 %v3919, 127
    %v3942 = vpop.permute.xlu0 %3941
    %3943 = vrot.lane.b32.xlu0 %v3927, 127
    %v3944 = vpop.permute.xlu0 %3943
    %3945 = vrot.lane.b32.xlu0 %v3920, 127
    %v3946 = vpop.permute.xlu0 %3945
    %3947 = vrot.lane.b32.xlu0 %v3928, 127
    %v3948 = vpop.permute.xlu0 %3947
    %3949 = vrot.lane.b32.xlu0 %v3921, 127
    %v3950 = vpop.permute.xlu0 %3949
    %3951 = vrot.lane.b32.xlu0 %v3929, 127
    %v3952 = vpop.permute.xlu0 %3951
    %3953 = vrot.lane.b32.xlu0 %v3922, 127
    %v3954 = vpop.permute.xlu0 %3953
    %3955 = vrot.lane.b32.xlu0 %v3930, 127
    %v3956 = vpop.permute.xlu0 %3955
    %3957 = vrot.lane.b32.xlu0 %v3923, 127
    %v3958 = vpop.permute.xlu0 %3957
    %3959 = vrot.lane.b32.xlu0 %v3931, 127
    %v3960 = vpop.permute.xlu0 %3959
    %3961 = vrot.lane.b32.xlu0 %v3924, 127
    %v3962 = vpop.permute.xlu0 %3961
    %3963 = vrot.lane.b32.xlu0 %v3932, 127
    %v3964 = vpop.permute.xlu0 %3963
    %v3965 = vsel %vm315, %v3958, %v3962
    %v3966 = vsel %vm315, %v3960, %v3964
    %v3967 = vsel %vm315, %v3954, %v3958
    %v3968 = vsel %vm315, %v3956, %v3960
    %v3969 = vsel %vm315, %v3950, %v3954
    %v3970 = vsel %vm315, %v3952, %v3956
    %v3971 = vsel %vm315, %v3946, %v3950
    %v3972 = vsel %vm315, %v3948, %v3952
    %v3973 = vsel %vm315, %v3942, %v3946
    %v3974 = vsel %vm315, %v3944, %v3948
    %v3975 = vsel %vm315, %v3938, %v3942
    %v3976 = vsel %vm315, %v3940, %v3944
    %v3977 = vsel %vm315, %v3934, %v3938
    %v3978 = vsel %vm315, %v3936, %v3940
    %v3979 = vsel %vm315, %v3962, %v3934
    %v3980 = vsel %vm315, %v3964, %v3936
    %v3981 = vmax.f32 %v3917, %v3977
    %v3982 = vmax.f32 %v3918, %v3975
    %v3983 = vmax.f32 %v3919, %v3973
    %v3984 = vmax.f32 %v3920, %v3971
    %v3985 = vmax.f32 %v3921, %v3969
    %v3986 = vmax.f32 %v3922, %v3967
    %v3987 = vmax.f32 %v3923, %v3965
    %v3988 = vmax.f32 %v3924, %v3979
    %v3989 = vmax.f32 %v3925, %v3978
    %v3990 = vmax.f32 %v3926, %v3976
    %v3991 = vmax.f32 %v3927, %v3974
    %v3992 = vmax.f32 %v3928, %v3972
    %v3993 = vmax.f32 %v3929, %v3970
    %v3994 = vmax.f32 %v3930, %v3968
    %v3995 = vmax.f32 %v3931, %v3966
    %v3996 = vmax.f32 %v3932, %v3980
    %v3997 = vld [vmem:[%s3] sm:$0xff]
    %v3998 = vld [vmem:[%s3 + $0x8] sm:$0xff]
    %v3999 = vmul.f32 %v3981, %v3997
    %v4000 = vmul.f32 %v3982, %v3997
    %v4001 = vmul.f32 %v3983, %v3997
    %v4002 = vmul.f32 %v3984, %v3997
    %v4003 = vmul.f32 %v3985, %v3997
    %v4004 = vmul.f32 %v3986, %v3997
    %v4005 = vmul.f32 %v3987, %v3997
    %v4006 = vmul.f32 %v3988, %v3997
    %v4007 = vmul.f32 %v3989, %v3998
    %v4008 = vmul.f32 %v3990, %v3998
    %v4009 = vmul.f32 %v3991, %v3998
    %v4010 = vmul.f32 %v3992, %v3998
    %v4011 = vmul.f32 %v3993, %v3998
    %v4012 = vmul.f32 %v3994, %v3998
    %v4013 = vmul.f32 %v3995, %v3998
    %v4014 = vmul.f32 %v3996, %v3998
    %v4015 = vadd.f32 %v3999, %v4007
    %v4016 = vrot.slane %v4015, 4
    %v4017 = vadd.f32 %v4015, %v4016
    %v4018 = vrot.slane %v4017, 2
    %v4019 = vadd.f32 %v4017, %v4018
    %v4020 = vrot.slane %v4019, 1
    %v4021 = vadd.f32 %v4019, %v4020
    %v4022 = vadd.f32 %v4000, %v4008
    %v4023 = vrot.slane %v4022, 4
    %v4024 = vadd.f32 %v4022, %v4023
    %v4025 = vrot.slane %v4024, 2
    %v4026 = vadd.f32 %v4024, %v4025
    %v4027 = vrot.slane %v4026, 1
    %v4028 = vadd.f32 %v4026, %v4027
    %v4029 = vadd.f32 %v4001, %v4009
    %v4030 = vrot.slane %v4029, 4
    %v4031 = vadd.f32 %v4029, %v4030
    %v4032 = vrot.slane %v4031, 2
    %v4033 = vadd.f32 %v4031, %v4032
    %v4034 = vrot.slane %v4033, 1
    %v4035 = vadd.f32 %v4033, %v4034
    %v4036 = vadd.f32 %v4002, %v4010
    %v4037 = vrot.slane %v4036, 4
    %v4038 = vadd.f32 %v4036, %v4037
    %v4039 = vrot.slane %v4038, 2
    %v4040 = vadd.f32 %v4038, %v4039
    %v4041 = vrot.slane %v4040, 1
    %v4042 = vadd.f32 %v4040, %v4041
    %v4043 = vadd.f32 %v4003, %v4011
    %v4044 = vrot.slane %v4043, 4
    %v4045 = vadd.f32 %v4043, %v4044
    %v4046 = vrot.slane %v4045, 2
    %v4047 = vadd.f32 %v4045, %v4046
    %v4048 = vrot.slane %v4047, 1
    %v4049 = vadd.f32 %v4047, %v4048
    %v4050 = vadd.f32 %v4004, %v4012
    %v4051 = vrot.slane %v4050, 4
    %v4052 = vadd.f32 %v4050, %v4051
    %v4053 = vrot.slane %v4052, 2
    %v4054 = vadd.f32 %v4052, %v4053
    %v4055 = vrot.slane %v4054, 1
    %v4056 = vadd.f32 %v4054, %v4055
    %v4057 = vadd.f32 %v4005, %v4013
    %v4058 = vrot.slane %v4057, 4
    %v4059 = vadd.f32 %v4057, %v4058
    %v4060 = vrot.slane %v4059, 2
    %v4061 = vadd.f32 %v4059, %v4060
    %v4062 = vrot.slane %v4061, 1
    %v4063 = vadd.f32 %v4061, %v4062
    %v4064 = vadd.f32 %v4006, %v4014
    %v4065 = vrot.slane %v4064, 4
    %v4066 = vadd.f32 %v4064, %v4065
    %v4067 = vrot.slane %v4066, 2
    %v4068 = vadd.f32 %v4066, %v4067
    %v4069 = vrot.slane %v4068, 1
    %v4070 = vadd.f32 %v4068, %v4069
    %4071 = vst [vmem:[#allocation3] sm:$0x1] %v4021
    %4072 = vst [vmem:[#allocation3 + $0x1] sm:$0x1] %v4028
    %4073 = vst [vmem:[#allocation3 + $0x2] sm:$0x1] %v4035
    %4074 = vst [vmem:[#allocation3 + $0x3] sm:$0x1] %v4042
    %4075 = vst [vmem:[#allocation3 + $0x4] sm:$0x1] %v4049
    %4076 = vst [vmem:[#allocation3 + $0x5] sm:$0x1] %v4056
    %4077 = vst [vmem:[#allocation3 + $0x6] sm:$0x1] %v4063
    %4078 = vst [vmem:[#allocation3 + $0x7] sm:$0x1] %v4070
    %v4079 = vld [vmem:[#allocation3] sm:$0xff]
    %4080 = vadd.xlane.f32.xlu0 %v4079
    %v4081 = vpop.xlane.xlu0 %4080
    %s4082 = sld [smem:[#allocation4]]
    %v4083 = vstv %s4082
    %v4084 = vadd.f32 %v4081, %v4083
    %v4085 = vxor.u32 %v4084, 2147483648
    %v4086 = vmul.f32 %v4085, 1.442695
    %v4087 = vpow.pop %v4086
    %v4088 = vadd.f32 %v4087, 1.0
    %v4089 = vrcp.pop %v4088
    %v4090 = vmul.f32 1.0, %v4089
    %vm4091 = vcmask 7168
    %4092 = vst.msk [vmem:[%s5] sm:$0xff] %vm4091, %v4090
    // Predicated region
    $region26: #{tpu_custom_call.1} parent=1 // pred_check
      _
    $region27: #{tpu_custom_call.1} parent=1 // pred_check_branch
      %4094 = sbr.rel (0) target = $region29
    $region28: #{tpu_custom_call.1} parent=1 // pred_region
      _
    $region29: #{tpu_custom_call.1} parent=1 // pred_fallthru
      _
    // Predicated region
    $region30: #{tpu_custom_call.1} parent=1 // pred_check
      _
    $region31: #{tpu_custom_call.1} parent=1 // pred_check_branch
      %4096 = sbr.rel (0) target = $region33
    $region32: #{tpu_custom_call.1} parent=1 // pred_region
      _
    $region33: #{tpu_custom_call.1} parent=1 // pred_fallthru
      _
    %4097 = vsyncpa [#allocation6], 1

</llo_original>
